<compile_context>
chip_gen: v7x
topology: tpu7x:2x2x1
jax: 0.10.0
libtpu: 0.0.40
codegen_flags: <defaults>
</compile_context>

<pallas_src>
import functools

import numpy as np
import jax
import jax.numpy as jnp
from jax.experimental import pallas as pl
from jax.experimental.pallas import tpu as pltpu


# ----------------------------------------------------------------------------
# Fused Pallas kernel: conv3x3+ReLU -> conv3x3+ReLU -> global avg pool
# One batch block per grid step; all intermediates live as values in VMEM/vregs.
# ----------------------------------------------------------------------------
def _fused_backbone_kernel(x_ref, w1_ref, b1_ref, w2_ref, b2_ref, o_ref,
                           *, Bblk, H, W, C_in, C_mid, C_out):
    """
    x_ref  : (Bblk, H, W, C_in)   bf16  unpadded NHWC input block
    w1_ref : (9*C_in, C_mid)      bf16  conv1 weights (rows = tap-major, ch-minor)
    w2_ref : (9*C_mid, C_out)     bf16  conv2 weights
    b1_ref : (1, C_mid)  f32,  b2_ref : (1, C_out)  f32
    o_ref  : (Bblk, C_out)        f32   pooled features for this batch block
    """

    def conv3x3_relu(x, w, b):
        # x: (Bb, H, W, C) bf16; w: (9*C, Co) bf16; b: (1, Co) f32 -> (M, Co) f32
        Bb, Hh, Ww, C = x.shape
        M = Bb * Hh * Ww
        # 'same' zero halo built on the value (no HBM pad copy, no scratch).
        zr = jnp.zeros((Bb, 1, Ww, C), x.dtype)
        xp = jnp.concatenate([zr, x, zr], axis=1)          # (Bb, H+2, W,   C)
        zc = jnp.zeros((Bb, Hh + 2, 1, C), x.dtype)
        xp = jnp.concatenate([zc, xp, zc], axis=2)         # (Bb, H+2, W+2, C)
        # In-VMEM im2col: 9 shifted views concatenated along K so each conv is
        # a SINGLE MXU matmul with K = 9*C (instead of 9 tiny K=C matmuls).
        taps = [xp[:, dy:dy + Hh, dx:dx + Ww, :].reshape(M, C)
                for dy in range(3) for dx in range(3)]
        patch = jnp.concatenate(taps, axis=-1)             # (M, 9*C) bf16
        acc = jnp.dot(patch, w, preferred_element_type=jnp.float32)
        return jnp.maximum(acc + b, 0.0)                   # (M, Co) f32

    x = x_ref[...]                                          # bf16
    y1 = conv3x3_relu(x, w1_ref[...], b1_ref[...])          # (M, C_mid) f32
    y1 = y1.astype(jnp.bfloat16).reshape(Bblk, H, W, C_mid)
    y2 = conv3x3_relu(y1, w2_ref[...], b2_ref[...])         # (M, C_out) f32

    # AdaptiveAvgPool2d(1) + flatten: mean over all spatial positions.
    y2 = y2.reshape(Bblk, H * W, C_out)
    o_ref[...] = (jnp.sum(y2, axis=1) * (1.0 / (H * W))).astype(o_ref.dtype)


# ----------------------------------------------------------------------------
# Forward pass (equivalent of FeatureExtractor.forward)
# ----------------------------------------------------------------------------
@functools.partial(jax.jit, static_argnames=("block_b",))
def feature_extractor_forward(params, x_nchw, block_b=64):
    """features(x).view(B, -1) — single fused, batch-blocked Pallas kernel."""
    B, C_in, H, W = x_nchw.shape
    C_mid = params["b1"].shape[-1]
    C_out = params["b2"].shape[-1]

    # Batch blocking: fold Bblk images into one grid step (M = Bblk*H*W rows).
    # Bblk=64 keeps the per-step working set at a few MiB — well under the
    # scoped VMEM limits on v5e (16 MiB), v6e (32 MiB) and v7x (32 MiB).
    Bblk = min(B, block_b)
    n_blocks = pl.cdiv(B, Bblk)
    B_pad = n_blocks * Bblk

    x = jnp.transpose(x_nchw, (0, 2, 3, 1)).astype(jnp.bfloat16)   # NHWC bf16
    if B_pad != B:
        x = jnp.pad(x, ((0, B_pad - B), (0, 0), (0, 0), (0, 0)))

    kernel = functools.partial(_fused_backbone_kernel, Bblk=Bblk, H=H, W=W,
                               C_in=C_in, C_mid=C_mid, C_out=C_out)

    out = pl.pallas_call(
        kernel,
        out_shape=jax.ShapeDtypeStruct((B_pad, C_out), jnp.float32),
        grid=(n_blocks,),
        in_specs=[
            # one batch block of unpadded bf16 NHWC input per grid step
            pl.BlockSpec((Bblk, H, W, C_in), lambda b: (b, 0, 0, 0)),
            # weights/biases: constant block index -> no re-DMA across steps
            pl.BlockSpec((9 * C_in, C_mid), lambda b: (0, 0)),
            pl.BlockSpec((1, C_mid), lambda b: (0, 0)),
            pl.BlockSpec((9 * C_mid, C_out), lambda b: (0, 0)),
            pl.BlockSpec((1, C_out), lambda b: (0, 0)),
        ],
        out_specs=pl.BlockSpec((Bblk, C_out), lambda b: (b, 0)),
        compiler_params=pltpu.CompilerParams(
            dimension_semantics=("parallel",),      # v7x megacore sharding
            vmem_limit_bytes=32 << 20),             # headroom on v5e default
    )(x, params["w1"], params["b1"], params["w2"], params["b2"])

    return out[:B]                                   # x.view(B, -1)


# ----------------------------------------------------------------------------
# Parameter construction (deterministic placeholder backbone)
# ----------------------------------------------------------------------------
def init_backbone_params(key, c_in=4, c_mid=8, c_out=16):
    k1, k2, k3, k4 = jax.random.split(key, 4)
    return {
        "w1": jax.random.normal(k1, (c_mid, c_in, 3, 3), jnp.float32) * 0.1,
        "b1": jax.random.normal(k2, (c_mid,), jnp.float32) * 0.1,
        "w2": jax.random.normal(k3, (c_out, c_mid, 3, 3), jnp.float32) * 0.1,
        "b2": jax.random.normal(k4, (c_out,), jnp.float32) * 0.1,
    }


def _conv_weight_to_k_major(w_oihw, dtype=jnp.bfloat16):
    """PyTorch conv weight (Co, Ci, kh, kw) -> (kh*kw*Ci, Co), tap-major rows."""
    c_out, c_in, kh, kw = w_oihw.shape
    return (jnp.transpose(w_oihw, (2, 3, 1, 0))
            .reshape(kh * kw * c_in, c_out).astype(dtype))


def prepare_params(raw):
    """One-time layout/dtype transform, done outside the jitted forward."""
    return {
        "w1": _conv_weight_to_k_major(raw["w1"]),
        "b1": raw["b1"].reshape(1, -1).astype(jnp.float32),
        "w2": _conv_weight_to_k_major(raw["w2"]),
        "b2": raw["b2"].reshape(1, -1).astype(jnp.float32),
    }


# ----------------------------------------------------------------------------
# Pure-JAX reference (loose numerical sanity check; kernel uses bf16 activations)
# ----------------------------------------------------------------------------
def reference_forward(raw, x_nchw):
    w1 = raw["w1"].astype(jnp.bfloat16).astype(jnp.float32)
    w2 = raw["w2"].astype(jnp.bfloat16).astype(jnp.float32)
    dn = ("NCHW", "OIHW", "NCHW")
    y = jax.lax.conv_general_dilated(x_nchw, w1, (1, 1), "SAME",
                                     dimension_numbers=dn)
    y = jnp.maximum(y + raw["b1"][None, :, None, None], 0.0)
    y = jax.lax.conv_general_dilated(y, w2, (1, 1), "SAME",
                                     dimension_numbers=dn)
    y = jnp.maximum(y + raw["b2"][None, :, None, None], 0.0)
    return jnp.mean(y, axis=(2, 3)).reshape(x_nchw.shape[0], -1)


if __name__ == "__main__":
    key = jax.random.PRNGKey(0)
    pkey, xkey = jax.random.split(key)

    raw = init_backbone_params(pkey, c_in=4, c_mid=8, c_out=16)
    params = prepare_params(raw)
    x = jax.random.normal(xkey, (2, 4, 16, 16), jnp.float32)   # NCHW input

    out = jax.block_until_ready(feature_extractor_forward(params, x))
    assert out.shape == (2, 16), out.shape

    ref = jax.block_until_ready(reference_forward(raw, x))
    assert np.allclose(np.asarray(out), np.asarray(ref), atol=5e-2, rtol=5e-2), (
        float(np.max(np.abs(np.asarray(out) - np.asarray(ref)))))

    print("KERNEL_OK")
</pallas_src>

<mosaic_0001>
module attributes {stable_mosaic.version = 11 : i64} {
  func.func @_fused_backbone_kernel(%arg0: i32, %arg1: memref<2x16x16x4xbf16, #tpu.memory_space<vmem>>, %arg2: memref<36x8xbf16, #tpu.memory_space<vmem>>, %arg3: memref<1x8xf32, #tpu.memory_space<vmem>>, %arg4: memref<72x16xbf16, #tpu.memory_space<vmem>>, %arg5: memref<1x16xf32, #tpu.memory_space<vmem>>, %arg6: memref<2x16xf32, #tpu.memory_space<vmem>>) attributes {dimension_semantics = [#tpu.dimension_semantics<parallel>], iteration_bounds = array<i64: 1>, scalar_prefetch = 0 : i64, scratch_operands = 0 : i64, tpu.core_type = #tpu.core_type<tc>, window_params = [{transform_indices = @transform_0, window_bounds = array<i64: 2, 16, 16, 4>}, {pipeline_mode = #tpu.pipeline_mode<synchronous>, transform_indices = @transform_1, window_bounds = array<i64: 36, 8>}, {pipeline_mode = #tpu.pipeline_mode<synchronous>, transform_indices = @transform_2, window_bounds = array<i64: 1, 8>}, {pipeline_mode = #tpu.pipeline_mode<synchronous>, transform_indices = @transform_3, window_bounds = array<i64: 72, 16>}, {pipeline_mode = #tpu.pipeline_mode<synchronous>, transform_indices = @transform_4, window_bounds = array<i64: 1, 16>}, {transform_indices = @transform_5, window_bounds = array<i64: 2, 16>}]} {
    %c0 = arith.constant 0 : index
    %c0_0 = arith.constant 0 : index
    %c0_1 = arith.constant 0 : index
    %c0_2 = arith.constant 0 : index
    %0 = vector.load %arg1[%c0, %c0_0, %c0_1, %c0_2] : memref<2x16x16x4xbf16, #tpu.memory_space<vmem>>, vector<2x16x16x4xbf16>
    %c0_3 = arith.constant 0 : index
    %c0_4 = arith.constant 0 : index
    %1 = vector.load %arg2[%c0_3, %c0_4] : memref<36x8xbf16, #tpu.memory_space<vmem>>, vector<36x8xbf16>
    %c0_5 = arith.constant 0 : index
    %c0_6 = arith.constant 0 : index
    %2 = vector.load %arg3[%c0_5, %c0_6] : memref<1x8xf32, #tpu.memory_space<vmem>>, vector<1x8xf32>
    %cst = arith.constant 0.000000e+00 : bf16
    %3 = vector.broadcast %cst : bf16 to vector<2x1x16x4xbf16>
    %4 = tpu.concatenate %3, %0, %3 in 1 : vector<2x1x16x4xbf16>, vector<2x16x16x4xbf16>, vector<2x1x16x4xbf16> -> vector<2x18x16x4xbf16>
    %cst_7 = arith.constant 0.000000e+00 : bf16
    %5 = vector.broadcast %cst_7 : bf16 to vector<2x18x1x4xbf16>
    %6 = tpu.concatenate %5, %4, %5 in 2 : vector<2x18x1x4xbf16>, vector<2x18x16x4xbf16>, vector<2x18x1x4xbf16> -> vector<2x18x18x4xbf16>
    %7 = vector.extract_strided_slice %6 {offsets = [0, 0, 0, 0], sizes = [2, 16, 16, 4], strides = [1, 1, 1, 1]} : vector<2x18x18x4xbf16> to vector<2x16x16x4xbf16>
    %8 = vector.shape_cast %7 : vector<2x16x16x4xbf16> to vector<512x4xbf16>
    %9 = vector.extract_strided_slice %6 {offsets = [0, 0, 1, 0], sizes = [2, 16, 16, 4], strides = [1, 1, 1, 1]} : vector<2x18x18x4xbf16> to vector<2x16x16x4xbf16>
    %10 = vector.shape_cast %9 : vector<2x16x16x4xbf16> to vector<512x4xbf16>
    %11 = vector.extract_strided_slice %6 {offsets = [0, 0, 2, 0], sizes = [2, 16, 16, 4], strides = [1, 1, 1, 1]} : vector<2x18x18x4xbf16> to vector<2x16x16x4xbf16>
    %12 = vector.shape_cast %11 : vector<2x16x16x4xbf16> to vector<512x4xbf16>
    %13 = vector.extract_strided_slice %6 {offsets = [0, 1, 0, 0], sizes = [2, 16, 16, 4], strides = [1, 1, 1, 1]} : vector<2x18x18x4xbf16> to vector<2x16x16x4xbf16>
    %14 = vector.shape_cast %13 : vector<2x16x16x4xbf16> to vector<512x4xbf16>
    %15 = vector.extract_strided_slice %6 {offsets = [0, 1, 1, 0], sizes = [2, 16, 16, 4], strides = [1, 1, 1, 1]} : vector<2x18x18x4xbf16> to vector<2x16x16x4xbf16>
    %16 = vector.shape_cast %15 : vector<2x16x16x4xbf16> to vector<512x4xbf16>
    %17 = vector.extract_strided_slice %6 {offsets = [0, 1, 2, 0], sizes = [2, 16, 16, 4], strides = [1, 1, 1, 1]} : vector<2x18x18x4xbf16> to vector<2x16x16x4xbf16>
    %18 = vector.shape_cast %17 : vector<2x16x16x4xbf16> to vector<512x4xbf16>
    %19 = vector.extract_strided_slice %6 {offsets = [0, 2, 0, 0], sizes = [2, 16, 16, 4], strides = [1, 1, 1, 1]} : vector<2x18x18x4xbf16> to vector<2x16x16x4xbf16>
    %20 = vector.shape_cast %19 : vector<2x16x16x4xbf16> to vector<512x4xbf16>
    %21 = vector.extract_strided_slice %6 {offsets = [0, 2, 1, 0], sizes = [2, 16, 16, 4], strides = [1, 1, 1, 1]} : vector<2x18x18x4xbf16> to vector<2x16x16x4xbf16>
    %22 = vector.shape_cast %21 : vector<2x16x16x4xbf16> to vector<512x4xbf16>
    %23 = vector.extract_strided_slice %6 {offsets = [0, 2, 2, 0], sizes = [2, 16, 16, 4], strides = [1, 1, 1, 1]} : vector<2x18x18x4xbf16> to vector<2x16x16x4xbf16>
    %24 = vector.shape_cast %23 : vector<2x16x16x4xbf16> to vector<512x4xbf16>
    %25 = tpu.concatenate %8, %10, %12, %14, %16, %18, %20, %22, %24 in 1 : vector<512x4xbf16>, vector<512x4xbf16>, vector<512x4xbf16>, vector<512x4xbf16>, vector<512x4xbf16>, vector<512x4xbf16>, vector<512x4xbf16>, vector<512x4xbf16>, vector<512x4xbf16> -> vector<512x36xbf16>
    %cst_8 = arith.constant dense<0.000000e+00> : vector<512x8xf32>
    %26 = tpu.matmul %25, %1, %cst_8 {dimension_numbers = #tpu.dot_dimension_numbers<[1], [0], [0], [1], [0, 0, 1, 1], [], []>} : vector<512x36xbf16>, vector<36x8xbf16>, vector<512x8xf32> -> vector<512x8xf32>
    %27 = vector.broadcast %2 : vector<1x8xf32> to vector<512x8xf32>
    %28 = arith.addf %26, %27 : vector<512x8xf32>
    %cst_9 = arith.constant 0.000000e+00 : f32
    %29 = vector.broadcast %cst_9 : f32 to vector<512x8xf32>
    %30 = arith.maximumf %28, %29 : vector<512x8xf32>
    %31 = arith.truncf %30 : vector<512x8xf32> to vector<512x8xbf16>
    %32 = vector.shape_cast %31 : vector<512x8xbf16> to vector<2x16x16x8xbf16>
    %c0_10 = arith.constant 0 : index
    %c0_11 = arith.constant 0 : index
    %33 = vector.load %arg4[%c0_10, %c0_11] : memref<72x16xbf16, #tpu.memory_space<vmem>>, vector<72x16xbf16>
    %c0_12 = arith.constant 0 : index
    %c0_13 = arith.constant 0 : index
    %34 = vector.load %arg5[%c0_12, %c0_13] : memref<1x16xf32, #tpu.memory_space<vmem>>, vector<1x16xf32>
    %cst_14 = arith.constant 0.000000e+00 : bf16
    %35 = vector.broadcast %cst_14 : bf16 to vector<2x1x16x8xbf16>
    %36 = tpu.concatenate %35, %32, %35 in 1 : vector<2x1x16x8xbf16>, vector<2x16x16x8xbf16>, vector<2x1x16x8xbf16> -> vector<2x18x16x8xbf16>
    %cst_15 = arith.constant 0.000000e+00 : bf16
    %37 = vector.broadcast %cst_15 : bf16 to vector<2x18x1x8xbf16>
    %38 = tpu.concatenate %37, %36, %37 in 2 : vector<2x18x1x8xbf16>, vector<2x18x16x8xbf16>, vector<2x18x1x8xbf16> -> vector<2x18x18x8xbf16>
    %39 = vector.extract_strided_slice %38 {offsets = [0, 0, 0, 0], sizes = [2, 16, 16, 8], strides = [1, 1, 1, 1]} : vector<2x18x18x8xbf16> to vector<2x16x16x8xbf16>
    %40 = vector.shape_cast %39 : vector<2x16x16x8xbf16> to vector<512x8xbf16>
    %41 = vector.extract_strided_slice %38 {offsets = [0, 0, 1, 0], sizes = [2, 16, 16, 8], strides = [1, 1, 1, 1]} : vector<2x18x18x8xbf16> to vector<2x16x16x8xbf16>
    %42 = vector.shape_cast %41 : vector<2x16x16x8xbf16> to vector<512x8xbf16>
    %43 = vector.extract_strided_slice %38 {offsets = [0, 0, 2, 0], sizes = [2, 16, 16, 8], strides = [1, 1, 1, 1]} : vector<2x18x18x8xbf16> to vector<2x16x16x8xbf16>
    %44 = vector.shape_cast %43 : vector<2x16x16x8xbf16> to vector<512x8xbf16>
    %45 = vector.extract_strided_slice %38 {offsets = [0, 1, 0, 0], sizes = [2, 16, 16, 8], strides = [1, 1, 1, 1]} : vector<2x18x18x8xbf16> to vector<2x16x16x8xbf16>
    %46 = vector.shape_cast %45 : vector<2x16x16x8xbf16> to vector<512x8xbf16>
    %47 = vector.extract_strided_slice %38 {offsets = [0, 1, 1, 0], sizes = [2, 16, 16, 8], strides = [1, 1, 1, 1]} : vector<2x18x18x8xbf16> to vector<2x16x16x8xbf16>
    %48 = vector.shape_cast %47 : vector<2x16x16x8xbf16> to vector<512x8xbf16>
    %49 = vector.extract_strided_slice %38 {offsets = [0, 1, 2, 0], sizes = [2, 16, 16, 8], strides = [1, 1, 1, 1]} : vector<2x18x18x8xbf16> to vector<2x16x16x8xbf16>
    %50 = vector.shape_cast %49 : vector<2x16x16x8xbf16> to vector<512x8xbf16>
    %51 = vector.extract_strided_slice %38 {offsets = [0, 2, 0, 0], sizes = [2, 16, 16, 8], strides = [1, 1, 1, 1]} : vector<2x18x18x8xbf16> to vector<2x16x16x8xbf16>
    %52 = vector.shape_cast %51 : vector<2x16x16x8xbf16> to vector<512x8xbf16>
    %53 = vector.extract_strided_slice %38 {offsets = [0, 2, 1, 0], sizes = [2, 16, 16, 8], strides = [1, 1, 1, 1]} : vector<2x18x18x8xbf16> to vector<2x16x16x8xbf16>
    %54 = vector.shape_cast %53 : vector<2x16x16x8xbf16> to vector<512x8xbf16>
    %55 = vector.extract_strided_slice %38 {offsets = [0, 2, 2, 0], sizes = [2, 16, 16, 8], strides = [1, 1, 1, 1]} : vector<2x18x18x8xbf16> to vector<2x16x16x8xbf16>
    %56 = vector.shape_cast %55 : vector<2x16x16x8xbf16> to vector<512x8xbf16>
    %57 = tpu.concatenate %40, %42, %44, %46, %48, %50, %52, %54, %56 in 1 : vector<512x8xbf16>, vector<512x8xbf16>, vector<512x8xbf16>, vector<512x8xbf16>, vector<512x8xbf16>, vector<512x8xbf16>, vector<512x8xbf16>, vector<512x8xbf16>, vector<512x8xbf16> -> vector<512x72xbf16>
    %cst_16 = arith.constant dense<0.000000e+00> : vector<512x16xf32>
    %58 = tpu.matmul %57, %33, %cst_16 {dimension_numbers = #tpu.dot_dimension_numbers<[1], [0], [0], [1], [0, 0, 1, 1], [], []>} : vector<512x72xbf16>, vector<72x16xbf16>, vector<512x16xf32> -> vector<512x16xf32>
    %59 = vector.broadcast %34 : vector<1x16xf32> to vector<512x16xf32>
    %60 = arith.addf %58, %59 : vector<512x16xf32>
    %cst_17 = arith.constant 0.000000e+00 : f32
    %61 = vector.broadcast %cst_17 : f32 to vector<512x16xf32>
    %62 = arith.maximumf %60, %61 : vector<512x16xf32>
    %63 = vector.shape_cast %62 : vector<512x16xf32> to vector<2x256x16xf32>
    %cst_18 = arith.constant dense<0.000000e+00> : vector<2x16xf32>
    %64 = vector.multi_reduction <add>, %63, %cst_18 [1] : vector<2x256x16xf32> to vector<2x16xf32>
    %cst_19 = arith.constant 3.906250e-03 : f32
    %65 = vector.broadcast %cst_19 : f32 to vector<2x16xf32>
    %66 = arith.mulf %64, %65 : vector<2x16xf32>
    %c0_20 = arith.constant 0 : index
    %c0_21 = arith.constant 0 : index
    %67 = vector.load %arg6[%c0_20, %c0_21] : memref<2x16xf32, #tpu.memory_space<vmem>>, vector<2x16xf32>
    tpu.vector_store %arg6[%c0_20, %c0_21], %66 {strides = array<i32>} : memref<2x16xf32, #tpu.memory_space<vmem>>, vector<2x16xf32>,
    return
  }
  func.func @transform_0(%arg0: i32) -> (i32, i32, i32, i32) {
    %c0_i32 = arith.constant 0 : i32
    %c0_i32_0 = arith.constant 0 : i32
    %c0_i32_1 = arith.constant 0 : i32
    %c0_i32_2 = arith.constant 0 : i32
    return %arg0, %c0_i32, %c0_i32_0, %c0_i32_1 : i32, i32, i32, i32
  }
  func.func @transform_1(%arg0: i32) -> (i32, i32) {
    %c0_i32 = arith.constant 0 : i32
    %c0_i32_0 = arith.constant 0 : i32
    %c0_i32_1 = arith.constant 0 : i32
    return %c0_i32, %c0_i32_0 : i32, i32
  }
  func.func @transform_2(%arg0: i32) -> (i32, i32) {
    %c0_i32 = arith.constant 0 : i32
    %c0_i32_0 = arith.constant 0 : i32
    %c0_i32_1 = arith.constant 0 : i32
    return %c0_i32, %c0_i32_0 : i32, i32
  }
  func.func @transform_3(%arg0: i32) -> (i32, i32) {
    %c0_i32 = arith.constant 0 : i32
    %c0_i32_0 = arith.constant 0 : i32
    %c0_i32_1 = arith.constant 0 : i32
    return %c0_i32, %c0_i32_0 : i32, i32
  }
  func.func @transform_4(%arg0: i32) -> (i32, i32) {
    %c0_i32 = arith.constant 0 : i32
    %c0_i32_0 = arith.constant 0 : i32
    %c0_i32_1 = arith.constant 0 : i32
    return %c0_i32, %c0_i32_0 : i32, i32
  }
  func.func @transform_5(%arg0: i32) -> (i32, i32) {
    %c0_i32 = arith.constant 0 : i32
    %c0_i32_0 = arith.constant 0 : i32
    return %arg0, %c0_i32 : i32, i32
  }
}

</mosaic_0001>

<llo_original>
// kernel: feature_extractor_forward.1
$region0: #{feature_extractor_forward.1}
  #allocation0 [shape = 'u32[]', space=smem, size = 0x4, offset = 0x4, fixed_abs, tag = 'smem constant byte address 0x4 - core index']
  #allocation1 [shape = 'u32[144,128]{1,0:T(1,128)}', space=vmem, size = 0x12000, scoped, tag = 'internal scratch']
  %s0 = inlined_call_operand.vmem [shape: bf16[2,16,16,4], index: 0, kind: input, shape index: {}]
  %s1 = inlined_call_operand.vmem [shape: bf16[36,8], index: 1, kind: input, shape index: {}]
  %s2 = inlined_call_operand.vmem [shape: f32[1,8], index: 2, kind: input, shape index: {}]
  %s3 = inlined_call_operand.vmem [shape: bf16[72,16], index: 3, kind: input, shape index: {}]
  %s4 = inlined_call_operand.vmem [shape: f32[1,16], index: 4, kind: input, shape index: {}]
  %s5 = inlined_call_operand.hbm [shape: f32[2,16], index: 5, kind: output, shape index: {}]
  %s6 = sld [smem:[#allocation0]]
  $region30: #{feature_extractor_forward.1} parent=0
    _
  %s8 = ssub.s32 1, %s6
  %s9 = scalar_select 0, %s8, %s6
  $region1: #{feature_extractor_forward.1} parent=0
    #allocation2 [shape = 'u8[1024]{0}', space=vmem, size = 0x400, scoped, tag = 'output window, operand 0, single buffered']
    #allocation3 [shape = 's32[1]{0}', space=sflag, size = 0x4, scoped, tag = 'scoped memory for feature_extractor_forward.1']
    %10 = vsyncpa [#allocation3], 0
    // Predicated region
    $region2: #{feature_extractor_forward.1} parent=1 // pred_check
      _
    $region3: #{feature_extractor_forward.1} parent=1 // pred_check_branch
      %12 = sbr.rel (0) target = $region5
    $region4: #{feature_extractor_forward.1} parent=1 // pred_region
      _
    $region5: #{feature_extractor_forward.1} parent=1 // pred_fallthru
      _
    // Predicated region
    $region6: #{feature_extractor_forward.1} parent=1 // pred_check
      _
    $region7: #{feature_extractor_forward.1} parent=1 // pred_check_branch
      %14 = sbr.rel (0) target = $region9
    $region8: #{feature_extractor_forward.1} parent=1 // pred_region
      _
    $region9: #{feature_extractor_forward.1} parent=1 // pred_fallthru
      _
    // Predicated region
    $region10: #{feature_extractor_forward.1} parent=1 // pred_check
      _
    $region11: #{feature_extractor_forward.1} parent=1 // pred_check_branch
      %16 = sbr.rel (0) target = $region13
    $region12: #{feature_extractor_forward.1} parent=1 // pred_region
      _
    $region13: #{feature_extractor_forward.1} parent=1 // pred_fallthru
      _
    // Predicated region
    $region14: #{feature_extractor_forward.1} parent=1 // pred_check
      _
    $region15: #{feature_extractor_forward.1} parent=1 // pred_check_branch
      %18 = sbr.rel (0) target = $region17
    $region16: #{feature_extractor_forward.1} parent=1 // pred_region
      _
    $region17: #{feature_extractor_forward.1} parent=1 // pred_fallthru
      _
    // Predicated region
    $region18: #{feature_extractor_forward.1} parent=1 // pred_check
      _
    $region19: #{feature_extractor_forward.1} parent=1 // pred_check_branch
      %20 = sbr.rel (0) target = $region21
    $region20: #{feature_extractor_forward.1} parent=1 // pred_region
      _
    $region21: #{feature_extractor_forward.1} parent=1 // pred_fallthru
      _
    %v22 = vld [vmem:[%s0] sm:$0xf]
    %v23 = vld [vmem:[%s0 + $0x4] sm:$0xf]
    %v24 = vld [vmem:[%s0 + $0x8] sm:$0xf]
    %v25 = vld [vmem:[%s0 + $0xc] sm:$0xf]
    %v26 = vld [vmem:[%s0 + $0x10] sm:$0xf]
    %v27 = vld [vmem:[%s0 + $0x14] sm:$0xf]
    %v28 = vld [vmem:[%s0 + $0x18] sm:$0xf]
    %v29 = vld [vmem:[%s0 + $0x1c] sm:$0xf]
    %v30 = vld [vmem:[%s0 + $0x20] sm:$0xf]
    %v31 = vld [vmem:[%s0 + $0x24] sm:$0xf]
    %v32 = vld [vmem:[%s0 + $0x28] sm:$0xf]
    %v33 = vld [vmem:[%s0 + $0x2c] sm:$0xf]
    %v34 = vld [vmem:[%s0 + $0x30] sm:$0xf]
    %v35 = vld [vmem:[%s0 + $0x34] sm:$0xf]
    %v36 = vld [vmem:[%s0 + $0x38] sm:$0xf]
    %v37 = vld [vmem:[%s0 + $0x3c] sm:$0xf]
    %v38 = vld [vmem:[%s0 + $0x40] sm:$0xf]
    %v39 = vld [vmem:[%s0 + $0x44] sm:$0xf]
    %v40 = vld [vmem:[%s0 + $0x48] sm:$0xf]
    %v41 = vld [vmem:[%s0 + $0x4c] sm:$0xf]
    %v42 = vld [vmem:[%s0 + $0x50] sm:$0xf]
    %v43 = vld [vmem:[%s0 + $0x54] sm:$0xf]
    %v44 = vld [vmem:[%s0 + $0x58] sm:$0xf]
    %v45 = vld [vmem:[%s0 + $0x5c] sm:$0xf]
    %v46 = vld [vmem:[%s0 + $0x60] sm:$0xf]
    %v47 = vld [vmem:[%s0 + $0x64] sm:$0xf]
    %v48 = vld [vmem:[%s0 + $0x68] sm:$0xf]
    %v49 = vld [vmem:[%s0 + $0x6c] sm:$0xf]
    %v50 = vld [vmem:[%s0 + $0x70] sm:$0xf]
    %v51 = vld [vmem:[%s0 + $0x74] sm:$0xf]
    %v52 = vld [vmem:[%s0 + $0x78] sm:$0xf]
    %v53 = vld [vmem:[%s0 + $0x7c] sm:$0xf]
    %v54 = vld [vmem:[%s0 + $0x80] sm:$0xf]
    %v55 = vld [vmem:[%s0 + $0x84] sm:$0xf]
    %v56 = vld [vmem:[%s0 + $0x88] sm:$0xf]
    %v57 = vld [vmem:[%s0 + $0x8c] sm:$0xf]
    %v58 = vld [vmem:[%s0 + $0x90] sm:$0xf]
    %v59 = vld [vmem:[%s0 + $0x94] sm:$0xf]
    %v60 = vld [vmem:[%s0 + $0x98] sm:$0xf]
    %v61 = vld [vmem:[%s0 + $0x9c] sm:$0xf]
    %v62 = vld [vmem:[%s0 + $0xa0] sm:$0xf]
    %v63 = vld [vmem:[%s0 + $0xa4] sm:$0xf]
    %v64 = vld [vmem:[%s0 + $0xa8] sm:$0xf]
    %v65 = vld [vmem:[%s0 + $0xac] sm:$0xf]
    %v66 = vld [vmem:[%s0 + $0xb0] sm:$0xf]
    %v67 = vld [vmem:[%s0 + $0xb4] sm:$0xf]
    %v68 = vld [vmem:[%s0 + $0xb8] sm:$0xf]
    %v69 = vld [vmem:[%s0 + $0xbc] sm:$0xf]
    %v70 = vld [vmem:[%s0 + $0xc0] sm:$0xf]
    %v71 = vld [vmem:[%s0 + $0xc4] sm:$0xf]
    %v72 = vld [vmem:[%s0 + $0xc8] sm:$0xf]
    %v73 = vld [vmem:[%s0 + $0xcc] sm:$0xf]
    %v74 = vld [vmem:[%s0 + $0xd0] sm:$0xf]
    %v75 = vld [vmem:[%s0 + $0xd4] sm:$0xf]
    %v76 = vld [vmem:[%s0 + $0xd8] sm:$0xf]
    %v77 = vld [vmem:[%s0 + $0xdc] sm:$0xf]
    %v78 = vld [vmem:[%s0 + $0xe0] sm:$0xf]
    %v79 = vld [vmem:[%s0 + $0xe4] sm:$0xf]
    %v80 = vld [vmem:[%s0 + $0xe8] sm:$0xf]
    %v81 = vld [vmem:[%s0 + $0xec] sm:$0xf]
    %v82 = vld [vmem:[%s0 + $0xf0] sm:$0xf]
    %v83 = vld [vmem:[%s0 + $0xf4] sm:$0xf]
    %v84 = vld [vmem:[%s0 + $0xf8] sm:$0xf]
    %v85 = vld [vmem:[%s0 + $0xfc] sm:$0xf]
    %v86 = vld [vmem:[%s1] sm:$0xf]
    %v87 = vld [vmem:[%s1 + $0x4] sm:$0xf]
    %v88 = vld [vmem:[%s1 + $0x8] sm:$0xf]
    %v89 = vld [vmem:[%s1 + $0xc] sm:$0xf]
    %v90 = vld [vmem:[%s1 + $0x10] sm:$0x3]
    %v91 = vld [vmem:[%s2] sm:$0x1]
    %v156 = vunpack.c.l.b16 %v22
    %v157 = vunpack.c.l.b16 %v23
    %v158 = vunpack.c.l.b16 %v24
    %v159 = vunpack.c.l.b16 %v25
    %v160 = vunpack.c.l.b16 %v26
    %v161 = vunpack.c.l.b16 %v27
    %v162 = vunpack.c.l.b16 %v28
    %v163 = vunpack.c.l.b16 %v29
    %v164 = vunpack.c.l.b16 %v30
    %v165 = vunpack.c.l.b16 %v31
    %v166 = vunpack.c.l.b16 %v32
    %v167 = vunpack.c.l.b16 %v33
    %v168 = vunpack.c.l.b16 %v34
    %v169 = vunpack.c.l.b16 %v35
    %v170 = vunpack.c.l.b16 %v36
    %v171 = vunpack.c.l.b16 %v37
    %v172 = vunpack.c.l.b16 %v38
    %v173 = vunpack.c.l.b16 %v39
    %v174 = vunpack.c.l.b16 %v40
    %v175 = vunpack.c.l.b16 %v41
    %v176 = vunpack.c.l.b16 %v42
    %v177 = vunpack.c.l.b16 %v43
    %v178 = vunpack.c.l.b16 %v44
    %v179 = vunpack.c.l.b16 %v45
    %v180 = vunpack.c.l.b16 %v46
    %v181 = vunpack.c.l.b16 %v47
    %v182 = vunpack.c.l.b16 %v48
    %v183 = vunpack.c.l.b16 %v49
    %v184 = vunpack.c.l.b16 %v50
    %v185 = vunpack.c.l.b16 %v51
    %v186 = vunpack.c.l.b16 %v52
    %v187 = vunpack.c.l.b16 %v53
    %v188 = vunpack.c.l.b16 %v54
    %v189 = vunpack.c.l.b16 %v55
    %v190 = vunpack.c.l.b16 %v56
    %v191 = vunpack.c.l.b16 %v57
    %v192 = vunpack.c.l.b16 %v58
    %v193 = vunpack.c.l.b16 %v59
    %v194 = vunpack.c.l.b16 %v60
    %v195 = vunpack.c.l.b16 %v61
    %v196 = vunpack.c.l.b16 %v62
    %v197 = vunpack.c.l.b16 %v63
    %v198 = vunpack.c.l.b16 %v64
    %v199 = vunpack.c.l.b16 %v65
    %v200 = vunpack.c.l.b16 %v66
    %v201 = vunpack.c.l.b16 %v67
    %v202 = vunpack.c.l.b16 %v68
    %v203 = vunpack.c.l.b16 %v69
    %v204 = vunpack.c.l.b16 %v70
    %v205 = vunpack.c.l.b16 %v71
    %v206 = vunpack.c.l.b16 %v72
    %v207 = vunpack.c.l.b16 %v73
    %v208 = vunpack.c.l.b16 %v74
    %v209 = vunpack.c.l.b16 %v75
    %v210 = vunpack.c.l.b16 %v76
    %v211 = vunpack.c.l.b16 %v77
    %v212 = vunpack.c.l.b16 %v78
    %v213 = vunpack.c.l.b16 %v79
    %v214 = vunpack.c.l.b16 %v80
    %v215 = vunpack.c.l.b16 %v81
    %v216 = vunpack.c.l.b16 %v82
    %v217 = vunpack.c.l.b16 %v83
    %v218 = vunpack.c.l.b16 %v84
    %v219 = vunpack.c.l.b16 %v85
    %v220 = vpack.c.b16 %v157, %v156
    %v221 = vpack.c.b16 %v159, %v158
    %v222 = vpack.c.b16 %v161, %v160
    %v223 = vpack.c.b16 %v163, %v162
    %v224 = vpack.c.b16 %v165, %v164
    %v225 = vpack.c.b16 %v167, %v166
    %v226 = vpack.c.b16 %v169, %v168
    %v227 = vpack.c.b16 %v171, %v170
    %v228 = vpack.c.b16 %v173, %v172
    %v229 = vpack.c.b16 %v175, %v174
    %v230 = vpack.c.b16 %v177, %v176
    %v231 = vpack.c.b16 %v179, %v178
    %v232 = vpack.c.b16 %v181, %v180
    %v233 = vpack.c.b16 %v183, %v182
    %v234 = vpack.c.b16 %v185, %v184
    %v235 = vpack.c.b16 %v187, %v186
    %v236 = vpack.c.b16 %v189, %v188
    %v237 = vpack.c.b16 %v191, %v190
    %v238 = vpack.c.b16 %v193, %v192
    %v239 = vpack.c.b16 %v195, %v194
    %v240 = vpack.c.b16 %v197, %v196
    %v241 = vpack.c.b16 %v199, %v198
    %v242 = vpack.c.b16 %v201, %v200
    %v243 = vpack.c.b16 %v203, %v202
    %v244 = vpack.c.b16 %v205, %v204
    %v245 = vpack.c.b16 %v207, %v206
    %v246 = vpack.c.b16 %v209, %v208
    %v247 = vpack.c.b16 %v211, %v210
    %v248 = vpack.c.b16 %v213, %v212
    %v249 = vpack.c.b16 %v215, %v214
    %v250 = vpack.c.b16 %v217, %v216
    %v251 = vpack.c.b16 %v219, %v218
    %v253 = vshrl.u32 0, 16
    %v255 = vrot.slane %v253, 7
    %v256 = vshll.u32 0, 16
    %v258 = vor.u32 %v255, %v256
    %v260 = vshrl.u32 %v220, 16
    %v262 = vrot.slane %v260, 7
    %v263 = vshll.u32 %v220, 16
    %v265 = vor.u32 %v262, %v263
    %v267 = vshrl.u32 %v221, 16
    %v269 = vrot.slane %v267, 7
    %v270 = vshll.u32 %v221, 16
    %v272 = vor.u32 %v269, %v270
    %v274 = vshrl.u32 %v222, 16
    %v276 = vrot.slane %v274, 7
    %v277 = vshll.u32 %v222, 16
    %v279 = vor.u32 %v276, %v277
    %v281 = vshrl.u32 %v223, 16
    %v283 = vrot.slane %v281, 7
    %v284 = vshll.u32 %v223, 16
    %v286 = vor.u32 %v283, %v284
    %v288 = vshrl.u32 %v224, 16
    %v290 = vrot.slane %v288, 7
    %v291 = vshll.u32 %v224, 16
    %v293 = vor.u32 %v290, %v291
    %v295 = vshrl.u32 %v225, 16
    %v297 = vrot.slane %v295, 7
    %v298 = vshll.u32 %v225, 16
    %v300 = vor.u32 %v297, %v298
    %v302 = vshrl.u32 %v226, 16
    %v304 = vrot.slane %v302, 7
    %v305 = vshll.u32 %v226, 16
    %v307 = vor.u32 %v304, %v305
    %v309 = vshrl.u32 %v227, 16
    %v311 = vrot.slane %v309, 7
    %v312 = vshll.u32 %v227, 16
    %v314 = vor.u32 %v311, %v312
    %v316 = vshrl.u32 %v228, 16
    %v318 = vrot.slane %v316, 7
    %v319 = vshll.u32 %v228, 16
    %v321 = vor.u32 %v318, %v319
    %v323 = vshrl.u32 %v229, 16
    %v325 = vrot.slane %v323, 7
    %v326 = vshll.u32 %v229, 16
    %v328 = vor.u32 %v325, %v326
    %v330 = vshrl.u32 %v230, 16
    %v332 = vrot.slane %v330, 7
    %v333 = vshll.u32 %v230, 16
    %v335 = vor.u32 %v332, %v333
    %v337 = vshrl.u32 %v231, 16
    %v339 = vrot.slane %v337, 7
    %v340 = vshll.u32 %v231, 16
    %v342 = vor.u32 %v339, %v340
    %v344 = vshrl.u32 %v232, 16
    %v346 = vrot.slane %v344, 7
    %v347 = vshll.u32 %v232, 16
    %v349 = vor.u32 %v346, %v347
    %v351 = vshrl.u32 %v233, 16
    %v353 = vrot.slane %v351, 7
    %v354 = vshll.u32 %v233, 16
    %v356 = vor.u32 %v353, %v354
    %v358 = vshrl.u32 %v234, 16
    %v360 = vrot.slane %v358, 7
    %v361 = vshll.u32 %v234, 16
    %v363 = vor.u32 %v360, %v361
    %v365 = vshrl.u32 %v235, 16
    %v367 = vrot.slane %v365, 7
    %v368 = vshll.u32 %v235, 16
    %v370 = vor.u32 %v367, %v368
    %v372 = vshrl.u32 %v236, 16
    %v374 = vrot.slane %v372, 7
    %v375 = vshll.u32 %v236, 16
    %v377 = vor.u32 %v374, %v375
    %v379 = vshrl.u32 %v237, 16
    %v381 = vrot.slane %v379, 7
    %v382 = vshll.u32 %v237, 16
    %v384 = vor.u32 %v381, %v382
    %v386 = vshrl.u32 %v238, 16
    %v388 = vrot.slane %v386, 7
    %v389 = vshll.u32 %v238, 16
    %v391 = vor.u32 %v388, %v389
    %v393 = vshrl.u32 %v239, 16
    %v395 = vrot.slane %v393, 7
    %v396 = vshll.u32 %v239, 16
    %v398 = vor.u32 %v395, %v396
    %v400 = vshrl.u32 %v240, 16
    %v402 = vrot.slane %v400, 7
    %v403 = vshll.u32 %v240, 16
    %v405 = vor.u32 %v402, %v403
    %v407 = vshrl.u32 %v241, 16
    %v409 = vrot.slane %v407, 7
    %v410 = vshll.u32 %v241, 16
    %v412 = vor.u32 %v409, %v410
    %v414 = vshrl.u32 %v242, 16
    %v416 = vrot.slane %v414, 7
    %v417 = vshll.u32 %v242, 16
    %v419 = vor.u32 %v416, %v417
    %v421 = vshrl.u32 %v243, 16
    %v423 = vrot.slane %v421, 7
    %v424 = vshll.u32 %v243, 16
    %v426 = vor.u32 %v423, %v424
    %v428 = vshrl.u32 %v244, 16
    %v430 = vrot.slane %v428, 7
    %v431 = vshll.u32 %v244, 16
    %v433 = vor.u32 %v430, %v431
    %v435 = vshrl.u32 %v245, 16
    %v437 = vrot.slane %v435, 7
    %v438 = vshll.u32 %v245, 16
    %v440 = vor.u32 %v437, %v438
    %v442 = vshrl.u32 %v246, 16
    %v444 = vrot.slane %v442, 7
    %v445 = vshll.u32 %v246, 16
    %v447 = vor.u32 %v444, %v445
    %v449 = vshrl.u32 %v247, 16
    %v451 = vrot.slane %v449, 7
    %v452 = vshll.u32 %v247, 16
    %v454 = vor.u32 %v451, %v452
    %v456 = vshrl.u32 %v248, 16
    %v458 = vrot.slane %v456, 7
    %v459 = vshll.u32 %v248, 16
    %v461 = vor.u32 %v458, %v459
    %v463 = vshrl.u32 %v249, 16
    %v465 = vrot.slane %v463, 7
    %v466 = vshll.u32 %v249, 16
    %v468 = vor.u32 %v465, %v466
    %v470 = vshrl.u32 %v250, 16
    %v472 = vrot.slane %v470, 7
    %v473 = vshll.u32 %v250, 16
    %v475 = vor.u32 %v472, %v473
    %v477 = vshrl.u32 %v251, 16
    %v479 = vrot.slane %v477, 7
    %v480 = vshll.u32 %v251, 16
    %v482 = vor.u32 %v479, %v480
    %vm549 = vcmask 1040384
    %vm550 = vsmask.f32 256
    %vm551 = vmand %vm549, %vm550
    %v552 = vsel %vm551, 0, %v258
    %v553 = vsel %vm551, 0, %v265
    %v554 = vsel %vm551, 0, %v272
    %v555 = vsel %vm551, 0, %v279
    %v556 = vsel %vm551, 0, %v286
    %v557 = vsel %vm551, 0, %v293
    %v558 = vsel %vm551, 0, %v300
    %v559 = vsel %vm551, 0, %v307
    %v560 = vsel %vm551, 0, %v314
    %v561 = vsel %vm551, 0, %v321
    %v562 = vsel %vm551, 0, %v328
    %v563 = vsel %vm551, 0, %v335
    %v564 = vsel %vm551, 0, %v342
    %v565 = vsel %vm551, 0, %v349
    %v566 = vsel %vm551, 0, %v356
    %v567 = vsel %vm551, 0, %v363
    %v568 = vsel %vm551, 0, %v370
    %v569 = vsel %vm551, 0, %v377
    %v570 = vsel %vm551, 0, %v384
    %v571 = vsel %vm551, 0, %v391
    %v572 = vsel %vm551, 0, %v398
    %v573 = vsel %vm551, 0, %v405
    %v574 = vsel %vm551, 0, %v412
    %v575 = vsel %vm551, 0, %v419
    %v576 = vsel %vm551, 0, %v426
    %v577 = vsel %vm551, 0, %v433
    %v578 = vsel %vm551, 0, %v440
    %v579 = vsel %vm551, 0, %v447
    %v580 = vsel %vm551, 0, %v454
    %v581 = vsel %vm551, 0, %v461
    %v582 = vsel %vm551, 0, %v468
    %v583 = vsel %vm551, 0, %v475
    %v584 = vsel %vm551, 0, %v482
    %v585 = vsel %vm551, %v255, 0
    %v586 = vsel %vm551, %v262, 0
    %v587 = vsel %vm551, %v269, 0
    %v588 = vsel %vm551, %v276, 0
    %v589 = vsel %vm551, %v283, 0
    %v590 = vsel %vm551, %v290, 0
    %v591 = vsel %vm551, %v297, 0
    %v592 = vsel %vm551, %v304, 0
    %v593 = vsel %vm551, %v311, 0
    %v594 = vsel %vm551, %v318, 0
    %v595 = vsel %vm551, %v325, 0
    %v596 = vsel %vm551, %v332, 0
    %v597 = vsel %vm551, %v339, 0
    %v598 = vsel %vm551, %v346, 0
    %v599 = vsel %vm551, %v353, 0
    %v600 = vsel %vm551, %v360, 0
    %v601 = vsel %vm551, %v367, 0
    %v602 = vsel %vm551, %v374, 0
    %v603 = vsel %vm551, %v381, 0
    %v604 = vsel %vm551, %v388, 0
    %v605 = vsel %vm551, %v395, 0
    %v606 = vsel %vm551, %v402, 0
    %v607 = vsel %vm551, %v409, 0
    %v608 = vsel %vm551, %v416, 0
    %v609 = vsel %vm551, %v423, 0
    %v610 = vsel %vm551, %v430, 0
    %v611 = vsel %vm551, %v437, 0
    %v612 = vsel %vm551, %v444, 0
    %v613 = vsel %vm551, %v451, 0
    %v614 = vsel %vm551, %v458, 0
    %v615 = vsel %vm551, %v465, 0
    %v616 = vsel %vm551, %v472, 0
    %v617 = vsel %vm551, %v479, 0
    %vm618 = vsmask.f32 7424
    %v620 = vshrl.u32 %v552, 16
    %v622 = vshll.u32 %v552, 16
    %v624 = vrot.slane %v622, 1
    %v625 = vor.u32 %v620, %v624
    %v627 = vshll.u32 %v585, 16
    %v629 = vrot.slane %v627, 1
    %v630 = vsel %vm618, %v625, %v629
    %v632 = vshrl.u32 %v553, 16
    %v634 = vshll.u32 %v553, 16
    %v636 = vrot.slane %v634, 1
    %v637 = vor.u32 %v632, %v636
    %v639 = vshll.u32 %v586, 16
    %v641 = vrot.slane %v639, 1
    %v642 = vsel %vm618, %v637, %v641
    %v644 = vshrl.u32 %v554, 16
    %v646 = vshll.u32 %v554, 16
    %v648 = vrot.slane %v646, 1
    %v649 = vor.u32 %v644, %v648
    %v651 = vshll.u32 %v587, 16
    %v653 = vrot.slane %v651, 1
    %v654 = vsel %vm618, %v649, %v653
    %v656 = vshrl.u32 %v555, 16
    %v658 = vshll.u32 %v555, 16
    %v660 = vrot.slane %v658, 1
    %v661 = vor.u32 %v656, %v660
    %v663 = vshll.u32 %v588, 16
    %v665 = vrot.slane %v663, 1
    %v666 = vsel %vm618, %v661, %v665
    %v668 = vshrl.u32 %v556, 16
    %v670 = vshll.u32 %v556, 16
    %v672 = vrot.slane %v670, 1
    %v673 = vor.u32 %v668, %v672
    %v675 = vshll.u32 %v589, 16
    %v677 = vrot.slane %v675, 1
    %v678 = vsel %vm618, %v673, %v677
    %v680 = vshrl.u32 %v557, 16
    %v682 = vshll.u32 %v557, 16
    %v684 = vrot.slane %v682, 1
    %v685 = vor.u32 %v680, %v684
    %v687 = vshll.u32 %v590, 16
    %v689 = vrot.slane %v687, 1
    %v690 = vsel %vm618, %v685, %v689
    %v692 = vshrl.u32 %v558, 16
    %v694 = vshll.u32 %v558, 16
    %v696 = vrot.slane %v694, 1
    %v697 = vor.u32 %v692, %v696
    %v699 = vshll.u32 %v591, 16
    %v701 = vrot.slane %v699, 1
    %v702 = vsel %vm618, %v697, %v701
    %v704 = vshrl.u32 %v559, 16
    %v706 = vshll.u32 %v559, 16
    %v708 = vrot.slane %v706, 1
    %v709 = vor.u32 %v704, %v708
    %v711 = vshll.u32 %v592, 16
    %v713 = vrot.slane %v711, 1
    %v714 = vsel %vm618, %v709, %v713
    %v716 = vshrl.u32 %v560, 16
    %v718 = vshll.u32 %v560, 16
    %v720 = vrot.slane %v718, 1
    %v721 = vor.u32 %v716, %v720
    %v723 = vshll.u32 %v593, 16
    %v725 = vrot.slane %v723, 1
    %v726 = vsel %vm618, %v721, %v725
    %v728 = vshrl.u32 %v561, 16
    %v730 = vshll.u32 %v561, 16
    %v732 = vrot.slane %v730, 1
    %v733 = vor.u32 %v728, %v732
    %v735 = vshll.u32 %v594, 16
    %v737 = vrot.slane %v735, 1
    %v738 = vsel %vm618, %v733, %v737
    %v740 = vshrl.u32 %v562, 16
    %v742 = vshll.u32 %v562, 16
    %v744 = vrot.slane %v742, 1
    %v745 = vor.u32 %v740, %v744
    %v747 = vshll.u32 %v595, 16
    %v749 = vrot.slane %v747, 1
    %v750 = vsel %vm618, %v745, %v749
    %v752 = vshrl.u32 %v563, 16
    %v754 = vshll.u32 %v563, 16
    %v756 = vrot.slane %v754, 1
    %v757 = vor.u32 %v752, %v756
    %v759 = vshll.u32 %v596, 16
    %v761 = vrot.slane %v759, 1
    %v762 = vsel %vm618, %v757, %v761
    %v764 = vshrl.u32 %v564, 16
    %v766 = vshll.u32 %v564, 16
    %v768 = vrot.slane %v766, 1
    %v769 = vor.u32 %v764, %v768
    %v771 = vshll.u32 %v597, 16
    %v773 = vrot.slane %v771, 1
    %v774 = vsel %vm618, %v769, %v773
    %v776 = vshrl.u32 %v565, 16
    %v778 = vshll.u32 %v565, 16
    %v780 = vrot.slane %v778, 1
    %v781 = vor.u32 %v776, %v780
    %v783 = vshll.u32 %v598, 16
    %v785 = vrot.slane %v783, 1
    %v786 = vsel %vm618, %v781, %v785
    %v788 = vshrl.u32 %v566, 16
    %v790 = vshll.u32 %v566, 16
    %v792 = vrot.slane %v790, 1
    %v793 = vor.u32 %v788, %v792
    %v795 = vshll.u32 %v599, 16
    %v797 = vrot.slane %v795, 1
    %v798 = vsel %vm618, %v793, %v797
    %v800 = vshrl.u32 %v567, 16
    %v802 = vshll.u32 %v567, 16
    %v804 = vrot.slane %v802, 1
    %v805 = vor.u32 %v800, %v804
    %v807 = vshll.u32 %v600, 16
    %v809 = vrot.slane %v807, 1
    %v810 = vsel %vm618, %v805, %v809
    %v812 = vshrl.u32 %v569, 16
    %v814 = vshll.u32 %v569, 16
    %v816 = vrot.slane %v814, 1
    %v817 = vor.u32 %v812, %v816
    %v819 = vshll.u32 %v602, 16
    %v821 = vrot.slane %v819, 1
    %v822 = vsel %vm618, %v817, %v821
    %v824 = vshrl.u32 %v570, 16
    %v826 = vshll.u32 %v570, 16
    %v828 = vrot.slane %v826, 1
    %v829 = vor.u32 %v824, %v828
    %v831 = vshll.u32 %v603, 16
    %v833 = vrot.slane %v831, 1
    %v834 = vsel %vm618, %v829, %v833
    %v836 = vshrl.u32 %v571, 16
    %v838 = vshll.u32 %v571, 16
    %v840 = vrot.slane %v838, 1
    %v841 = vor.u32 %v836, %v840
    %v843 = vshll.u32 %v604, 16
    %v845 = vrot.slane %v843, 1
    %v846 = vsel %vm618, %v841, %v845
    %v848 = vshrl.u32 %v572, 16
    %v850 = vshll.u32 %v572, 16
    %v852 = vrot.slane %v850, 1
    %v853 = vor.u32 %v848, %v852
    %v855 = vshll.u32 %v605, 16
    %v857 = vrot.slane %v855, 1
    %v858 = vsel %vm618, %v853, %v857
    %v860 = vshrl.u32 %v573, 16
    %v862 = vshll.u32 %v573, 16
    %v864 = vrot.slane %v862, 1
    %v865 = vor.u32 %v860, %v864
    %v867 = vshll.u32 %v606, 16
    %v869 = vrot.slane %v867, 1
    %v870 = vsel %vm618, %v865, %v869
    %v872 = vshrl.u32 %v574, 16
    %v874 = vshll.u32 %v574, 16
    %v876 = vrot.slane %v874, 1
    %v877 = vor.u32 %v872, %v876
    %v879 = vshll.u32 %v607, 16
    %v881 = vrot.slane %v879, 1
    %v882 = vsel %vm618, %v877, %v881
    %v884 = vshrl.u32 %v575, 16
    %v886 = vshll.u32 %v575, 16
    %v888 = vrot.slane %v886, 1
    %v889 = vor.u32 %v884, %v888
    %v891 = vshll.u32 %v608, 16
    %v893 = vrot.slane %v891, 1
    %v894 = vsel %vm618, %v889, %v893
    %v896 = vshrl.u32 %v576, 16
    %v898 = vshll.u32 %v576, 16
    %v900 = vrot.slane %v898, 1
    %v901 = vor.u32 %v896, %v900
    %v903 = vshll.u32 %v609, 16
    %v905 = vrot.slane %v903, 1
    %v906 = vsel %vm618, %v901, %v905
    %v908 = vshrl.u32 %v577, 16
    %v910 = vshll.u32 %v577, 16
    %v912 = vrot.slane %v910, 1
    %v913 = vor.u32 %v908, %v912
    %v915 = vshll.u32 %v610, 16
    %v917 = vrot.slane %v915, 1
    %v918 = vsel %vm618, %v913, %v917
    %v920 = vshrl.u32 %v578, 16
    %v922 = vshll.u32 %v578, 16
    %v924 = vrot.slane %v922, 1
    %v925 = vor.u32 %v920, %v924
    %v927 = vshll.u32 %v611, 16
    %v929 = vrot.slane %v927, 1
    %v930 = vsel %vm618, %v925, %v929
    %v932 = vshrl.u32 %v579, 16
    %v934 = vshll.u32 %v579, 16
    %v936 = vrot.slane %v934, 1
    %v937 = vor.u32 %v932, %v936
    %v939 = vshll.u32 %v612, 16
    %v941 = vrot.slane %v939, 1
    %v942 = vsel %vm618, %v937, %v941
    %v944 = vshrl.u32 %v580, 16
    %v946 = vshll.u32 %v580, 16
    %v948 = vrot.slane %v946, 1
    %v949 = vor.u32 %v944, %v948
    %v951 = vshll.u32 %v613, 16
    %v953 = vrot.slane %v951, 1
    %v954 = vsel %vm618, %v949, %v953
    %v956 = vshrl.u32 %v581, 16
    %v958 = vshll.u32 %v581, 16
    %v960 = vrot.slane %v958, 1
    %v961 = vor.u32 %v956, %v960
    %v963 = vshll.u32 %v614, 16
    %v965 = vrot.slane %v963, 1
    %v966 = vsel %vm618, %v961, %v965
    %v968 = vshrl.u32 %v582, 16
    %v970 = vshll.u32 %v582, 16
    %v972 = vrot.slane %v970, 1
    %v973 = vor.u32 %v968, %v972
    %v975 = vshll.u32 %v615, 16
    %v977 = vrot.slane %v975, 1
    %v978 = vsel %vm618, %v973, %v977
    %v980 = vshrl.u32 %v583, 16
    %v982 = vshll.u32 %v583, 16
    %v984 = vrot.slane %v982, 1
    %v985 = vor.u32 %v980, %v984
    %v987 = vshll.u32 %v616, 16
    %v989 = vrot.slane %v987, 1
    %v990 = vsel %vm618, %v985, %v989
    %vm1053 = vcmask 1046528
    %v1054 = vrot.slane %v552, 1
    %v1055 = vrot.slane %v585, 1
    %v1056 = vsel %vm1053, %v1054, %v1055
    %v1057 = vrot.slane %v553, 1
    %v1058 = vrot.slane %v586, 1
    %v1059 = vsel %vm1053, %v1057, %v1058
    %v1060 = vrot.slane %v554, 1
    %v1061 = vrot.slane %v587, 1
    %v1062 = vsel %vm1053, %v1060, %v1061
    %v1063 = vrot.slane %v555, 1
    %v1064 = vrot.slane %v588, 1
    %v1065 = vsel %vm1053, %v1063, %v1064
    %v1066 = vrot.slane %v556, 1
    %v1067 = vrot.slane %v589, 1
    %v1068 = vsel %vm1053, %v1066, %v1067
    %v1069 = vrot.slane %v557, 1
    %v1070 = vrot.slane %v590, 1
    %v1071 = vsel %vm1053, %v1069, %v1070
    %v1072 = vrot.slane %v558, 1
    %v1073 = vrot.slane %v591, 1
    %v1074 = vsel %vm1053, %v1072, %v1073
    %v1075 = vrot.slane %v559, 1
    %v1076 = vrot.slane %v592, 1
    %v1077 = vsel %vm1053, %v1075, %v1076
    %v1078 = vrot.slane %v560, 1
    %v1079 = vrot.slane %v593, 1
    %v1080 = vsel %vm1053, %v1078, %v1079
    %v1081 = vrot.slane %v561, 1
    %v1082 = vrot.slane %v594, 1
    %v1083 = vsel %vm1053, %v1081, %v1082
    %v1084 = vrot.slane %v562, 1
    %v1085 = vrot.slane %v595, 1
    %v1086 = vsel %vm1053, %v1084, %v1085
    %v1087 = vrot.slane %v563, 1
    %v1088 = vrot.slane %v596, 1
    %v1089 = vsel %vm1053, %v1087, %v1088
    %v1090 = vrot.slane %v564, 1
    %v1091 = vrot.slane %v597, 1
    %v1092 = vsel %vm1053, %v1090, %v1091
    %v1093 = vrot.slane %v565, 1
    %v1094 = vrot.slane %v598, 1
    %v1095 = vsel %vm1053, %v1093, %v1094
    %v1096 = vrot.slane %v566, 1
    %v1097 = vrot.slane %v599, 1
    %v1098 = vsel %vm1053, %v1096, %v1097
    %v1099 = vrot.slane %v567, 1
    %v1100 = vrot.slane %v600, 1
    %v1101 = vsel %vm1053, %v1099, %v1100
    %v1102 = vrot.slane %v569, 1
    %v1103 = vrot.slane %v602, 1
    %v1104 = vsel %vm1053, %v1102, %v1103
    %v1105 = vrot.slane %v570, 1
    %v1106 = vrot.slane %v603, 1
    %v1107 = vsel %vm1053, %v1105, %v1106
    %v1108 = vrot.slane %v571, 1
    %v1109 = vrot.slane %v604, 1
    %v1110 = vsel %vm1053, %v1108, %v1109
    %v1111 = vrot.slane %v572, 1
    %v1112 = vrot.slane %v605, 1
    %v1113 = vsel %vm1053, %v1111, %v1112
    %v1114 = vrot.slane %v573, 1
    %v1115 = vrot.slane %v606, 1
    %v1116 = vsel %vm1053, %v1114, %v1115
    %v1117 = vrot.slane %v574, 1
    %v1118 = vrot.slane %v607, 1
    %v1119 = vsel %vm1053, %v1117, %v1118
    %v1120 = vrot.slane %v575, 1
    %v1121 = vrot.slane %v608, 1
    %v1122 = vsel %vm1053, %v1120, %v1121
    %v1123 = vrot.slane %v576, 1
    %v1124 = vrot.slane %v609, 1
    %v1125 = vsel %vm1053, %v1123, %v1124
    %v1126 = vrot.slane %v577, 1
    %v1127 = vrot.slane %v610, 1
    %v1128 = vsel %vm1053, %v1126, %v1127
    %v1129 = vrot.slane %v578, 1
    %v1130 = vrot.slane %v611, 1
    %v1131 = vsel %vm1053, %v1129, %v1130
    %v1132 = vrot.slane %v579, 1
    %v1133 = vrot.slane %v612, 1
    %v1134 = vsel %vm1053, %v1132, %v1133
    %v1135 = vrot.slane %v580, 1
    %v1136 = vrot.slane %v613, 1
    %v1137 = vsel %vm1053, %v1135, %v1136
    %v1138 = vrot.slane %v581, 1
    %v1139 = vrot.slane %v614, 1
    %v1140 = vsel %vm1053, %v1138, %v1139
    %v1141 = vrot.slane %v582, 1
    %v1142 = vrot.slane %v615, 1
    %v1143 = vsel %vm1053, %v1141, %v1142
    %v1144 = vrot.slane %v583, 1
    %v1145 = vrot.slane %v616, 1
    %v1146 = vsel %vm1053, %v1144, %v1145
    %v1148 = vshrl.u32 %v568, 16
    %v1150 = vshll.u32 %v568, 16
    %v1152 = vrot.slane %v1150, 1
    %v1153 = vor.u32 %v1148, %v1152
    %v1155 = vshll.u32 %v601, 16
    %v1157 = vrot.slane %v1155, 1
    %v1158 = vsel %vm618, %v1153, %v1157
    %v1160 = vshrl.u32 %v584, 16
    %v1162 = vshll.u32 %v584, 16
    %v1164 = vrot.slane %v1162, 1
    %v1165 = vor.u32 %v1160, %v1164
    %v1167 = vshll.u32 %v617, 16
    %v1169 = vrot.slane %v1167, 1
    %v1170 = vsel %vm618, %v1165, %v1169
    %v1175 = vrot.slane %v568, 1
    %v1176 = vrot.slane %v601, 1
    %v1177 = vsel %vm1053, %v1175, %v1176
    %v1178 = vrot.slane %v584, 1
    %v1179 = vrot.slane %v617, 1
    %v1180 = vsel %vm1053, %v1178, %v1179
    %1181 = vrot.lane.b32.xlu0 %v630, 4
    %v1182 = vpop.permute.xlu0 %1181
    %1183 = vrot.lane.b32.xlu0 %v642, 4
    %v1184 = vpop.permute.xlu0 %1183
    %1185 = vrot.lane.b32.xlu0 %v654, 4
    %v1186 = vpop.permute.xlu0 %1185
    %1187 = vrot.lane.b32.xlu0 %v666, 4
    %v1188 = vpop.permute.xlu0 %1187
    %1189 = vrot.lane.b32.xlu0 %v678, 4
    %v1190 = vpop.permute.xlu0 %1189
    %1191 = vrot.lane.b32.xlu0 %v690, 4
    %v1192 = vpop.permute.xlu0 %1191
    %1193 = vrot.lane.b32.xlu0 %v702, 4
    %v1194 = vpop.permute.xlu0 %1193
    %1195 = vrot.lane.b32.xlu0 %v714, 4
    %v1196 = vpop.permute.xlu0 %1195
    %1197 = vrot.lane.b32.xlu0 %v726, 4
    %v1198 = vpop.permute.xlu0 %1197
    %1199 = vrot.lane.b32.xlu0 %v738, 4
    %v1200 = vpop.permute.xlu0 %1199
    %1201 = vrot.lane.b32.xlu0 %v750, 4
    %v1202 = vpop.permute.xlu0 %1201
    %1203 = vrot.lane.b32.xlu0 %v762, 4
    %v1204 = vpop.permute.xlu0 %1203
    %1205 = vrot.lane.b32.xlu0 %v774, 4
    %v1206 = vpop.permute.xlu0 %1205
    %1207 = vrot.lane.b32.xlu0 %v786, 4
    %v1208 = vpop.permute.xlu0 %1207
    %1209 = vrot.lane.b32.xlu0 %v798, 4
    %v1210 = vpop.permute.xlu0 %1209
    %1211 = vrot.lane.b32.xlu0 %v810, 4
    %v1212 = vpop.permute.xlu0 %1211
    %1213 = vrot.lane.b32.xlu0 %v822, 4
    %v1214 = vpop.permute.xlu0 %1213
    %1215 = vrot.lane.b32.xlu0 %v834, 4
    %v1216 = vpop.permute.xlu0 %1215
    %1217 = vrot.lane.b32.xlu0 %v846, 4
    %v1218 = vpop.permute.xlu0 %1217
    %1219 = vrot.lane.b32.xlu0 %v858, 4
    %v1220 = vpop.permute.xlu0 %1219
    %1221 = vrot.lane.b32.xlu0 %v870, 4
    %v1222 = vpop.permute.xlu0 %1221
    %1223 = vrot.lane.b32.xlu0 %v882, 4
    %v1224 = vpop.permute.xlu0 %1223
    %1225 = vrot.lane.b32.xlu0 %v894, 4
    %v1226 = vpop.permute.xlu0 %1225
    %1227 = vrot.lane.b32.xlu0 %v906, 4
    %v1228 = vpop.permute.xlu0 %1227
    %1229 = vrot.lane.b32.xlu0 %v918, 4
    %v1230 = vpop.permute.xlu0 %1229
    %1231 = vrot.lane.b32.xlu0 %v930, 4
    %v1232 = vpop.permute.xlu0 %1231
    %1233 = vrot.lane.b32.xlu0 %v942, 4
    %v1234 = vpop.permute.xlu0 %1233
    %1235 = vrot.lane.b32.xlu0 %v954, 4
    %v1236 = vpop.permute.xlu0 %1235
    %1237 = vrot.lane.b32.xlu0 %v966, 4
    %v1238 = vpop.permute.xlu0 %1237
    %1239 = vrot.lane.b32.xlu0 %v978, 4
    %v1240 = vpop.permute.xlu0 %1239
    %1241 = vrot.lane.b32.xlu0 %v990, 4
    %v1242 = vpop.permute.xlu0 %1241
    %1243 = vrot.lane.b32.xlu0 %v1056, 8
    %v1244 = vpop.permute.xlu0 %1243
    %1245 = vrot.lane.b32.xlu0 %v1059, 8
    %v1246 = vpop.permute.xlu0 %1245
    %1247 = vrot.lane.b32.xlu0 %v1062, 8
    %v1248 = vpop.permute.xlu0 %1247
    %1249 = vrot.lane.b32.xlu0 %v1065, 8
    %v1250 = vpop.permute.xlu0 %1249
    %1251 = vrot.lane.b32.xlu0 %v1068, 8
    %v1252 = vpop.permute.xlu0 %1251
    %1253 = vrot.lane.b32.xlu0 %v1071, 8
    %v1254 = vpop.permute.xlu0 %1253
    %1255 = vrot.lane.b32.xlu0 %v1074, 8
    %v1256 = vpop.permute.xlu0 %1255
    %1257 = vrot.lane.b32.xlu0 %v1077, 8
    %v1258 = vpop.permute.xlu0 %1257
    %1259 = vrot.lane.b32.xlu0 %v1080, 8
    %v1260 = vpop.permute.xlu0 %1259
    %1261 = vrot.lane.b32.xlu0 %v1083, 8
    %v1262 = vpop.permute.xlu0 %1261
    %1263 = vrot.lane.b32.xlu0 %v1086, 8
    %v1264 = vpop.permute.xlu0 %1263
    %1265 = vrot.lane.b32.xlu0 %v1089, 8
    %v1266 = vpop.permute.xlu0 %1265
    %1267 = vrot.lane.b32.xlu0 %v1092, 8
    %v1268 = vpop.permute.xlu0 %1267
    %1269 = vrot.lane.b32.xlu0 %v1095, 8
    %v1270 = vpop.permute.xlu0 %1269
    %1271 = vrot.lane.b32.xlu0 %v1098, 8
    %v1272 = vpop.permute.xlu0 %1271
    %1273 = vrot.lane.b32.xlu0 %v1101, 8
    %v1274 = vpop.permute.xlu0 %1273
    %1275 = vrot.lane.b32.xlu0 %v1104, 8
    %v1276 = vpop.permute.xlu0 %1275
    %1277 = vrot.lane.b32.xlu0 %v1107, 8
    %v1278 = vpop.permute.xlu0 %1277
    %1279 = vrot.lane.b32.xlu0 %v1110, 8
    %v1280 = vpop.permute.xlu0 %1279
    %1281 = vrot.lane.b32.xlu0 %v1113, 8
    %v1282 = vpop.permute.xlu0 %1281
    %1283 = vrot.lane.b32.xlu0 %v1116, 8
    %v1284 = vpop.permute.xlu0 %1283
    %1285 = vrot.lane.b32.xlu0 %v1119, 8
    %v1286 = vpop.permute.xlu0 %1285
    %1287 = vrot.lane.b32.xlu0 %v1122, 8
    %v1288 = vpop.permute.xlu0 %1287
    %1289 = vrot.lane.b32.xlu0 %v1125, 8
    %v1290 = vpop.permute.xlu0 %1289
    %1291 = vrot.lane.b32.xlu0 %v1128, 8
    %v1292 = vpop.permute.xlu0 %1291
    %1293 = vrot.lane.b32.xlu0 %v1131, 8
    %v1294 = vpop.permute.xlu0 %1293
    %1295 = vrot.lane.b32.xlu0 %v1134, 8
    %v1296 = vpop.permute.xlu0 %1295
    %1297 = vrot.lane.b32.xlu0 %v1137, 8
    %v1298 = vpop.permute.xlu0 %1297
    %1299 = vrot.lane.b32.xlu0 %v1140, 8
    %v1300 = vpop.permute.xlu0 %1299
    %1301 = vrot.lane.b32.xlu0 %v1143, 8
    %v1302 = vpop.permute.xlu0 %1301
    %1303 = vrot.lane.b32.xlu0 %v1146, 8
    %v1304 = vpop.permute.xlu0 %1303
    %1305 = vrot.lane.b32.xlu0 %v553, 12
    %v1306 = vpop.permute.xlu0 %1305
    %1307 = vrot.lane.b32.xlu0 %v554, 12
    %v1308 = vpop.permute.xlu0 %1307
    %1309 = vrot.lane.b32.xlu0 %v555, 12
    %v1310 = vpop.permute.xlu0 %1309
    %1311 = vrot.lane.b32.xlu0 %v556, 12
    %v1312 = vpop.permute.xlu0 %1311
    %1313 = vrot.lane.b32.xlu0 %v557, 12
    %v1314 = vpop.permute.xlu0 %1313
    %1315 = vrot.lane.b32.xlu0 %v558, 12
    %v1316 = vpop.permute.xlu0 %1315
    %1317 = vrot.lane.b32.xlu0 %v559, 12
    %v1318 = vpop.permute.xlu0 %1317
    %1319 = vrot.lane.b32.xlu0 %v560, 12
    %v1320 = vpop.permute.xlu0 %1319
    %1321 = vrot.lane.b32.xlu0 %v561, 12
    %v1322 = vpop.permute.xlu0 %1321
    %1323 = vrot.lane.b32.xlu0 %v562, 12
    %v1324 = vpop.permute.xlu0 %1323
    %1325 = vrot.lane.b32.xlu0 %v563, 12
    %v1326 = vpop.permute.xlu0 %1325
    %1327 = vrot.lane.b32.xlu0 %v564, 12
    %v1328 = vpop.permute.xlu0 %1327
    %1329 = vrot.lane.b32.xlu0 %v565, 12
    %v1330 = vpop.permute.xlu0 %1329
    %1331 = vrot.lane.b32.xlu0 %v566, 12
    %v1332 = vpop.permute.xlu0 %1331
    %1333 = vrot.lane.b32.xlu0 %v567, 12
    %v1334 = vpop.permute.xlu0 %1333
    %1335 = vrot.lane.b32.xlu0 %v568, 12
    %v1336 = vpop.permute.xlu0 %1335
    %1337 = vrot.lane.b32.xlu0 %v569, 12
    %v1338 = vpop.permute.xlu0 %1337
    %1339 = vrot.lane.b32.xlu0 %v570, 12
    %v1340 = vpop.permute.xlu0 %1339
    %1341 = vrot.lane.b32.xlu0 %v571, 12
    %v1342 = vpop.permute.xlu0 %1341
    %1343 = vrot.lane.b32.xlu0 %v572, 12
    %v1344 = vpop.permute.xlu0 %1343
    %1345 = vrot.lane.b32.xlu0 %v573, 12
    %v1346 = vpop.permute.xlu0 %1345
    %1347 = vrot.lane.b32.xlu0 %v574, 12
    %v1348 = vpop.permute.xlu0 %1347
    %1349 = vrot.lane.b32.xlu0 %v575, 12
    %v1350 = vpop.permute.xlu0 %1349
    %1351 = vrot.lane.b32.xlu0 %v576, 12
    %v1352 = vpop.permute.xlu0 %1351
    %1353 = vrot.lane.b32.xlu0 %v577, 12
    %v1354 = vpop.permute.xlu0 %1353
    %1355 = vrot.lane.b32.xlu0 %v578, 12
    %v1356 = vpop.permute.xlu0 %1355
    %1357 = vrot.lane.b32.xlu0 %v579, 12
    %v1358 = vpop.permute.xlu0 %1357
    %1359 = vrot.lane.b32.xlu0 %v580, 12
    %v1360 = vpop.permute.xlu0 %1359
    %1361 = vrot.lane.b32.xlu0 %v581, 12
    %v1362 = vpop.permute.xlu0 %1361
    %1363 = vrot.lane.b32.xlu0 %v582, 12
    %v1364 = vpop.permute.xlu0 %1363
    %1365 = vrot.lane.b32.xlu0 %v583, 12
    %v1366 = vpop.permute.xlu0 %1365
    %1367 = vrot.lane.b32.xlu0 %v584, 12
    %v1368 = vpop.permute.xlu0 %1367
    %1369 = vrot.lane.b32.xlu0 %v642, 16
    %v1370 = vpop.permute.xlu0 %1369
    %1371 = vrot.lane.b32.xlu0 %v654, 16
    %v1372 = vpop.permute.xlu0 %1371
    %1373 = vrot.lane.b32.xlu0 %v666, 16
    %v1374 = vpop.permute.xlu0 %1373
    %1375 = vrot.lane.b32.xlu0 %v678, 16
    %v1376 = vpop.permute.xlu0 %1375
    %1377 = vrot.lane.b32.xlu0 %v690, 16
    %v1378 = vpop.permute.xlu0 %1377
    %1379 = vrot.lane.b32.xlu0 %v702, 16
    %v1380 = vpop.permute.xlu0 %1379
    %1381 = vrot.lane.b32.xlu0 %v714, 16
    %v1382 = vpop.permute.xlu0 %1381
    %1383 = vrot.lane.b32.xlu0 %v726, 16
    %v1384 = vpop.permute.xlu0 %1383
    %1385 = vrot.lane.b32.xlu0 %v738, 16
    %v1386 = vpop.permute.xlu0 %1385
    %1387 = vrot.lane.b32.xlu0 %v750, 16
    %v1388 = vpop.permute.xlu0 %1387
    %1389 = vrot.lane.b32.xlu0 %v762, 16
    %v1390 = vpop.permute.xlu0 %1389
    %1391 = vrot.lane.b32.xlu0 %v774, 16
    %v1392 = vpop.permute.xlu0 %1391
    %1393 = vrot.lane.b32.xlu0 %v786, 16
    %v1394 = vpop.permute.xlu0 %1393
    %1395 = vrot.lane.b32.xlu0 %v798, 16
    %v1396 = vpop.permute.xlu0 %1395
    %1397 = vrot.lane.b32.xlu0 %v810, 16
    %v1398 = vpop.permute.xlu0 %1397
    %1399 = vrot.lane.b32.xlu0 %v1158, 16
    %v1400 = vpop.permute.xlu0 %1399
    %1401 = vrot.lane.b32.xlu0 %v822, 16
    %v1402 = vpop.permute.xlu0 %1401
    %1403 = vrot.lane.b32.xlu0 %v834, 16
    %v1404 = vpop.permute.xlu0 %1403
    %1405 = vrot.lane.b32.xlu0 %v846, 16
    %v1406 = vpop.permute.xlu0 %1405
    %1407 = vrot.lane.b32.xlu0 %v858, 16
    %v1408 = vpop.permute.xlu0 %1407
    %1409 = vrot.lane.b32.xlu0 %v870, 16
    %v1410 = vpop.permute.xlu0 %1409
    %1411 = vrot.lane.b32.xlu0 %v882, 16
    %v1412 = vpop.permute.xlu0 %1411
    %1413 = vrot.lane.b32.xlu0 %v894, 16
    %v1414 = vpop.permute.xlu0 %1413
    %1415 = vrot.lane.b32.xlu0 %v906, 16
    %v1416 = vpop.permute.xlu0 %1415
    %1417 = vrot.lane.b32.xlu0 %v918, 16
    %v1418 = vpop.permute.xlu0 %1417
    %1419 = vrot.lane.b32.xlu0 %v930, 16
    %v1420 = vpop.permute.xlu0 %1419
    %1421 = vrot.lane.b32.xlu0 %v942, 16
    %v1422 = vpop.permute.xlu0 %1421
    %1423 = vrot.lane.b32.xlu0 %v954, 16
    %v1424 = vpop.permute.xlu0 %1423
    %1425 = vrot.lane.b32.xlu0 %v966, 16
    %v1426 = vpop.permute.xlu0 %1425
    %1427 = vrot.lane.b32.xlu0 %v978, 16
    %v1428 = vpop.permute.xlu0 %1427
    %1429 = vrot.lane.b32.xlu0 %v990, 16
    %v1430 = vpop.permute.xlu0 %1429
    %1431 = vrot.lane.b32.xlu0 %v1170, 16
    %v1432 = vpop.permute.xlu0 %1431
    %1433 = vrot.lane.b32.xlu0 %v1059, 20
    %v1434 = vpop.permute.xlu0 %1433
    %1435 = vrot.lane.b32.xlu0 %v1062, 20
    %v1436 = vpop.permute.xlu0 %1435
    %1437 = vrot.lane.b32.xlu0 %v1065, 20
    %v1438 = vpop.permute.xlu0 %1437
    %1439 = vrot.lane.b32.xlu0 %v1068, 20
    %v1440 = vpop.permute.xlu0 %1439
    %1441 = vrot.lane.b32.xlu0 %v1071, 20
    %v1442 = vpop.permute.xlu0 %1441
    %1443 = vrot.lane.b32.xlu0 %v1074, 20
    %v1444 = vpop.permute.xlu0 %1443
    %1445 = vrot.lane.b32.xlu0 %v1077, 20
    %v1446 = vpop.permute.xlu0 %1445
    %1447 = vrot.lane.b32.xlu0 %v1080, 20
    %v1448 = vpop.permute.xlu0 %1447
    %1449 = vrot.lane.b32.xlu0 %v1083, 20
    %v1450 = vpop.permute.xlu0 %1449
    %1451 = vrot.lane.b32.xlu0 %v1086, 20
    %v1452 = vpop.permute.xlu0 %1451
    %1453 = vrot.lane.b32.xlu0 %v1089, 20
    %v1454 = vpop.permute.xlu0 %1453
    %1455 = vrot.lane.b32.xlu0 %v1092, 20
    %v1456 = vpop.permute.xlu0 %1455
    %1457 = vrot.lane.b32.xlu0 %v1095, 20
    %v1458 = vpop.permute.xlu0 %1457
    %1459 = vrot.lane.b32.xlu0 %v1098, 20
    %v1460 = vpop.permute.xlu0 %1459
    %1461 = vrot.lane.b32.xlu0 %v1101, 20
    %v1462 = vpop.permute.xlu0 %1461
    %1463 = vrot.lane.b32.xlu0 %v1177, 20
    %v1464 = vpop.permute.xlu0 %1463
    %1465 = vrot.lane.b32.xlu0 %v1104, 20
    %v1466 = vpop.permute.xlu0 %1465
    %1467 = vrot.lane.b32.xlu0 %v1107, 20
    %v1468 = vpop.permute.xlu0 %1467
    %1469 = vrot.lane.b32.xlu0 %v1110, 20
    %v1470 = vpop.permute.xlu0 %1469
    %1471 = vrot.lane.b32.xlu0 %v1113, 20
    %v1472 = vpop.permute.xlu0 %1471
    %1473 = vrot.lane.b32.xlu0 %v1116, 20
    %v1474 = vpop.permute.xlu0 %1473
    %1475 = vrot.lane.b32.xlu0 %v1119, 20
    %v1476 = vpop.permute.xlu0 %1475
    %1477 = vrot.lane.b32.xlu0 %v1122, 20
    %v1478 = vpop.permute.xlu0 %1477
    %1479 = vrot.lane.b32.xlu0 %v1125, 20
    %v1480 = vpop.permute.xlu0 %1479
    %1481 = vrot.lane.b32.xlu0 %v1128, 20
    %v1482 = vpop.permute.xlu0 %1481
    %1483 = vrot.lane.b32.xlu0 %v1131, 20
    %v1484 = vpop.permute.xlu0 %1483
    %1485 = vrot.lane.b32.xlu0 %v1134, 20
    %v1486 = vpop.permute.xlu0 %1485
    %1487 = vrot.lane.b32.xlu0 %v1137, 20
    %v1488 = vpop.permute.xlu0 %1487
    %1489 = vrot.lane.b32.xlu0 %v1140, 20
    %v1490 = vpop.permute.xlu0 %1489
    %1491 = vrot.lane.b32.xlu0 %v1143, 20
    %v1492 = vpop.permute.xlu0 %1491
    %1493 = vrot.lane.b32.xlu0 %v1146, 20
    %v1494 = vpop.permute.xlu0 %1493
    %1495 = vrot.lane.b32.xlu0 %v1180, 20
    %v1496 = vpop.permute.xlu0 %1495
    %1497 = vrot.lane.b32.xlu0 %v554, 24
    %v1498 = vpop.permute.xlu0 %1497
    %1499 = vrot.lane.b32.xlu0 %v555, 24
    %v1500 = vpop.permute.xlu0 %1499
    %1501 = vrot.lane.b32.xlu0 %v556, 24
    %v1502 = vpop.permute.xlu0 %1501
    %1503 = vrot.lane.b32.xlu0 %v557, 24
    %v1504 = vpop.permute.xlu0 %1503
    %1505 = vrot.lane.b32.xlu0 %v558, 24
    %v1506 = vpop.permute.xlu0 %1505
    %1507 = vrot.lane.b32.xlu0 %v559, 24
    %v1508 = vpop.permute.xlu0 %1507
    %1509 = vrot.lane.b32.xlu0 %v560, 24
    %v1510 = vpop.permute.xlu0 %1509
    %1511 = vrot.lane.b32.xlu0 %v561, 24
    %v1512 = vpop.permute.xlu0 %1511
    %1513 = vrot.lane.b32.xlu0 %v562, 24
    %v1514 = vpop.permute.xlu0 %1513
    %1515 = vrot.lane.b32.xlu0 %v563, 24
    %v1516 = vpop.permute.xlu0 %1515
    %1517 = vrot.lane.b32.xlu0 %v564, 24
    %v1518 = vpop.permute.xlu0 %1517
    %1519 = vrot.lane.b32.xlu0 %v565, 24
    %v1520 = vpop.permute.xlu0 %1519
    %1521 = vrot.lane.b32.xlu0 %v566, 24
    %v1522 = vpop.permute.xlu0 %1521
    %1523 = vrot.lane.b32.xlu0 %v567, 24
    %v1524 = vpop.permute.xlu0 %1523
    %1525 = vrot.lane.b32.xlu0 %v568, 24
    %v1526 = vpop.permute.xlu0 %1525
    %1527 = vrot.lane.b32.xlu0 %v552, 24
    %v1528 = vpop.permute.xlu0 %1527
    %1529 = vrot.lane.b32.xlu0 %v570, 24
    %v1530 = vpop.permute.xlu0 %1529
    %1531 = vrot.lane.b32.xlu0 %v571, 24
    %v1532 = vpop.permute.xlu0 %1531
    %1533 = vrot.lane.b32.xlu0 %v572, 24
    %v1534 = vpop.permute.xlu0 %1533
    %1535 = vrot.lane.b32.xlu0 %v573, 24
    %v1536 = vpop.permute.xlu0 %1535
    %1537 = vrot.lane.b32.xlu0 %v574, 24
    %v1538 = vpop.permute.xlu0 %1537
    %1539 = vrot.lane.b32.xlu0 %v575, 24
    %v1540 = vpop.permute.xlu0 %1539
    %1541 = vrot.lane.b32.xlu0 %v576, 24
    %v1542 = vpop.permute.xlu0 %1541
    %1543 = vrot.lane.b32.xlu0 %v577, 24
    %v1544 = vpop.permute.xlu0 %1543
    %1545 = vrot.lane.b32.xlu0 %v578, 24
    %v1546 = vpop.permute.xlu0 %1545
    %1547 = vrot.lane.b32.xlu0 %v579, 24
    %v1548 = vpop.permute.xlu0 %1547
    %1549 = vrot.lane.b32.xlu0 %v580, 24
    %v1550 = vpop.permute.xlu0 %1549
    %1551 = vrot.lane.b32.xlu0 %v581, 24
    %v1552 = vpop.permute.xlu0 %1551
    %1553 = vrot.lane.b32.xlu0 %v582, 24
    %v1554 = vpop.permute.xlu0 %1553
    %1555 = vrot.lane.b32.xlu0 %v583, 24
    %v1556 = vpop.permute.xlu0 %1555
    %1557 = vrot.lane.b32.xlu0 %v584, 24
    %v1558 = vpop.permute.xlu0 %1557
    %1559 = vrot.lane.b32.xlu0 %v654, 28
    %v1560 = vpop.permute.xlu0 %1559
    %1561 = vrot.lane.b32.xlu0 %v666, 28
    %v1562 = vpop.permute.xlu0 %1561
    %1563 = vrot.lane.b32.xlu0 %v678, 28
    %v1564 = vpop.permute.xlu0 %1563
    %1565 = vrot.lane.b32.xlu0 %v690, 28
    %v1566 = vpop.permute.xlu0 %1565
    %1567 = vrot.lane.b32.xlu0 %v702, 28
    %v1568 = vpop.permute.xlu0 %1567
    %1569 = vrot.lane.b32.xlu0 %v714, 28
    %v1570 = vpop.permute.xlu0 %1569
    %1571 = vrot.lane.b32.xlu0 %v726, 28
    %v1572 = vpop.permute.xlu0 %1571
    %1573 = vrot.lane.b32.xlu0 %v738, 28
    %v1574 = vpop.permute.xlu0 %1573
    %1575 = vrot.lane.b32.xlu0 %v750, 28
    %v1576 = vpop.permute.xlu0 %1575
    %1577 = vrot.lane.b32.xlu0 %v762, 28
    %v1578 = vpop.permute.xlu0 %1577
    %1579 = vrot.lane.b32.xlu0 %v774, 28
    %v1580 = vpop.permute.xlu0 %1579
    %1581 = vrot.lane.b32.xlu0 %v786, 28
    %v1582 = vpop.permute.xlu0 %1581
    %1583 = vrot.lane.b32.xlu0 %v798, 28
    %v1584 = vpop.permute.xlu0 %1583
    %1585 = vrot.lane.b32.xlu0 %v810, 28
    %v1586 = vpop.permute.xlu0 %1585
    %1587 = vrot.lane.b32.xlu0 %v1158, 28
    %v1588 = vpop.permute.xlu0 %1587
    %1589 = vrot.lane.b32.xlu0 %v630, 28
    %v1590 = vpop.permute.xlu0 %1589
    %1591 = vrot.lane.b32.xlu0 %v834, 28
    %v1592 = vpop.permute.xlu0 %1591
    %1593 = vrot.lane.b32.xlu0 %v846, 28
    %v1594 = vpop.permute.xlu0 %1593
    %1595 = vrot.lane.b32.xlu0 %v858, 28
    %v1596 = vpop.permute.xlu0 %1595
    %1597 = vrot.lane.b32.xlu0 %v870, 28
    %v1598 = vpop.permute.xlu0 %1597
    %1599 = vrot.lane.b32.xlu0 %v882, 28
    %v1600 = vpop.permute.xlu0 %1599
    %1601 = vrot.lane.b32.xlu0 %v894, 28
    %v1602 = vpop.permute.xlu0 %1601
    %1603 = vrot.lane.b32.xlu0 %v906, 28
    %v1604 = vpop.permute.xlu0 %1603
    %1605 = vrot.lane.b32.xlu0 %v918, 28
    %v1606 = vpop.permute.xlu0 %1605
    %1607 = vrot.lane.b32.xlu0 %v930, 28
    %v1608 = vpop.permute.xlu0 %1607
    %1609 = vrot.lane.b32.xlu0 %v942, 28
    %v1610 = vpop.permute.xlu0 %1609
    %1611 = vrot.lane.b32.xlu0 %v954, 28
    %v1612 = vpop.permute.xlu0 %1611
    %1613 = vrot.lane.b32.xlu0 %v966, 28
    %v1614 = vpop.permute.xlu0 %1613
    %1615 = vrot.lane.b32.xlu0 %v978, 28
    %v1616 = vpop.permute.xlu0 %1615
    %1617 = vrot.lane.b32.xlu0 %v990, 28
    %v1618 = vpop.permute.xlu0 %1617
    %1619 = vrot.lane.b32.xlu0 %v1170, 28
    %v1620 = vpop.permute.xlu0 %1619
    %1621 = vrot.lane.b32.xlu0 %v1062, 32
    %v1622 = vpop.permute.xlu0 %1621
    %1623 = vrot.lane.b32.xlu0 %v1065, 32
    %v1624 = vpop.permute.xlu0 %1623
    %1625 = vrot.lane.b32.xlu0 %v1068, 32
    %v1626 = vpop.permute.xlu0 %1625
    %1627 = vrot.lane.b32.xlu0 %v1071, 32
    %v1628 = vpop.permute.xlu0 %1627
    %1629 = vrot.lane.b32.xlu0 %v1074, 32
    %v1630 = vpop.permute.xlu0 %1629
    %1631 = vrot.lane.b32.xlu0 %v1077, 32
    %v1632 = vpop.permute.xlu0 %1631
    %1633 = vrot.lane.b32.xlu0 %v1080, 32
    %v1634 = vpop.permute.xlu0 %1633
    %1635 = vrot.lane.b32.xlu0 %v1083, 32
    %v1636 = vpop.permute.xlu0 %1635
    %1637 = vrot.lane.b32.xlu0 %v1086, 32
    %v1638 = vpop.permute.xlu0 %1637
    %1639 = vrot.lane.b32.xlu0 %v1089, 32
    %v1640 = vpop.permute.xlu0 %1639
    %1641 = vrot.lane.b32.xlu0 %v1092, 32
    %v1642 = vpop.permute.xlu0 %1641
    %1643 = vrot.lane.b32.xlu0 %v1095, 32
    %v1644 = vpop.permute.xlu0 %1643
    %1645 = vrot.lane.b32.xlu0 %v1098, 32
    %v1646 = vpop.permute.xlu0 %1645
    %1647 = vrot.lane.b32.xlu0 %v1101, 32
    %v1648 = vpop.permute.xlu0 %1647
    %1649 = vrot.lane.b32.xlu0 %v1177, 32
    %v1650 = vpop.permute.xlu0 %1649
    %1651 = vrot.lane.b32.xlu0 %v1056, 32
    %v1652 = vpop.permute.xlu0 %1651
    %1653 = vrot.lane.b32.xlu0 %v1107, 32
    %v1654 = vpop.permute.xlu0 %1653
    %1655 = vrot.lane.b32.xlu0 %v1110, 32
    %v1656 = vpop.permute.xlu0 %1655
    %1657 = vrot.lane.b32.xlu0 %v1113, 32
    %v1658 = vpop.permute.xlu0 %1657
    %1659 = vrot.lane.b32.xlu0 %v1116, 32
    %v1660 = vpop.permute.xlu0 %1659
    %1661 = vrot.lane.b32.xlu0 %v1119, 32
    %v1662 = vpop.permute.xlu0 %1661
    %1663 = vrot.lane.b32.xlu0 %v1122, 32
    %v1664 = vpop.permute.xlu0 %1663
    %1665 = vrot.lane.b32.xlu0 %v1125, 32
    %v1666 = vpop.permute.xlu0 %1665
    %1667 = vrot.lane.b32.xlu0 %v1128, 32
    %v1668 = vpop.permute.xlu0 %1667
    %1669 = vrot.lane.b32.xlu0 %v1131, 32
    %v1670 = vpop.permute.xlu0 %1669
    %1671 = vrot.lane.b32.xlu0 %v1134, 32
    %v1672 = vpop.permute.xlu0 %1671
    %1673 = vrot.lane.b32.xlu0 %v1137, 32
    %v1674 = vpop.permute.xlu0 %1673
    %1675 = vrot.lane.b32.xlu0 %v1140, 32
    %v1676 = vpop.permute.xlu0 %1675
    %1677 = vrot.lane.b32.xlu0 %v1143, 32
    %v1678 = vpop.permute.xlu0 %1677
    %1679 = vrot.lane.b32.xlu0 %v1146, 32
    %v1680 = vpop.permute.xlu0 %1679
    %1681 = vrot.lane.b32.xlu0 %v1180, 32
    %v1682 = vpop.permute.xlu0 %1681
    %vm1683 = vcmask 31744
    %v1685 = vsel %vm1683, %v552, %v1182
    %v1687 = vsel %vm1683, %v553, %v1184
    %v1689 = vsel %vm1683, %v554, %v1186
    %v1691 = vsel %vm1683, %v555, %v1188
    %v1693 = vsel %vm1683, %v556, %v1190
    %v1695 = vsel %vm1683, %v557, %v1192
    %v1697 = vsel %vm1683, %v558, %v1194
    %v1699 = vsel %vm1683, %v559, %v1196
    %v1701 = vsel %vm1683, %v560, %v1198
    %v1703 = vsel %vm1683, %v561, %v1200
    %v1705 = vsel %vm1683, %v562, %v1202
    %v1707 = vsel %vm1683, %v563, %v1204
    %v1709 = vsel %vm1683, %v564, %v1206
    %v1711 = vsel %vm1683, %v565, %v1208
    %v1713 = vsel %vm1683, %v566, %v1210
    %v1715 = vsel %vm1683, %v567, %v1212
    %v1717 = vsel %vm1683, %v569, %v1214
    %v1719 = vsel %vm1683, %v570, %v1216
    %v1721 = vsel %vm1683, %v571, %v1218
    %v1723 = vsel %vm1683, %v572, %v1220
    %v1725 = vsel %vm1683, %v573, %v1222
    %v1727 = vsel %vm1683, %v574, %v1224
    %v1729 = vsel %vm1683, %v575, %v1226
    %v1731 = vsel %vm1683, %v576, %v1228
    %v1733 = vsel %vm1683, %v577, %v1230
    %v1735 = vsel %vm1683, %v578, %v1232
    %v1737 = vsel %vm1683, %v579, %v1234
    %v1739 = vsel %vm1683, %v580, %v1236
    %v1741 = vsel %vm1683, %v581, %v1238
    %v1743 = vsel %vm1683, %v582, %v1240
    %v1745 = vsel %vm1683, %v583, %v1242
    %vm1746 = vcmask 64512
    %v1748 = vsel %vm1746, %v1685, %v1244
    %v1750 = vsel %vm1746, %v1687, %v1246
    %v1752 = vsel %vm1746, %v1689, %v1248
    %v1754 = vsel %vm1746, %v1691, %v1250
    %v1756 = vsel %vm1746, %v1693, %v1252
    %v1758 = vsel %vm1746, %v1695, %v1254
    %v1760 = vsel %vm1746, %v1697, %v1256
    %v1762 = vsel %vm1746, %v1699, %v1258
    %v1764 = vsel %vm1746, %v1701, %v1260
    %v1766 = vsel %vm1746, %v1703, %v1262
    %v1768 = vsel %vm1746, %v1705, %v1264
    %v1770 = vsel %vm1746, %v1707, %v1266
    %v1772 = vsel %vm1746, %v1709, %v1268
    %v1774 = vsel %vm1746, %v1711, %v1270
    %v1776 = vsel %vm1746, %v1713, %v1272
    %v1778 = vsel %vm1746, %v1715, %v1274
    %v1780 = vsel %vm1746, %v1717, %v1276
    %v1782 = vsel %vm1746, %v1719, %v1278
    %v1784 = vsel %vm1746, %v1721, %v1280
    %v1786 = vsel %vm1746, %v1723, %v1282
    %v1788 = vsel %vm1746, %v1725, %v1284
    %v1790 = vsel %vm1746, %v1727, %v1286
    %v1792 = vsel %vm1746, %v1729, %v1288
    %v1794 = vsel %vm1746, %v1731, %v1290
    %v1796 = vsel %vm1746, %v1733, %v1292
    %v1798 = vsel %vm1746, %v1735, %v1294
    %v1800 = vsel %vm1746, %v1737, %v1296
    %v1802 = vsel %vm1746, %v1739, %v1298
    %v1804 = vsel %vm1746, %v1741, %v1300
    %v1806 = vsel %vm1746, %v1743, %v1302
    %v1808 = vsel %vm1746, %v1745, %v1304
    %vm1809 = vcmask 97280
    %v1811 = vsel %vm1809, %v1748, %v1306
    %v1813 = vsel %vm1809, %v1750, %v1308
    %v1815 = vsel %vm1809, %v1752, %v1310
    %v1817 = vsel %vm1809, %v1754, %v1312
    %v1819 = vsel %vm1809, %v1756, %v1314
    %v1821 = vsel %vm1809, %v1758, %v1316
    %v1823 = vsel %vm1809, %v1760, %v1318
    %v1825 = vsel %vm1809, %v1762, %v1320
    %v1827 = vsel %vm1809, %v1764, %v1322
    %v1829 = vsel %vm1809, %v1766, %v1324
    %v1831 = vsel %vm1809, %v1768, %v1326
    %v1833 = vsel %vm1809, %v1770, %v1328
    %v1835 = vsel %vm1809, %v1772, %v1330
    %v1837 = vsel %vm1809, %v1774, %v1332
    %v1839 = vsel %vm1809, %v1776, %v1334
    %v1841 = vsel %vm1809, %v1778, %v1336
    %v1843 = vsel %vm1809, %v1748, %v1338
    %v1845 = vsel %vm1809, %v1780, %v1340
    %v1847 = vsel %vm1809, %v1782, %v1342
    %v1849 = vsel %vm1809, %v1784, %v1344
    %v1851 = vsel %vm1809, %v1786, %v1346
    %v1853 = vsel %vm1809, %v1788, %v1348
    %v1855 = vsel %vm1809, %v1790, %v1350
    %v1857 = vsel %vm1809, %v1792, %v1352
    %v1859 = vsel %vm1809, %v1794, %v1354
    %v1861 = vsel %vm1809, %v1796, %v1356
    %v1863 = vsel %vm1809, %v1798, %v1358
    %v1865 = vsel %vm1809, %v1800, %v1360
    %v1867 = vsel %vm1809, %v1802, %v1362
    %v1869 = vsel %vm1809, %v1804, %v1364
    %v1871 = vsel %vm1809, %v1806, %v1366
    %v1873 = vsel %vm1809, %v1808, %v1368
    %vm1874 = vcmask 130048
    %v1876 = vsel %vm1874, %v1811, %v1370
    %v1878 = vsel %vm1874, %v1813, %v1372
    %v1880 = vsel %vm1874, %v1815, %v1374
    %v1882 = vsel %vm1874, %v1817, %v1376
    %v1884 = vsel %vm1874, %v1819, %v1378
    %v1886 = vsel %vm1874, %v1821, %v1380
    %v1888 = vsel %vm1874, %v1823, %v1382
    %v1890 = vsel %vm1874, %v1825, %v1384
    %v1892 = vsel %vm1874, %v1827, %v1386
    %v1894 = vsel %vm1874, %v1829, %v1388
    %v1896 = vsel %vm1874, %v1831, %v1390
    %v1898 = vsel %vm1874, %v1833, %v1392
    %v1900 = vsel %vm1874, %v1835, %v1394
    %v1902 = vsel %vm1874, %v1837, %v1396
    %v1904 = vsel %vm1874, %v1839, %v1398
    %v1906 = vsel %vm1874, %v1841, %v1400
    %v1908 = vsel %vm1874, %v1843, %v1402
    %v1910 = vsel %vm1874, %v1845, %v1404
    %v1912 = vsel %vm1874, %v1847, %v1406
    %v1914 = vsel %vm1874, %v1849, %v1408
    %v1916 = vsel %vm1874, %v1851, %v1410
    %v1918 = vsel %vm1874, %v1853, %v1412
    %v1920 = vsel %vm1874, %v1855, %v1414
    %v1922 = vsel %vm1874, %v1857, %v1416
    %v1924 = vsel %vm1874, %v1859, %v1418
    %v1926 = vsel %vm1874, %v1861, %v1420
    %v1928 = vsel %vm1874, %v1863, %v1422
    %v1930 = vsel %vm1874, %v1865, %v1424
    %v1932 = vsel %vm1874, %v1867, %v1426
    %v1934 = vsel %vm1874, %v1869, %v1428
    %v1936 = vsel %vm1874, %v1871, %v1430
    %v1938 = vsel %vm1874, %v1873, %v1432
    %vm1939 = vcmask 162816
    %v1941 = vsel %vm1939, %v1876, %v1434
    %v1943 = vsel %vm1939, %v1878, %v1436
    %v1945 = vsel %vm1939, %v1880, %v1438
    %v1947 = vsel %vm1939, %v1882, %v1440
    %v1949 = vsel %vm1939, %v1884, %v1442
    %v1951 = vsel %vm1939, %v1886, %v1444
    %v1953 = vsel %vm1939, %v1888, %v1446
    %v1955 = vsel %vm1939, %v1890, %v1448
    %v1957 = vsel %vm1939, %v1892, %v1450
    %v1959 = vsel %vm1939, %v1894, %v1452
    %v1961 = vsel %vm1939, %v1896, %v1454
    %v1963 = vsel %vm1939, %v1898, %v1456
    %v1965 = vsel %vm1939, %v1900, %v1458
    %v1967 = vsel %vm1939, %v1902, %v1460
    %v1969 = vsel %vm1939, %v1904, %v1462
    %v1971 = vsel %vm1939, %v1906, %v1464
    %v1973 = vsel %vm1939, %v1908, %v1466
    %v1975 = vsel %vm1939, %v1910, %v1468
    %v1977 = vsel %vm1939, %v1912, %v1470
    %v1979 = vsel %vm1939, %v1914, %v1472
    %v1981 = vsel %vm1939, %v1916, %v1474
    %v1983 = vsel %vm1939, %v1918, %v1476
    %v1985 = vsel %vm1939, %v1920, %v1478
    %v1987 = vsel %vm1939, %v1922, %v1480
    %v1989 = vsel %vm1939, %v1924, %v1482
    %v1991 = vsel %vm1939, %v1926, %v1484
    %v1993 = vsel %vm1939, %v1928, %v1486
    %v1995 = vsel %vm1939, %v1930, %v1488
    %v1997 = vsel %vm1939, %v1932, %v1490
    %v1999 = vsel %vm1939, %v1934, %v1492
    %v2001 = vsel %vm1939, %v1936, %v1494
    %v2003 = vsel %vm1939, %v1938, %v1496
    %vm2004 = vcmask 195584
    %v2006 = vsel %vm2004, %v1941, %v1498
    %v2008 = vsel %vm2004, %v1943, %v1500
    %v2010 = vsel %vm2004, %v1945, %v1502
    %v2012 = vsel %vm2004, %v1947, %v1504
    %v2014 = vsel %vm2004, %v1949, %v1506
    %v2016 = vsel %vm2004, %v1951, %v1508
    %v2018 = vsel %vm2004, %v1953, %v1510
    %v2020 = vsel %vm2004, %v1955, %v1512
    %v2022 = vsel %vm2004, %v1957, %v1514
    %v2024 = vsel %vm2004, %v1959, %v1516
    %v2026 = vsel %vm2004, %v1961, %v1518
    %v2028 = vsel %vm2004, %v1963, %v1520
    %v2030 = vsel %vm2004, %v1965, %v1522
    %v2032 = vsel %vm2004, %v1967, %v1524
    %v2034 = vsel %vm2004, %v1969, %v1526
    %v2036 = vsel %vm2004, %v1971, %v1528
    %v2038 = vsel %vm2004, %v1973, %v1530
    %v2040 = vsel %vm2004, %v1975, %v1532
    %v2042 = vsel %vm2004, %v1977, %v1534
    %v2044 = vsel %vm2004, %v1979, %v1536
    %v2046 = vsel %vm2004, %v1981, %v1538
    %v2048 = vsel %vm2004, %v1983, %v1540
    %v2050 = vsel %vm2004, %v1985, %v1542
    %v2052 = vsel %vm2004, %v1987, %v1544
    %v2054 = vsel %vm2004, %v1989, %v1546
    %v2056 = vsel %vm2004, %v1991, %v1548
    %v2058 = vsel %vm2004, %v1993, %v1550
    %v2060 = vsel %vm2004, %v1995, %v1552
    %v2062 = vsel %vm2004, %v1997, %v1554
    %v2064 = vsel %vm2004, %v1999, %v1556
    %v2066 = vsel %vm2004, %v2001, %v1558
    %v2067 = vsel %vm2004, %v2003, %v1528
    %vm2068 = vcmask 228352
    %v2070 = vsel %vm2068, %v2006, %v1560
    %v2072 = vsel %vm2068, %v2008, %v1562
    %v2074 = vsel %vm2068, %v2010, %v1564
    %v2076 = vsel %vm2068, %v2012, %v1566
    %v2078 = vsel %vm2068, %v2014, %v1568
    %v2080 = vsel %vm2068, %v2016, %v1570
    %v2082 = vsel %vm2068, %v2018, %v1572
    %v2084 = vsel %vm2068, %v2020, %v1574
    %v2086 = vsel %vm2068, %v2022, %v1576
    %v2088 = vsel %vm2068, %v2024, %v1578
    %v2090 = vsel %vm2068, %v2026, %v1580
    %v2092 = vsel %vm2068, %v2028, %v1582
    %v2094 = vsel %vm2068, %v2030, %v1584
    %v2096 = vsel %vm2068, %v2032, %v1586
    %v2098 = vsel %vm2068, %v2034, %v1588
    %v2100 = vsel %vm2068, %v2036, %v1590
    %v2102 = vsel %vm2068, %v2038, %v1592
    %v2104 = vsel %vm2068, %v2040, %v1594
    %v2106 = vsel %vm2068, %v2042, %v1596
    %v2108 = vsel %vm2068, %v2044, %v1598
    %v2110 = vsel %vm2068, %v2046, %v1600
    %v2112 = vsel %vm2068, %v2048, %v1602
    %v2114 = vsel %vm2068, %v2050, %v1604
    %v2116 = vsel %vm2068, %v2052, %v1606
    %v2118 = vsel %vm2068, %v2054, %v1608
    %v2120 = vsel %vm2068, %v2056, %v1610
    %v2122 = vsel %vm2068, %v2058, %v1612
    %v2124 = vsel %vm2068, %v2060, %v1614
    %v2126 = vsel %vm2068, %v2062, %v1616
    %v2128 = vsel %vm2068, %v2064, %v1618
    %v2130 = vsel %vm2068, %v2066, %v1620
    %v2131 = vsel %vm2068, %v2067, %v1590
    %vm2132 = vcmask 261120
    %v2134 = vsel %vm2132, %v2070, %v1622
    %v2136 = vsel %vm2132, %v2072, %v1624
    %v2138 = vsel %vm2132, %v2074, %v1626
    %v2140 = vsel %vm2132, %v2076, %v1628
    %v2142 = vsel %vm2132, %v2078, %v1630
    %v2144 = vsel %vm2132, %v2080, %v1632
    %v2146 = vsel %vm2132, %v2082, %v1634
    %v2148 = vsel %vm2132, %v2084, %v1636
    %v2150 = vsel %vm2132, %v2086, %v1638
    %v2152 = vsel %vm2132, %v2088, %v1640
    %v2154 = vsel %vm2132, %v2090, %v1642
    %v2156 = vsel %vm2132, %v2092, %v1644
    %v2158 = vsel %vm2132, %v2094, %v1646
    %v2160 = vsel %vm2132, %v2096, %v1648
    %v2162 = vsel %vm2132, %v2098, %v1650
    %v2164 = vsel %vm2132, %v2100, %v1652
    %v2166 = vsel %vm2132, %v2102, %v1654
    %v2168 = vsel %vm2132, %v2104, %v1656
    %v2170 = vsel %vm2132, %v2106, %v1658
    %v2172 = vsel %vm2132, %v2108, %v1660
    %v2174 = vsel %vm2132, %v2110, %v1662
    %v2176 = vsel %vm2132, %v2112, %v1664
    %v2178 = vsel %vm2132, %v2114, %v1666
    %v2180 = vsel %vm2132, %v2116, %v1668
    %v2182 = vsel %vm2132, %v2118, %v1670
    %v2184 = vsel %vm2132, %v2120, %v1672
    %v2186 = vsel %vm2132, %v2122, %v1674
    %v2188 = vsel %vm2132, %v2124, %v1676
    %v2190 = vsel %vm2132, %v2126, %v1678
    %v2192 = vsel %vm2132, %v2128, %v1680
    %v2194 = vsel %vm2132, %v2130, %v1682
    %v2195 = vsel %vm2132, %v2131, %v1652
    %v2197 = vlaneseq
    %v2198 = vshrl.u32 %v2197, 7
    %v2199 = vsub.s32 0, %v2198
    %v2200 = vrot.slane %v91, %v2199
    %v2207 = vunpack.c.l.b16 %v86
    %v2208 = vunpack.c.l.b16 %v87
    %v2209 = vunpack.c.l.b16 %v88
    %v2210 = vunpack.c.l.b16 %v89
    %v2211 = vunpack.c.l.b16 %v90
    %v2212 = vpack.c.b16 %v2208, %v2207
    %v2213 = vpack.c.b16 %v2210, %v2209
    %v2214 = vpack.c.b16 %v2211, %v2211
    %vm2217 = vcmask 293888
    %v2218 = vsel %vm2217, %v2134, 0
    %v2220 = vsel %vm2217, %v2136, 0
    %v2222 = vsel %vm2217, %v2138, 0
    %v2224 = vsel %vm2217, %v2140, 0
    %v2226 = vsel %vm2217, %v2142, 0
    %v2228 = vsel %vm2217, %v2144, 0
    %v2230 = vsel %vm2217, %v2146, 0
    %v2232 = vsel %vm2217, %v2148, 0
    %v2234 = vsel %vm2217, %v2150, 0
    %v2236 = vsel %vm2217, %v2152, 0
    %v2238 = vsel %vm2217, %v2154, 0
    %v2240 = vsel %vm2217, %v2156, 0
    %v2242 = vsel %vm2217, %v2158, 0
    %v2244 = vsel %vm2217, %v2160, 0
    %v2246 = vsel %vm2217, %v2162, 0
    %v2248 = vsel %vm2217, %v2164, 0
    %v2250 = vsel %vm2217, %v2166, 0
    %v2252 = vsel %vm2217, %v2168, 0
    %v2254 = vsel %vm2217, %v2170, 0
    %v2256 = vsel %vm2217, %v2172, 0
    %v2258 = vsel %vm2217, %v2174, 0
    %v2260 = vsel %vm2217, %v2176, 0
    %v2262 = vsel %vm2217, %v2178, 0
    %v2264 = vsel %vm2217, %v2180, 0
    %v2266 = vsel %vm2217, %v2182, 0
    %v2268 = vsel %vm2217, %v2184, 0
    %v2270 = vsel %vm2217, %v2186, 0
    %v2272 = vsel %vm2217, %v2188, 0
    %v2274 = vsel %vm2217, %v2190, 0
    %v2276 = vsel %vm2217, %v2192, 0
    %v2278 = vsel %vm2217, %v2194, 0
    %v2280 = vsel %vm2217, %v2195, 0
    %vm2282 = vcmask 1041408
    %v2284 = vsel %vm2282, %v2214, 0
    %2286 = vmatprep.subr.bf16.mxu0 0
    %2287 = vmatpush1.bf16.msra.mxu0 %v2212
    %2288 = vmatprep.subr.bf16.mxu0 0
    %2289 = vmatpush1.bf16.msra.mxu0 %v2213
    %2290 = vmatprep.subr.bf16.mxu0 0
    %2291 = vmatpush1.bf16.msra.mxu0 %v2284
    %2292 = vmatprep.subr.bf16.mxu0 0
    %2293 = vmatpush1.bf16.msra.mxu0 0
    %2294 = vmatprep.subr.bf16.mxu0 0
    %2295 = vmatpush1.bf16.msra.mxu0 0
    %2296 = vmatprep.subr.bf16.mxu0 0
    %2297 = vmatpush1.bf16.msra.mxu0 0
    %2298 = vmatprep.subr.bf16.mxu0 0
    %2299 = vmatpush1.bf16.msra.mxu0 0
    %2300 = vmatprep.subr.bf16.mxu0 0
    %2301 = vmatpush1.bf16.msra.mxu0 0
    %2302 = vmatprep.subr.bf16.mxu0 0
    %2303 = vmatpush1.bf16.msra.mxu0 0
    %2304 = vmatprep.subr.bf16.mxu0 0
    %2305 = vmatpush1.bf16.msra.mxu0 0
    %2306 = vmatprep.subr.bf16.mxu0 0
    %2307 = vmatpush1.bf16.msra.mxu0 0
    %2308 = vmatprep.subr.bf16.mxu0 0
    %2309 = vmatpush1.bf16.msra.mxu0 0
    %2310 = vmatprep.subr.bf16.mxu0 0
    %2311 = vmatpush1.bf16.msra.mxu0 0
    %2312 = vmatprep.subr.bf16.mxu0 0
    %2313 = vmatpush1.bf16.msra.mxu0 0
    %2314 = vmatprep.subr.bf16.mxu0 0
    %2315 = vmatpush1.bf16.msra.mxu0 0
    %2316 = vmatprep.subr.bf16.mxu0 0
    %2317 = vmatpush1.bf16.msra.mxu0 0
    %2318 = vmatprep.mubr.bf16.mxu0 0
    %2319 = vmatmul.mubr.bf16.gmra.mrb[0].mxu0 %v2218
    %v2320 = vpop.f32.mrb[0].mxu0
    %v2321 = vadd.f32 %v2200, %v2320
    %v2322 = vpop.f32.mrb[0].mxu0
    %v2323 = vpop.f32.mrb[0].mxu0
    %v2324 = vadd.f32 %v2200, %v2323
    %v2325 = vpop.f32.mrb[0].mxu0
    %2326 = vmatprep.mubr.bf16.mxu0 0
    %2327 = vmatmul.mubr.bf16.gmra.mrb[0].mxu0 %v2220
    %v2328 = vpop.f32.mrb[0].mxu0
    %v2329 = vadd.f32 %v2200, %v2328
    %v2330 = vpop.f32.mrb[0].mxu0
    %v2331 = vpop.f32.mrb[0].mxu0
    %v2332 = vadd.f32 %v2200, %v2331
    %v2333 = vpop.f32.mrb[0].mxu0
    %2334 = vmatprep.mubr.bf16.mxu0 0
    %2335 = vmatmul.mubr.bf16.gmra.mrb[0].mxu0 %v2222
    %v2336 = vpop.f32.mrb[0].mxu0
    %v2337 = vadd.f32 %v2200, %v2336
    %v2338 = vpop.f32.mrb[0].mxu0
    %v2339 = vpop.f32.mrb[0].mxu0
    %v2340 = vadd.f32 %v2200, %v2339
    %v2341 = vpop.f32.mrb[0].mxu0
    %2342 = vmatprep.mubr.bf16.mxu0 0
    %2343 = vmatmul.mubr.bf16.gmra.mrb[0].mxu0 %v2224
    %v2344 = vpop.f32.mrb[0].mxu0
    %v2345 = vadd.f32 %v2200, %v2344
    %v2346 = vpop.f32.mrb[0].mxu0
    %v2347 = vpop.f32.mrb[0].mxu0
    %v2348 = vadd.f32 %v2200, %v2347
    %v2349 = vpop.f32.mrb[0].mxu0
    %2350 = vmatprep.mubr.bf16.mxu0 0
    %2351 = vmatmul.mubr.bf16.gmra.mrb[0].mxu0 %v2226
    %v2352 = vpop.f32.mrb[0].mxu0
    %v2353 = vadd.f32 %v2200, %v2352
    %v2354 = vpop.f32.mrb[0].mxu0
    %v2355 = vpop.f32.mrb[0].mxu0
    %v2356 = vadd.f32 %v2200, %v2355
    %v2357 = vpop.f32.mrb[0].mxu0
    %2358 = vmatprep.mubr.bf16.mxu0 0
    %2359 = vmatmul.mubr.bf16.gmra.mrb[0].mxu0 %v2228
    %v2360 = vpop.f32.mrb[0].mxu0
    %v2361 = vadd.f32 %v2200, %v2360
    %v2362 = vpop.f32.mrb[0].mxu0
    %v2363 = vpop.f32.mrb[0].mxu0
    %v2364 = vadd.f32 %v2200, %v2363
    %v2365 = vpop.f32.mrb[0].mxu0
    %2366 = vmatprep.mubr.bf16.mxu0 0
    %2367 = vmatmul.mubr.bf16.gmra.mrb[0].mxu0 %v2230
    %v2368 = vpop.f32.mrb[0].mxu0
    %v2369 = vadd.f32 %v2200, %v2368
    %v2370 = vpop.f32.mrb[0].mxu0
    %v2371 = vpop.f32.mrb[0].mxu0
    %v2372 = vadd.f32 %v2200, %v2371
    %v2373 = vpop.f32.mrb[0].mxu0
    %2374 = vmatprep.mubr.bf16.mxu0 0
    %2375 = vmatmul.mubr.bf16.gmra.mrb[0].mxu0 %v2232
    %v2376 = vpop.f32.mrb[0].mxu0
    %v2377 = vadd.f32 %v2200, %v2376
    %v2378 = vpop.f32.mrb[0].mxu0
    %v2379 = vpop.f32.mrb[0].mxu0
    %v2380 = vadd.f32 %v2200, %v2379
    %v2381 = vpop.f32.mrb[0].mxu0
    %2382 = vmatprep.mubr.bf16.mxu0 0
    %2383 = vmatmul.mubr.bf16.gmra.mrb[0].mxu0 %v2234
    %v2384 = vpop.f32.mrb[0].mxu0
    %v2385 = vadd.f32 %v2200, %v2384
    %v2386 = vpop.f32.mrb[0].mxu0
    %v2387 = vpop.f32.mrb[0].mxu0
    %v2388 = vadd.f32 %v2200, %v2387
    %v2389 = vpop.f32.mrb[0].mxu0
    %2390 = vmatprep.mubr.bf16.mxu0 0
    %2391 = vmatmul.mubr.bf16.gmra.mrb[0].mxu0 %v2236
    %v2392 = vpop.f32.mrb[0].mxu0
    %v2393 = vadd.f32 %v2200, %v2392
    %v2394 = vpop.f32.mrb[0].mxu0
    %v2395 = vpop.f32.mrb[0].mxu0
    %v2396 = vadd.f32 %v2200, %v2395
    %v2397 = vpop.f32.mrb[0].mxu0
    %2398 = vmatprep.mubr.bf16.mxu0 0
    %2399 = vmatmul.mubr.bf16.gmra.mrb[0].mxu0 %v2238
    %v2400 = vpop.f32.mrb[0].mxu0
    %v2401 = vadd.f32 %v2200, %v2400
    %v2402 = vpop.f32.mrb[0].mxu0
    %v2403 = vpop.f32.mrb[0].mxu0
    %v2404 = vadd.f32 %v2200, %v2403
    %v2405 = vpop.f32.mrb[0].mxu0
    %2406 = vmatprep.mubr.bf16.mxu0 0
    %2407 = vmatmul.mubr.bf16.gmra.mrb[0].mxu0 %v2240
    %v2408 = vpop.f32.mrb[0].mxu0
    %v2409 = vadd.f32 %v2200, %v2408
    %v2410 = vpop.f32.mrb[0].mxu0
    %v2411 = vpop.f32.mrb[0].mxu0
    %v2412 = vadd.f32 %v2200, %v2411
    %v2413 = vpop.f32.mrb[0].mxu0
    %2414 = vmatprep.mubr.bf16.mxu0 0
    %2415 = vmatmul.mubr.bf16.gmra.mrb[0].mxu0 %v2242
    %v2416 = vpop.f32.mrb[0].mxu0
    %v2417 = vadd.f32 %v2200, %v2416
    %v2418 = vpop.f32.mrb[0].mxu0
    %v2419 = vpop.f32.mrb[0].mxu0
    %v2420 = vadd.f32 %v2200, %v2419
    %v2421 = vpop.f32.mrb[0].mxu0
    %2422 = vmatprep.mubr.bf16.mxu0 0
    %2423 = vmatmul.mubr.bf16.gmra.mrb[0].mxu0 %v2244
    %v2424 = vpop.f32.mrb[0].mxu0
    %v2425 = vadd.f32 %v2200, %v2424
    %v2426 = vpop.f32.mrb[0].mxu0
    %v2427 = vpop.f32.mrb[0].mxu0
    %v2428 = vadd.f32 %v2200, %v2427
    %v2429 = vpop.f32.mrb[0].mxu0
    %2430 = vmatprep.mubr.bf16.mxu0 0
    %2431 = vmatmul.mubr.bf16.gmra.mrb[0].mxu0 %v2246
    %v2432 = vpop.f32.mrb[0].mxu0
    %v2433 = vadd.f32 %v2200, %v2432
    %v2434 = vpop.f32.mrb[0].mxu0
    %v2435 = vpop.f32.mrb[0].mxu0
    %v2436 = vadd.f32 %v2200, %v2435
    %v2437 = vpop.f32.mrb[0].mxu0
    %2438 = vmatprep.mubr.bf16.mxu0 0
    %2439 = vmatmul.mubr.bf16.gmra.mrb[0].mxu0 %v2248
    %v2440 = vpop.f32.mrb[0].mxu0
    %v2441 = vadd.f32 %v2200, %v2440
    %v2442 = vpop.f32.mrb[0].mxu0
    %v2443 = vpop.f32.mrb[0].mxu0
    %v2444 = vadd.f32 %v2200, %v2443
    %v2445 = vpop.f32.mrb[0].mxu0
    %2446 = vmatprep.mubr.bf16.mxu0 0
    %2447 = vmatmul.mubr.bf16.gmra.mrb[0].mxu0 %v2250
    %v2448 = vpop.f32.mrb[0].mxu0
    %v2449 = vadd.f32 %v2200, %v2448
    %v2450 = vpop.f32.mrb[0].mxu0
    %v2451 = vpop.f32.mrb[0].mxu0
    %v2452 = vadd.f32 %v2200, %v2451
    %v2453 = vpop.f32.mrb[0].mxu0
    %2454 = vmatprep.mubr.bf16.mxu0 0
    %2455 = vmatmul.mubr.bf16.gmra.mrb[0].mxu0 %v2252
    %v2456 = vpop.f32.mrb[0].mxu0
    %v2457 = vadd.f32 %v2200, %v2456
    %v2458 = vpop.f32.mrb[0].mxu0
    %v2459 = vpop.f32.mrb[0].mxu0
    %v2460 = vadd.f32 %v2200, %v2459
    %v2461 = vpop.f32.mrb[0].mxu0
    %2462 = vmatprep.mubr.bf16.mxu0 0
    %2463 = vmatmul.mubr.bf16.gmra.mrb[0].mxu0 %v2254
    %v2464 = vpop.f32.mrb[0].mxu0
    %v2465 = vadd.f32 %v2200, %v2464
    %v2466 = vpop.f32.mrb[0].mxu0
    %v2467 = vpop.f32.mrb[0].mxu0
    %v2468 = vadd.f32 %v2200, %v2467
    %v2469 = vpop.f32.mrb[0].mxu0
    %2470 = vmatprep.mubr.bf16.mxu0 0
    %2471 = vmatmul.mubr.bf16.gmra.mrb[0].mxu0 %v2256
    %v2472 = vpop.f32.mrb[0].mxu0
    %v2473 = vadd.f32 %v2200, %v2472
    %v2474 = vpop.f32.mrb[0].mxu0
    %v2475 = vpop.f32.mrb[0].mxu0
    %v2476 = vadd.f32 %v2200, %v2475
    %v2477 = vpop.f32.mrb[0].mxu0
    %2478 = vmatprep.mubr.bf16.mxu0 0
    %2479 = vmatmul.mubr.bf16.gmra.mrb[0].mxu0 %v2258
    %v2480 = vpop.f32.mrb[0].mxu0
    %v2481 = vadd.f32 %v2200, %v2480
    %v2482 = vpop.f32.mrb[0].mxu0
    %v2483 = vpop.f32.mrb[0].mxu0
    %v2484 = vadd.f32 %v2200, %v2483
    %v2485 = vpop.f32.mrb[0].mxu0
    %2486 = vmatprep.mubr.bf16.mxu0 0
    %2487 = vmatmul.mubr.bf16.gmra.mrb[0].mxu0 %v2260
    %v2488 = vpop.f32.mrb[0].mxu0
    %v2489 = vadd.f32 %v2200, %v2488
    %v2490 = vpop.f32.mrb[0].mxu0
    %v2491 = vpop.f32.mrb[0].mxu0
    %v2492 = vadd.f32 %v2200, %v2491
    %v2493 = vpop.f32.mrb[0].mxu0
    %2494 = vmatprep.mubr.bf16.mxu0 0
    %2495 = vmatmul.mubr.bf16.gmra.mrb[0].mxu0 %v2262
    %v2496 = vpop.f32.mrb[0].mxu0
    %v2497 = vadd.f32 %v2200, %v2496
    %v2498 = vpop.f32.mrb[0].mxu0
    %v2499 = vpop.f32.mrb[0].mxu0
    %v2500 = vadd.f32 %v2200, %v2499
    %v2501 = vpop.f32.mrb[0].mxu0
    %2502 = vmatprep.mubr.bf16.mxu0 0
    %2503 = vmatmul.mubr.bf16.gmra.mrb[0].mxu0 %v2264
    %v2504 = vpop.f32.mrb[0].mxu0
    %v2505 = vadd.f32 %v2200, %v2504
    %v2506 = vpop.f32.mrb[0].mxu0
    %v2507 = vpop.f32.mrb[0].mxu0
    %v2508 = vadd.f32 %v2200, %v2507
    %v2509 = vpop.f32.mrb[0].mxu0
    %2510 = vmatprep.mubr.bf16.mxu0 0
    %2511 = vmatmul.mubr.bf16.gmra.mrb[0].mxu0 %v2266
    %v2512 = vpop.f32.mrb[0].mxu0
    %v2513 = vadd.f32 %v2200, %v2512
    %v2514 = vpop.f32.mrb[0].mxu0
    %v2515 = vpop.f32.mrb[0].mxu0
    %v2516 = vadd.f32 %v2200, %v2515
    %v2517 = vpop.f32.mrb[0].mxu0
    %2518 = vmatprep.mubr.bf16.mxu0 0
    %2519 = vmatmul.mubr.bf16.gmra.mrb[0].mxu0 %v2268
    %v2520 = vpop.f32.mrb[0].mxu0
    %v2521 = vadd.f32 %v2200, %v2520
    %v2522 = vpop.f32.mrb[0].mxu0
    %v2523 = vpop.f32.mrb[0].mxu0
    %v2524 = vadd.f32 %v2200, %v2523
    %v2525 = vpop.f32.mrb[0].mxu0
    %2526 = vmatprep.mubr.bf16.mxu0 0
    %2527 = vmatmul.mubr.bf16.gmra.mrb[0].mxu0 %v2270
    %v2528 = vpop.f32.mrb[0].mxu0
    %v2529 = vadd.f32 %v2200, %v2528
    %v2530 = vpop.f32.mrb[0].mxu0
    %v2531 = vpop.f32.mrb[0].mxu0
    %v2532 = vadd.f32 %v2200, %v2531
    %v2533 = vpop.f32.mrb[0].mxu0
    %2534 = vmatprep.mubr.bf16.mxu0 0
    %2535 = vmatmul.mubr.bf16.gmra.mrb[0].mxu0 %v2272
    %v2536 = vpop.f32.mrb[0].mxu0
    %v2537 = vadd.f32 %v2200, %v2536
    %v2538 = vpop.f32.mrb[0].mxu0
    %v2539 = vpop.f32.mrb[0].mxu0
    %v2540 = vadd.f32 %v2200, %v2539
    %v2541 = vpop.f32.mrb[0].mxu0
    %2542 = vmatprep.mubr.bf16.mxu0 0
    %2543 = vmatmul.mubr.bf16.gmra.mrb[0].mxu0 %v2274
    %v2544 = vpop.f32.mrb[0].mxu0
    %v2545 = vadd.f32 %v2200, %v2544
    %v2546 = vpop.f32.mrb[0].mxu0
    %v2547 = vpop.f32.mrb[0].mxu0
    %v2548 = vadd.f32 %v2200, %v2547
    %v2549 = vpop.f32.mrb[0].mxu0
    %2550 = vmatprep.mubr.bf16.mxu0 0
    %2551 = vmatmul.mubr.bf16.gmra.mrb[0].mxu0 %v2276
    %v2552 = vpop.f32.mrb[0].mxu0
    %v2553 = vadd.f32 %v2200, %v2552
    %v2554 = vpop.f32.mrb[0].mxu0
    %v2555 = vpop.f32.mrb[0].mxu0
    %v2556 = vadd.f32 %v2200, %v2555
    %v2557 = vpop.f32.mrb[0].mxu0
    %2558 = vmatprep.mubr.bf16.mxu0 0
    %2559 = vmatmul.mubr.bf16.gmra.mrb[0].mxu0 %v2278
    %v2560 = vpop.f32.mrb[0].mxu0
    %v2561 = vadd.f32 %v2200, %v2560
    %v2562 = vpop.f32.mrb[0].mxu0
    %v2563 = vpop.f32.mrb[0].mxu0
    %v2564 = vadd.f32 %v2200, %v2563
    %v2565 = vpop.f32.mrb[0].mxu0
    %2566 = vmatprep.mubr.bf16.mxu0 0
    %2567 = vmatmul.mubr.bf16.gmra.mrb[0].mxu0 %v2280
    %v2568 = vpop.f32.mrb[0].mxu0
    %v2569 = vadd.f32 %v2200, %v2568
    %v2570 = vpop.f32.mrb[0].mxu0
    %v2571 = vpop.f32.mrb[0].mxu0
    %v2572 = vadd.f32 %v2200, %v2571
    %v2573 = vpop.f32.mrb[0].mxu0
    %2574 = vdwg.mxu0
    %v2575 = vmax.f32 %v2321, 0.0
    %v2576 = vmax.f32 %v2324, 0.0
    %v2577 = vmax.f32 %v2329, 0.0
    %v2578 = vmax.f32 %v2332, 0.0
    %v2579 = vmax.f32 %v2337, 0.0
    %v2580 = vmax.f32 %v2340, 0.0
    %v2581 = vmax.f32 %v2345, 0.0
    %v2582 = vmax.f32 %v2348, 0.0
    %v2583 = vmax.f32 %v2353, 0.0
    %v2584 = vmax.f32 %v2356, 0.0
    %v2585 = vmax.f32 %v2361, 0.0
    %v2586 = vmax.f32 %v2364, 0.0
    %v2587 = vmax.f32 %v2369, 0.0
    %v2588 = vmax.f32 %v2372, 0.0
    %v2589 = vmax.f32 %v2377, 0.0
    %v2590 = vmax.f32 %v2380, 0.0
    %v2591 = vmax.f32 %v2385, 0.0
    %v2592 = vmax.f32 %v2388, 0.0
    %v2593 = vmax.f32 %v2393, 0.0
    %v2594 = vmax.f32 %v2396, 0.0
    %v2595 = vmax.f32 %v2401, 0.0
    %v2596 = vmax.f32 %v2404, 0.0
    %v2597 = vmax.f32 %v2409, 0.0
    %v2598 = vmax.f32 %v2412, 0.0
    %v2599 = vmax.f32 %v2417, 0.0
    %v2600 = vmax.f32 %v2420, 0.0
    %v2601 = vmax.f32 %v2425, 0.0
    %v2602 = vmax.f32 %v2428, 0.0
    %v2603 = vmax.f32 %v2433, 0.0
    %v2604 = vmax.f32 %v2436, 0.0
    %v2605 = vmax.f32 %v2441, 0.0
    %v2606 = vmax.f32 %v2444, 0.0
    %v2607 = vmax.f32 %v2449, 0.0
    %v2608 = vmax.f32 %v2452, 0.0
    %v2609 = vmax.f32 %v2457, 0.0
    %v2610 = vmax.f32 %v2460, 0.0
    %v2611 = vmax.f32 %v2465, 0.0
    %v2612 = vmax.f32 %v2468, 0.0
    %v2613 = vmax.f32 %v2473, 0.0
    %v2614 = vmax.f32 %v2476, 0.0
    %v2615 = vmax.f32 %v2481, 0.0
    %v2616 = vmax.f32 %v2484, 0.0
    %v2617 = vmax.f32 %v2489, 0.0
    %v2618 = vmax.f32 %v2492, 0.0
    %v2619 = vmax.f32 %v2497, 0.0
    %v2620 = vmax.f32 %v2500, 0.0
    %v2621 = vmax.f32 %v2505, 0.0
    %v2622 = vmax.f32 %v2508, 0.0
    %v2623 = vmax.f32 %v2513, 0.0
    %v2624 = vmax.f32 %v2516, 0.0
    %v2625 = vmax.f32 %v2521, 0.0
    %v2626 = vmax.f32 %v2524, 0.0
    %v2627 = vmax.f32 %v2529, 0.0
    %v2628 = vmax.f32 %v2532, 0.0
    %v2629 = vmax.f32 %v2537, 0.0
    %v2630 = vmax.f32 %v2540, 0.0
    %v2631 = vmax.f32 %v2545, 0.0
    %v2632 = vmax.f32 %v2548, 0.0
    %v2633 = vmax.f32 %v2553, 0.0
    %v2634 = vmax.f32 %v2556, 0.0
    %v2635 = vmax.f32 %v2561, 0.0
    %v2636 = vmax.f32 %v2564, 0.0
    %v2637 = vmax.f32 %v2569, 0.0
    %v2638 = vmax.f32 %v2572, 0.0
    %v2639 = vpack.c.bf16 %v2576, %v2575
    %v2640 = vpack.c.bf16 %v2578, %v2577
    %v2641 = vpack.c.bf16 %v2580, %v2579
    %v2642 = vpack.c.bf16 %v2582, %v2581
    %v2643 = vpack.c.bf16 %v2584, %v2583
    %v2644 = vpack.c.bf16 %v2586, %v2585
    %v2645 = vpack.c.bf16 %v2588, %v2587
    %v2646 = vpack.c.bf16 %v2590, %v2589
    %v2647 = vpack.c.bf16 %v2592, %v2591
    %v2648 = vpack.c.bf16 %v2594, %v2593
    %v2649 = vpack.c.bf16 %v2596, %v2595
    %v2650 = vpack.c.bf16 %v2598, %v2597
    %v2651 = vpack.c.bf16 %v2600, %v2599
    %v2652 = vpack.c.bf16 %v2602, %v2601
    %v2653 = vpack.c.bf16 %v2604, %v2603
    %v2654 = vpack.c.bf16 %v2606, %v2605
    %v2655 = vpack.c.bf16 %v2608, %v2607
    %v2656 = vpack.c.bf16 %v2610, %v2609
    %v2657 = vpack.c.bf16 %v2612, %v2611
    %v2658 = vpack.c.bf16 %v2614, %v2613
    %v2659 = vpack.c.bf16 %v2616, %v2615
    %v2660 = vpack.c.bf16 %v2618, %v2617
    %v2661 = vpack.c.bf16 %v2620, %v2619
    %v2662 = vpack.c.bf16 %v2622, %v2621
    %v2663 = vpack.c.bf16 %v2624, %v2623
    %v2664 = vpack.c.bf16 %v2626, %v2625
    %v2665 = vpack.c.bf16 %v2628, %v2627
    %v2666 = vpack.c.bf16 %v2630, %v2629
    %v2667 = vpack.c.bf16 %v2632, %v2631
    %v2668 = vpack.c.bf16 %v2634, %v2633
    %v2669 = vpack.c.bf16 %v2636, %v2635
    %v2670 = vpack.c.bf16 %v2638, %v2637
    %v2671 = vld [vmem:[%s3] sm:$0xf]
    %v2672 = vld [vmem:[%s3 + $0x4] sm:$0xf]
    %v2673 = vld [vmem:[%s3 + $0x8] sm:$0xf]
    %v2674 = vld [vmem:[%s3 + $0xc] sm:$0xf]
    %v2675 = vld [vmem:[%s3 + $0x10] sm:$0xf]
    %v2676 = vld [vmem:[%s3 + $0x14] sm:$0xf]
    %v2677 = vld [vmem:[%s3 + $0x18] sm:$0xf]
    %v2678 = vld [vmem:[%s3 + $0x1c] sm:$0xf]
    %v2679 = vld [vmem:[%s3 + $0x20] sm:$0xf]
    %v2680 = vld [vmem:[%s4] sm:$0x1]
    %v2682 = vshrl.u32 %v2639, 16
    %v2684 = vrot.slane %v2682, 7
    %v2685 = vshll.u32 %v2639, 16
    %v2687 = vor.u32 %v2684, %v2685
    %v2689 = vshrl.u32 %v2640, 16
    %v2691 = vrot.slane %v2689, 7
    %v2692 = vshll.u32 %v2640, 16
    %v2694 = vor.u32 %v2691, %v2692
    %v2696 = vshrl.u32 %v2641, 16
    %v2698 = vrot.slane %v2696, 7
    %v2699 = vshll.u32 %v2641, 16
    %v2701 = vor.u32 %v2698, %v2699
    %v2703 = vshrl.u32 %v2642, 16
    %v2705 = vrot.slane %v2703, 7
    %v2706 = vshll.u32 %v2642, 16
    %v2708 = vor.u32 %v2705, %v2706
    %v2710 = vshrl.u32 %v2643, 16
    %v2712 = vrot.slane %v2710, 7
    %v2713 = vshll.u32 %v2643, 16
    %v2715 = vor.u32 %v2712, %v2713
    %v2717 = vshrl.u32 %v2644, 16
    %v2719 = vrot.slane %v2717, 7
    %v2720 = vshll.u32 %v2644, 16
    %v2722 = vor.u32 %v2719, %v2720
    %v2724 = vshrl.u32 %v2645, 16
    %v2726 = vrot.slane %v2724, 7
    %v2727 = vshll.u32 %v2645, 16
    %v2729 = vor.u32 %v2726, %v2727
    %v2731 = vshrl.u32 %v2646, 16
    %v2733 = vrot.slane %v2731, 7
    %v2734 = vshll.u32 %v2646, 16
    %v2736 = vor.u32 %v2733, %v2734
    %v2738 = vshrl.u32 %v2647, 16
    %v2740 = vrot.slane %v2738, 7
    %v2741 = vshll.u32 %v2647, 16
    %v2743 = vor.u32 %v2740, %v2741
    %v2745 = vshrl.u32 %v2648, 16
    %v2747 = vrot.slane %v2745, 7
    %v2748 = vshll.u32 %v2648, 16
    %v2750 = vor.u32 %v2747, %v2748
    %v2752 = vshrl.u32 %v2649, 16
    %v2754 = vrot.slane %v2752, 7
    %v2755 = vshll.u32 %v2649, 16
    %v2757 = vor.u32 %v2754, %v2755
    %v2759 = vshrl.u32 %v2650, 16
    %v2761 = vrot.slane %v2759, 7
    %v2762 = vshll.u32 %v2650, 16
    %v2764 = vor.u32 %v2761, %v2762
    %v2766 = vshrl.u32 %v2651, 16
    %v2768 = vrot.slane %v2766, 7
    %v2769 = vshll.u32 %v2651, 16
    %v2771 = vor.u32 %v2768, %v2769
    %v2773 = vshrl.u32 %v2652, 16
    %v2775 = vrot.slane %v2773, 7
    %v2776 = vshll.u32 %v2652, 16
    %v2778 = vor.u32 %v2775, %v2776
    %v2780 = vshrl.u32 %v2653, 16
    %v2782 = vrot.slane %v2780, 7
    %v2783 = vshll.u32 %v2653, 16
    %v2785 = vor.u32 %v2782, %v2783
    %v2787 = vshrl.u32 %v2654, 16
    %v2789 = vrot.slane %v2787, 7
    %v2790 = vshll.u32 %v2654, 16
    %v2792 = vor.u32 %v2789, %v2790
    %v2794 = vshrl.u32 %v2655, 16
    %v2796 = vrot.slane %v2794, 7
    %v2797 = vshll.u32 %v2655, 16
    %v2799 = vor.u32 %v2796, %v2797
    %v2801 = vshrl.u32 %v2656, 16
    %v2803 = vrot.slane %v2801, 7
    %v2804 = vshll.u32 %v2656, 16
    %v2806 = vor.u32 %v2803, %v2804
    %v2808 = vshrl.u32 %v2657, 16
    %v2810 = vrot.slane %v2808, 7
    %v2811 = vshll.u32 %v2657, 16
    %v2813 = vor.u32 %v2810, %v2811
    %v2815 = vshrl.u32 %v2658, 16
    %v2817 = vrot.slane %v2815, 7
    %v2818 = vshll.u32 %v2658, 16
    %v2820 = vor.u32 %v2817, %v2818
    %v2822 = vshrl.u32 %v2659, 16
    %v2824 = vrot.slane %v2822, 7
    %v2825 = vshll.u32 %v2659, 16
    %v2827 = vor.u32 %v2824, %v2825
    %v2829 = vshrl.u32 %v2660, 16
    %v2831 = vrot.slane %v2829, 7
    %v2832 = vshll.u32 %v2660, 16
    %v2834 = vor.u32 %v2831, %v2832
    %v2836 = vshrl.u32 %v2661, 16
    %v2838 = vrot.slane %v2836, 7
    %v2839 = vshll.u32 %v2661, 16
    %v2841 = vor.u32 %v2838, %v2839
    %v2843 = vshrl.u32 %v2662, 16
    %v2845 = vrot.slane %v2843, 7
    %v2846 = vshll.u32 %v2662, 16
    %v2848 = vor.u32 %v2845, %v2846
    %v2850 = vshrl.u32 %v2663, 16
    %v2852 = vrot.slane %v2850, 7
    %v2853 = vshll.u32 %v2663, 16
    %v2855 = vor.u32 %v2852, %v2853
    %v2857 = vshrl.u32 %v2664, 16
    %v2859 = vrot.slane %v2857, 7
    %v2860 = vshll.u32 %v2664, 16
    %v2862 = vor.u32 %v2859, %v2860
    %v2864 = vshrl.u32 %v2665, 16
    %v2866 = vrot.slane %v2864, 7
    %v2867 = vshll.u32 %v2665, 16
    %v2869 = vor.u32 %v2866, %v2867
    %v2871 = vshrl.u32 %v2666, 16
    %v2873 = vrot.slane %v2871, 7
    %v2874 = vshll.u32 %v2666, 16
    %v2876 = vor.u32 %v2873, %v2874
    %v2878 = vshrl.u32 %v2667, 16
    %v2880 = vrot.slane %v2878, 7
    %v2881 = vshll.u32 %v2667, 16
    %v2883 = vor.u32 %v2880, %v2881
    %v2885 = vshrl.u32 %v2668, 16
    %v2887 = vrot.slane %v2885, 7
    %v2888 = vshll.u32 %v2668, 16
    %v2890 = vor.u32 %v2887, %v2888
    %v2892 = vshrl.u32 %v2669, 16
    %v2894 = vrot.slane %v2892, 7
    %v2895 = vshll.u32 %v2669, 16
    %v2897 = vor.u32 %v2894, %v2895
    %v2899 = vshrl.u32 %v2670, 16
    %v2901 = vrot.slane %v2899, 7
    %v2902 = vshll.u32 %v2670, 16
    %v2904 = vor.u32 %v2901, %v2902
    %v2969 = vsel %vm551, 0, %v2687
    %v2970 = vsel %vm551, 0, %v2694
    %v2971 = vsel %vm551, 0, %v2701
    %v2972 = vsel %vm551, 0, %v2708
    %v2973 = vsel %vm551, 0, %v2715
    %v2974 = vsel %vm551, 0, %v2722
    %v2975 = vsel %vm551, 0, %v2729
    %v2976 = vsel %vm551, 0, %v2736
    %v2977 = vsel %vm551, 0, %v2743
    %v2978 = vsel %vm551, 0, %v2750
    %v2979 = vsel %vm551, 0, %v2757
    %v2980 = vsel %vm551, 0, %v2764
    %v2981 = vsel %vm551, 0, %v2771
    %v2982 = vsel %vm551, 0, %v2778
    %v2983 = vsel %vm551, 0, %v2785
    %v2984 = vsel %vm551, 0, %v2792
    %v2985 = vsel %vm551, 0, %v2799
    %v2986 = vsel %vm551, 0, %v2806
    %v2987 = vsel %vm551, 0, %v2813
    %v2988 = vsel %vm551, 0, %v2820
    %v2989 = vsel %vm551, 0, %v2827
    %v2990 = vsel %vm551, 0, %v2834
    %v2991 = vsel %vm551, 0, %v2841
    %v2992 = vsel %vm551, 0, %v2848
    %v2993 = vsel %vm551, 0, %v2855
    %v2994 = vsel %vm551, 0, %v2862
    %v2995 = vsel %vm551, 0, %v2869
    %v2996 = vsel %vm551, 0, %v2876
    %v2997 = vsel %vm551, 0, %v2883
    %v2998 = vsel %vm551, 0, %v2890
    %v2999 = vsel %vm551, 0, %v2897
    %v3000 = vsel %vm551, 0, %v2904
    %v3001 = vsel %vm551, %v2684, 0
    %v3002 = vsel %vm551, %v2691, 0
    %v3003 = vsel %vm551, %v2698, 0
    %v3004 = vsel %vm551, %v2705, 0
    %v3005 = vsel %vm551, %v2712, 0
    %v3006 = vsel %vm551, %v2719, 0
    %v3007 = vsel %vm551, %v2726, 0
    %v3008 = vsel %vm551, %v2733, 0
    %v3009 = vsel %vm551, %v2740, 0
    %v3010 = vsel %vm551, %v2747, 0
    %v3011 = vsel %vm551, %v2754, 0
    %v3012 = vsel %vm551, %v2761, 0
    %v3013 = vsel %vm551, %v2768, 0
    %v3014 = vsel %vm551, %v2775, 0
    %v3015 = vsel %vm551, %v2782, 0
    %v3016 = vsel %vm551, %v2789, 0
    %v3017 = vsel %vm551, %v2796, 0
    %v3018 = vsel %vm551, %v2803, 0
    %v3019 = vsel %vm551, %v2810, 0
    %v3020 = vsel %vm551, %v2817, 0
    %v3021 = vsel %vm551, %v2824, 0
    %v3022 = vsel %vm551, %v2831, 0
    %v3023 = vsel %vm551, %v2838, 0
    %v3024 = vsel %vm551, %v2845, 0
    %v3025 = vsel %vm551, %v2852, 0
    %v3026 = vsel %vm551, %v2859, 0
    %v3027 = vsel %vm551, %v2866, 0
    %v3028 = vsel %vm551, %v2873, 0
    %v3029 = vsel %vm551, %v2880, 0
    %v3030 = vsel %vm551, %v2887, 0
    %v3031 = vsel %vm551, %v2894, 0
    %v3032 = vsel %vm551, %v2901, 0
    %v3034 = vshrl.u32 %v2969, 16
    %v3036 = vshll.u32 %v2969, 16
    %v3038 = vrot.slane %v3036, 1
    %v3039 = vor.u32 %v3034, %v3038
    %v3041 = vshll.u32 %v3001, 16
    %v3043 = vrot.slane %v3041, 1
    %v3044 = vsel %vm618, %v3039, %v3043
    %v3046 = vshrl.u32 %v2970, 16
    %v3048 = vshll.u32 %v2970, 16
    %v3050 = vrot.slane %v3048, 1
    %v3051 = vor.u32 %v3046, %v3050
    %v3053 = vshll.u32 %v3002, 16
    %v3055 = vrot.slane %v3053, 1
    %v3056 = vsel %vm618, %v3051, %v3055
    %v3058 = vshrl.u32 %v2971, 16
    %v3060 = vshll.u32 %v2971, 16
    %v3062 = vrot.slane %v3060, 1
    %v3063 = vor.u32 %v3058, %v3062
    %v3065 = vshll.u32 %v3003, 16
    %v3067 = vrot.slane %v3065, 1
    %v3068 = vsel %vm618, %v3063, %v3067
    %v3070 = vshrl.u32 %v2972, 16
    %v3072 = vshll.u32 %v2972, 16
    %v3074 = vrot.slane %v3072, 1
    %v3075 = vor.u32 %v3070, %v3074
    %v3077 = vshll.u32 %v3004, 16
    %v3079 = vrot.slane %v3077, 1
    %v3080 = vsel %vm618, %v3075, %v3079
    %v3082 = vshrl.u32 %v2973, 16
    %v3084 = vshll.u32 %v2973, 16
    %v3086 = vrot.slane %v3084, 1
    %v3087 = vor.u32 %v3082, %v3086
    %v3089 = vshll.u32 %v3005, 16
    %v3091 = vrot.slane %v3089, 1
    %v3092 = vsel %vm618, %v3087, %v3091
    %v3094 = vshrl.u32 %v2974, 16
    %v3096 = vshll.u32 %v2974, 16
    %v3098 = vrot.slane %v3096, 1
    %v3099 = vor.u32 %v3094, %v3098
    %v3101 = vshll.u32 %v3006, 16
    %v3103 = vrot.slane %v3101, 1
    %v3104 = vsel %vm618, %v3099, %v3103
    %v3106 = vshrl.u32 %v2975, 16
    %v3108 = vshll.u32 %v2975, 16
    %v3110 = vrot.slane %v3108, 1
    %v3111 = vor.u32 %v3106, %v3110
    %v3113 = vshll.u32 %v3007, 16
    %v3115 = vrot.slane %v3113, 1
    %v3116 = vsel %vm618, %v3111, %v3115
    %v3118 = vshrl.u32 %v2976, 16
    %v3120 = vshll.u32 %v2976, 16
    %v3122 = vrot.slane %v3120, 1
    %v3123 = vor.u32 %v3118, %v3122
    %v3125 = vshll.u32 %v3008, 16
    %v3127 = vrot.slane %v3125, 1
    %v3128 = vsel %vm618, %v3123, %v3127
    %v3130 = vshrl.u32 %v2977, 16
    %v3132 = vshll.u32 %v2977, 16
    %v3134 = vrot.slane %v3132, 1
    %v3135 = vor.u32 %v3130, %v3134
    %v3137 = vshll.u32 %v3009, 16
    %v3139 = vrot.slane %v3137, 1
    %v3140 = vsel %vm618, %v3135, %v3139
    %v3142 = vshrl.u32 %v2978, 16
    %v3144 = vshll.u32 %v2978, 16
    %v3146 = vrot.slane %v3144, 1
    %v3147 = vor.u32 %v3142, %v3146
    %v3149 = vshll.u32 %v3010, 16
    %v3151 = vrot.slane %v3149, 1
    %v3152 = vsel %vm618, %v3147, %v3151
    %v3154 = vshrl.u32 %v2979, 16
    %v3156 = vshll.u32 %v2979, 16
    %v3158 = vrot.slane %v3156, 1
    %v3159 = vor.u32 %v3154, %v3158
    %v3161 = vshll.u32 %v3011, 16
    %v3163 = vrot.slane %v3161, 1
    %v3164 = vsel %vm618, %v3159, %v3163
    %v3166 = vshrl.u32 %v2980, 16
    %v3168 = vshll.u32 %v2980, 16
    %v3170 = vrot.slane %v3168, 1
    %v3171 = vor.u32 %v3166, %v3170
    %v3173 = vshll.u32 %v3012, 16
    %v3175 = vrot.slane %v3173, 1
    %v3176 = vsel %vm618, %v3171, %v3175
    %v3178 = vshrl.u32 %v2981, 16
    %v3180 = vshll.u32 %v2981, 16
    %v3182 = vrot.slane %v3180, 1
    %v3183 = vor.u32 %v3178, %v3182
    %v3185 = vshll.u32 %v3013, 16
    %v3187 = vrot.slane %v3185, 1
    %v3188 = vsel %vm618, %v3183, %v3187
    %v3190 = vshrl.u32 %v2982, 16
    %v3192 = vshll.u32 %v2982, 16
    %v3194 = vrot.slane %v3192, 1
    %v3195 = vor.u32 %v3190, %v3194
    %v3197 = vshll.u32 %v3014, 16
    %v3199 = vrot.slane %v3197, 1
    %v3200 = vsel %vm618, %v3195, %v3199
    %v3202 = vshrl.u32 %v2983, 16
    %v3204 = vshll.u32 %v2983, 16
    %v3206 = vrot.slane %v3204, 1
    %v3207 = vor.u32 %v3202, %v3206
    %v3209 = vshll.u32 %v3015, 16
    %v3211 = vrot.slane %v3209, 1
    %v3212 = vsel %vm618, %v3207, %v3211
    %v3214 = vshrl.u32 %v2985, 16
    %v3216 = vshll.u32 %v2985, 16
    %v3218 = vrot.slane %v3216, 1
    %v3219 = vor.u32 %v3214, %v3218
    %v3221 = vshll.u32 %v3017, 16
    %v3223 = vrot.slane %v3221, 1
    %v3224 = vsel %vm618, %v3219, %v3223
    %v3226 = vshrl.u32 %v2986, 16
    %v3228 = vshll.u32 %v2986, 16
    %v3230 = vrot.slane %v3228, 1
    %v3231 = vor.u32 %v3226, %v3230
    %v3233 = vshll.u32 %v3018, 16
    %v3235 = vrot.slane %v3233, 1
    %v3236 = vsel %vm618, %v3231, %v3235
    %v3238 = vshrl.u32 %v2987, 16
    %v3240 = vshll.u32 %v2987, 16
    %v3242 = vrot.slane %v3240, 1
    %v3243 = vor.u32 %v3238, %v3242
    %v3245 = vshll.u32 %v3019, 16
    %v3247 = vrot.slane %v3245, 1
    %v3248 = vsel %vm618, %v3243, %v3247
    %v3250 = vshrl.u32 %v2988, 16
    %v3252 = vshll.u32 %v2988, 16
    %v3254 = vrot.slane %v3252, 1
    %v3255 = vor.u32 %v3250, %v3254
    %v3257 = vshll.u32 %v3020, 16
    %v3259 = vrot.slane %v3257, 1
    %v3260 = vsel %vm618, %v3255, %v3259
    %v3262 = vshrl.u32 %v2989, 16
    %v3264 = vshll.u32 %v2989, 16
    %v3266 = vrot.slane %v3264, 1
    %v3267 = vor.u32 %v3262, %v3266
    %v3269 = vshll.u32 %v3021, 16
    %v3271 = vrot.slane %v3269, 1
    %v3272 = vsel %vm618, %v3267, %v3271
    %v3274 = vshrl.u32 %v2990, 16
    %v3276 = vshll.u32 %v2990, 16
    %v3278 = vrot.slane %v3276, 1
    %v3279 = vor.u32 %v3274, %v3278
    %v3281 = vshll.u32 %v3022, 16
    %v3283 = vrot.slane %v3281, 1
    %v3284 = vsel %vm618, %v3279, %v3283
    %v3286 = vshrl.u32 %v2991, 16
    %v3288 = vshll.u32 %v2991, 16
    %v3290 = vrot.slane %v3288, 1
    %v3291 = vor.u32 %v3286, %v3290
    %v3293 = vshll.u32 %v3023, 16
    %v3295 = vrot.slane %v3293, 1
    %v3296 = vsel %vm618, %v3291, %v3295
    %v3298 = vshrl.u32 %v2992, 16
    %v3300 = vshll.u32 %v2992, 16
    %v3302 = vrot.slane %v3300, 1
    %v3303 = vor.u32 %v3298, %v3302
    %v3305 = vshll.u32 %v3024, 16
    %v3307 = vrot.slane %v3305, 1
    %v3308 = vsel %vm618, %v3303, %v3307
    %v3310 = vshrl.u32 %v2993, 16
    %v3312 = vshll.u32 %v2993, 16
    %v3314 = vrot.slane %v3312, 1
    %v3315 = vor.u32 %v3310, %v3314
    %v3317 = vshll.u32 %v3025, 16
    %v3319 = vrot.slane %v3317, 1
    %v3320 = vsel %vm618, %v3315, %v3319
    %v3322 = vshrl.u32 %v2994, 16
    %v3324 = vshll.u32 %v2994, 16
    %v3326 = vrot.slane %v3324, 1
    %v3327 = vor.u32 %v3322, %v3326
    %v3329 = vshll.u32 %v3026, 16
    %v3331 = vrot.slane %v3329, 1
    %v3332 = vsel %vm618, %v3327, %v3331
    %v3334 = vshrl.u32 %v2995, 16
    %v3336 = vshll.u32 %v2995, 16
    %v3338 = vrot.slane %v3336, 1
    %v3339 = vor.u32 %v3334, %v3338
    %v3341 = vshll.u32 %v3027, 16
    %v3343 = vrot.slane %v3341, 1
    %v3344 = vsel %vm618, %v3339, %v3343
    %v3346 = vshrl.u32 %v2996, 16
    %v3348 = vshll.u32 %v2996, 16
    %v3350 = vrot.slane %v3348, 1
    %v3351 = vor.u32 %v3346, %v3350
    %v3353 = vshll.u32 %v3028, 16
    %v3355 = vrot.slane %v3353, 1
    %v3356 = vsel %vm618, %v3351, %v3355
    %v3358 = vshrl.u32 %v2997, 16
    %v3360 = vshll.u32 %v2997, 16
    %v3362 = vrot.slane %v3360, 1
    %v3363 = vor.u32 %v3358, %v3362
    %v3365 = vshll.u32 %v3029, 16
    %v3367 = vrot.slane %v3365, 1
    %v3368 = vsel %vm618, %v3363, %v3367
    %v3370 = vshrl.u32 %v2998, 16
    %v3372 = vshll.u32 %v2998, 16
    %v3374 = vrot.slane %v3372, 1
    %v3375 = vor.u32 %v3370, %v3374
    %v3377 = vshll.u32 %v3030, 16
    %v3379 = vrot.slane %v3377, 1
    %v3380 = vsel %vm618, %v3375, %v3379
    %v3382 = vshrl.u32 %v2999, 16
    %v3384 = vshll.u32 %v2999, 16
    %v3386 = vrot.slane %v3384, 1
    %v3387 = vor.u32 %v3382, %v3386
    %v3389 = vshll.u32 %v3031, 16
    %v3391 = vrot.slane %v3389, 1
    %v3392 = vsel %vm618, %v3387, %v3391
    %v3453 = vrot.slane %v2969, 1
    %v3454 = vrot.slane %v3001, 1
    %v3455 = vsel %vm1053, %v3453, %v3454
    %v3456 = vrot.slane %v2970, 1
    %v3457 = vrot.slane %v3002, 1
    %v3458 = vsel %vm1053, %v3456, %v3457
    %v3459 = vrot.slane %v2971, 1
    %v3460 = vrot.slane %v3003, 1
    %v3461 = vsel %vm1053, %v3459, %v3460
    %v3462 = vrot.slane %v2972, 1
    %v3463 = vrot.slane %v3004, 1
    %v3464 = vsel %vm1053, %v3462, %v3463
    %v3465 = vrot.slane %v2973, 1
    %v3466 = vrot.slane %v3005, 1
    %v3467 = vsel %vm1053, %v3465, %v3466
    %v3468 = vrot.slane %v2974, 1
    %v3469 = vrot.slane %v3006, 1
    %v3470 = vsel %vm1053, %v3468, %v3469
    %v3471 = vrot.slane %v2975, 1
    %v3472 = vrot.slane %v3007, 1
    %v3473 = vsel %vm1053, %v3471, %v3472
    %v3474 = vrot.slane %v2976, 1
    %v3475 = vrot.slane %v3008, 1
    %v3476 = vsel %vm1053, %v3474, %v3475
    %v3477 = vrot.slane %v2977, 1
    %v3478 = vrot.slane %v3009, 1
    %v3479 = vsel %vm1053, %v3477, %v3478
    %v3480 = vrot.slane %v2978, 1
    %v3481 = vrot.slane %v3010, 1
    %v3482 = vsel %vm1053, %v3480, %v3481
    %v3483 = vrot.slane %v2979, 1
    %v3484 = vrot.slane %v3011, 1
    %v3485 = vsel %vm1053, %v3483, %v3484
    %v3486 = vrot.slane %v2980, 1
    %v3487 = vrot.slane %v3012, 1
    %v3488 = vsel %vm1053, %v3486, %v3487
    %v3489 = vrot.slane %v2981, 1
    %v3490 = vrot.slane %v3013, 1
    %v3491 = vsel %vm1053, %v3489, %v3490
    %v3492 = vrot.slane %v2982, 1
    %v3493 = vrot.slane %v3014, 1
    %v3494 = vsel %vm1053, %v3492, %v3493
    %v3495 = vrot.slane %v2983, 1
    %v3496 = vrot.slane %v3015, 1
    %v3497 = vsel %vm1053, %v3495, %v3496
    %v3498 = vrot.slane %v2985, 1
    %v3499 = vrot.slane %v3017, 1
    %v3500 = vsel %vm1053, %v3498, %v3499
    %v3501 = vrot.slane %v2986, 1
    %v3502 = vrot.slane %v3018, 1
    %v3503 = vsel %vm1053, %v3501, %v3502
    %v3504 = vrot.slane %v2987, 1
    %v3505 = vrot.slane %v3019, 1
    %v3506 = vsel %vm1053, %v3504, %v3505
    %v3507 = vrot.slane %v2988, 1
    %v3508 = vrot.slane %v3020, 1
    %v3509 = vsel %vm1053, %v3507, %v3508
    %v3510 = vrot.slane %v2989, 1
    %v3511 = vrot.slane %v3021, 1
    %v3512 = vsel %vm1053, %v3510, %v3511
    %v3513 = vrot.slane %v2990, 1
    %v3514 = vrot.slane %v3022, 1
    %v3515 = vsel %vm1053, %v3513, %v3514
    %v3516 = vrot.slane %v2991, 1
    %v3517 = vrot.slane %v3023, 1
    %v3518 = vsel %vm1053, %v3516, %v3517
    %v3519 = vrot.slane %v2992, 1
    %v3520 = vrot.slane %v3024, 1
    %v3521 = vsel %vm1053, %v3519, %v3520
    %v3522 = vrot.slane %v2993, 1
    %v3523 = vrot.slane %v3025, 1
    %v3524 = vsel %vm1053, %v3522, %v3523
    %v3525 = vrot.slane %v2994, 1
    %v3526 = vrot.slane %v3026, 1
    %v3527 = vsel %vm1053, %v3525, %v3526
    %v3528 = vrot.slane %v2995, 1
    %v3529 = vrot.slane %v3027, 1
    %v3530 = vsel %vm1053, %v3528, %v3529
    %v3531 = vrot.slane %v2996, 1
    %v3532 = vrot.slane %v3028, 1
    %v3533 = vsel %vm1053, %v3531, %v3532
    %v3534 = vrot.slane %v2997, 1
    %v3535 = vrot.slane %v3029, 1
    %v3536 = vsel %vm1053, %v3534, %v3535
    %v3537 = vrot.slane %v2998, 1
    %v3538 = vrot.slane %v3030, 1
    %v3539 = vsel %vm1053, %v3537, %v3538
    %v3540 = vrot.slane %v2999, 1
    %v3541 = vrot.slane %v3031, 1
    %v3542 = vsel %vm1053, %v3540, %v3541
    %v3544 = vshrl.u32 %v2984, 16
    %v3546 = vshll.u32 %v2984, 16
    %v3548 = vrot.slane %v3546, 1
    %v3549 = vor.u32 %v3544, %v3548
    %v3551 = vshll.u32 %v3016, 16
    %v3553 = vrot.slane %v3551, 1
    %v3554 = vsel %vm618, %v3549, %v3553
    %v3556 = vshrl.u32 %v3000, 16
    %v3558 = vshll.u32 %v3000, 16
    %v3560 = vrot.slane %v3558, 1
    %v3561 = vor.u32 %v3556, %v3560
    %v3563 = vshll.u32 %v3032, 16
    %v3565 = vrot.slane %v3563, 1
    %v3566 = vsel %vm618, %v3561, %v3565
    %v3571 = vrot.slane %v2984, 1
    %v3572 = vrot.slane %v3016, 1
    %v3573 = vsel %vm1053, %v3571, %v3572
    %v3574 = vrot.slane %v3000, 1
    %v3575 = vrot.slane %v3032, 1
    %v3576 = vsel %vm1053, %v3574, %v3575
    %3577 = vrot.lane.b32.xlu0 %v630, 8
    %v3578 = vpop.permute.xlu0 %3577
    %3579 = vrot.lane.b32.xlu0 %v3044, 8
    %v3580 = vpop.permute.xlu0 %3579
    %3581 = vrot.lane.b32.xlu0 %v3056, 8
    %v3582 = vpop.permute.xlu0 %3581
    %3583 = vrot.lane.b32.xlu0 %v3068, 8
    %v3584 = vpop.permute.xlu0 %3583
    %3585 = vrot.lane.b32.xlu0 %v3080, 8
    %v3586 = vpop.permute.xlu0 %3585
    %3587 = vrot.lane.b32.xlu0 %v3092, 8
    %v3588 = vpop.permute.xlu0 %3587
    %3589 = vrot.lane.b32.xlu0 %v3104, 8
    %v3590 = vpop.permute.xlu0 %3589
    %3591 = vrot.lane.b32.xlu0 %v3116, 8
    %v3592 = vpop.permute.xlu0 %3591
    %3593 = vrot.lane.b32.xlu0 %v3128, 8
    %v3594 = vpop.permute.xlu0 %3593
    %3595 = vrot.lane.b32.xlu0 %v3140, 8
    %v3596 = vpop.permute.xlu0 %3595
    %3597 = vrot.lane.b32.xlu0 %v3152, 8
    %v3598 = vpop.permute.xlu0 %3597
    %3599 = vrot.lane.b32.xlu0 %v3164, 8
    %v3600 = vpop.permute.xlu0 %3599
    %3601 = vrot.lane.b32.xlu0 %v3176, 8
    %v3602 = vpop.permute.xlu0 %3601
    %3603 = vrot.lane.b32.xlu0 %v3188, 8
    %v3604 = vpop.permute.xlu0 %3603
    %3605 = vrot.lane.b32.xlu0 %v3200, 8
    %v3606 = vpop.permute.xlu0 %3605
    %3607 = vrot.lane.b32.xlu0 %v3212, 8
    %v3608 = vpop.permute.xlu0 %3607
    %3609 = vrot.lane.b32.xlu0 %v3224, 8
    %v3610 = vpop.permute.xlu0 %3609
    %3611 = vrot.lane.b32.xlu0 %v3236, 8
    %v3612 = vpop.permute.xlu0 %3611
    %3613 = vrot.lane.b32.xlu0 %v3248, 8
    %v3614 = vpop.permute.xlu0 %3613
    %3615 = vrot.lane.b32.xlu0 %v3260, 8
    %v3616 = vpop.permute.xlu0 %3615
    %3617 = vrot.lane.b32.xlu0 %v3272, 8
    %v3618 = vpop.permute.xlu0 %3617
    %3619 = vrot.lane.b32.xlu0 %v3284, 8
    %v3620 = vpop.permute.xlu0 %3619
    %3621 = vrot.lane.b32.xlu0 %v3296, 8
    %v3622 = vpop.permute.xlu0 %3621
    %3623 = vrot.lane.b32.xlu0 %v3308, 8
    %v3624 = vpop.permute.xlu0 %3623
    %3625 = vrot.lane.b32.xlu0 %v3320, 8
    %v3626 = vpop.permute.xlu0 %3625
    %3627 = vrot.lane.b32.xlu0 %v3332, 8
    %v3628 = vpop.permute.xlu0 %3627
    %3629 = vrot.lane.b32.xlu0 %v3344, 8
    %v3630 = vpop.permute.xlu0 %3629
    %3631 = vrot.lane.b32.xlu0 %v3356, 8
    %v3632 = vpop.permute.xlu0 %3631
    %3633 = vrot.lane.b32.xlu0 %v3368, 8
    %v3634 = vpop.permute.xlu0 %3633
    %3635 = vrot.lane.b32.xlu0 %v3380, 8
    %v3636 = vpop.permute.xlu0 %3635
    %3637 = vrot.lane.b32.xlu0 %v3392, 8
    %v3638 = vpop.permute.xlu0 %3637
    %3639 = vrot.lane.b32.xlu0 %v1056, 16
    %v3640 = vpop.permute.xlu0 %3639
    %3641 = vrot.lane.b32.xlu0 %v3455, 16
    %v3642 = vpop.permute.xlu0 %3641
    %3643 = vrot.lane.b32.xlu0 %v3458, 16
    %v3644 = vpop.permute.xlu0 %3643
    %3645 = vrot.lane.b32.xlu0 %v3461, 16
    %v3646 = vpop.permute.xlu0 %3645
    %3647 = vrot.lane.b32.xlu0 %v3464, 16
    %v3648 = vpop.permute.xlu0 %3647
    %3649 = vrot.lane.b32.xlu0 %v3467, 16
    %v3650 = vpop.permute.xlu0 %3649
    %3651 = vrot.lane.b32.xlu0 %v3470, 16
    %v3652 = vpop.permute.xlu0 %3651
    %3653 = vrot.lane.b32.xlu0 %v3473, 16
    %v3654 = vpop.permute.xlu0 %3653
    %3655 = vrot.lane.b32.xlu0 %v3476, 16
    %v3656 = vpop.permute.xlu0 %3655
    %3657 = vrot.lane.b32.xlu0 %v3479, 16
    %v3658 = vpop.permute.xlu0 %3657
    %3659 = vrot.lane.b32.xlu0 %v3482, 16
    %v3660 = vpop.permute.xlu0 %3659
    %3661 = vrot.lane.b32.xlu0 %v3485, 16
    %v3662 = vpop.permute.xlu0 %3661
    %3663 = vrot.lane.b32.xlu0 %v3488, 16
    %v3664 = vpop.permute.xlu0 %3663
    %3665 = vrot.lane.b32.xlu0 %v3491, 16
    %v3666 = vpop.permute.xlu0 %3665
    %3667 = vrot.lane.b32.xlu0 %v3494, 16
    %v3668 = vpop.permute.xlu0 %3667
    %3669 = vrot.lane.b32.xlu0 %v3497, 16
    %v3670 = vpop.permute.xlu0 %3669
    %3671 = vrot.lane.b32.xlu0 %v3500, 16
    %v3672 = vpop.permute.xlu0 %3671
    %3673 = vrot.lane.b32.xlu0 %v3503, 16
    %v3674 = vpop.permute.xlu0 %3673
    %3675 = vrot.lane.b32.xlu0 %v3506, 16
    %v3676 = vpop.permute.xlu0 %3675
    %3677 = vrot.lane.b32.xlu0 %v3509, 16
    %v3678 = vpop.permute.xlu0 %3677
    %3679 = vrot.lane.b32.xlu0 %v3512, 16
    %v3680 = vpop.permute.xlu0 %3679
    %3681 = vrot.lane.b32.xlu0 %v3515, 16
    %v3682 = vpop.permute.xlu0 %3681
    %3683 = vrot.lane.b32.xlu0 %v3518, 16
    %v3684 = vpop.permute.xlu0 %3683
    %3685 = vrot.lane.b32.xlu0 %v3521, 16
    %v3686 = vpop.permute.xlu0 %3685
    %3687 = vrot.lane.b32.xlu0 %v3524, 16
    %v3688 = vpop.permute.xlu0 %3687
    %3689 = vrot.lane.b32.xlu0 %v3527, 16
    %v3690 = vpop.permute.xlu0 %3689
    %3691 = vrot.lane.b32.xlu0 %v3530, 16
    %v3692 = vpop.permute.xlu0 %3691
    %3693 = vrot.lane.b32.xlu0 %v3533, 16
    %v3694 = vpop.permute.xlu0 %3693
    %3695 = vrot.lane.b32.xlu0 %v3536, 16
    %v3696 = vpop.permute.xlu0 %3695
    %3697 = vrot.lane.b32.xlu0 %v3539, 16
    %v3698 = vpop.permute.xlu0 %3697
    %3699 = vrot.lane.b32.xlu0 %v3542, 16
    %v3700 = vpop.permute.xlu0 %3699
    %3701 = vrot.lane.b32.xlu0 %v2969, 24
    %v3702 = vpop.permute.xlu0 %3701
    %3703 = vrot.lane.b32.xlu0 %v2970, 24
    %v3704 = vpop.permute.xlu0 %3703
    %3705 = vrot.lane.b32.xlu0 %v2971, 24
    %v3706 = vpop.permute.xlu0 %3705
    %3707 = vrot.lane.b32.xlu0 %v2972, 24
    %v3708 = vpop.permute.xlu0 %3707
    %3709 = vrot.lane.b32.xlu0 %v2973, 24
    %v3710 = vpop.permute.xlu0 %3709
    %3711 = vrot.lane.b32.xlu0 %v2974, 24
    %v3712 = vpop.permute.xlu0 %3711
    %3713 = vrot.lane.b32.xlu0 %v2975, 24
    %v3714 = vpop.permute.xlu0 %3713
    %3715 = vrot.lane.b32.xlu0 %v2976, 24
    %v3716 = vpop.permute.xlu0 %3715
    %3717 = vrot.lane.b32.xlu0 %v2977, 24
    %v3718 = vpop.permute.xlu0 %3717
    %3719 = vrot.lane.b32.xlu0 %v2978, 24
    %v3720 = vpop.permute.xlu0 %3719
    %3721 = vrot.lane.b32.xlu0 %v2979, 24
    %v3722 = vpop.permute.xlu0 %3721
    %3723 = vrot.lane.b32.xlu0 %v2980, 24
    %v3724 = vpop.permute.xlu0 %3723
    %3725 = vrot.lane.b32.xlu0 %v2981, 24
    %v3726 = vpop.permute.xlu0 %3725
    %3727 = vrot.lane.b32.xlu0 %v2982, 24
    %v3728 = vpop.permute.xlu0 %3727
    %3729 = vrot.lane.b32.xlu0 %v2983, 24
    %v3730 = vpop.permute.xlu0 %3729
    %3731 = vrot.lane.b32.xlu0 %v2984, 24
    %v3732 = vpop.permute.xlu0 %3731
    %3733 = vrot.lane.b32.xlu0 %v2985, 24
    %v3734 = vpop.permute.xlu0 %3733
    %3735 = vrot.lane.b32.xlu0 %v2986, 24
    %v3736 = vpop.permute.xlu0 %3735
    %3737 = vrot.lane.b32.xlu0 %v2987, 24
    %v3738 = vpop.permute.xlu0 %3737
    %3739 = vrot.lane.b32.xlu0 %v2988, 24
    %v3740 = vpop.permute.xlu0 %3739
    %3741 = vrot.lane.b32.xlu0 %v2989, 24
    %v3742 = vpop.permute.xlu0 %3741
    %3743 = vrot.lane.b32.xlu0 %v2990, 24
    %v3744 = vpop.permute.xlu0 %3743
    %3745 = vrot.lane.b32.xlu0 %v2991, 24
    %v3746 = vpop.permute.xlu0 %3745
    %3747 = vrot.lane.b32.xlu0 %v2992, 24
    %v3748 = vpop.permute.xlu0 %3747
    %3749 = vrot.lane.b32.xlu0 %v2993, 24
    %v3750 = vpop.permute.xlu0 %3749
    %3751 = vrot.lane.b32.xlu0 %v2994, 24
    %v3752 = vpop.permute.xlu0 %3751
    %3753 = vrot.lane.b32.xlu0 %v2995, 24
    %v3754 = vpop.permute.xlu0 %3753
    %3755 = vrot.lane.b32.xlu0 %v2996, 24
    %v3756 = vpop.permute.xlu0 %3755
    %3757 = vrot.lane.b32.xlu0 %v2997, 24
    %v3758 = vpop.permute.xlu0 %3757
    %3759 = vrot.lane.b32.xlu0 %v2998, 24
    %v3760 = vpop.permute.xlu0 %3759
    %3761 = vrot.lane.b32.xlu0 %v2999, 24
    %v3762 = vpop.permute.xlu0 %3761
    %3763 = vrot.lane.b32.xlu0 %v3000, 24
    %v3764 = vpop.permute.xlu0 %3763
    %3765 = vrot.lane.b32.xlu0 %v3044, 32
    %v3766 = vpop.permute.xlu0 %3765
    %3767 = vrot.lane.b32.xlu0 %v3056, 32
    %v3768 = vpop.permute.xlu0 %3767
    %3769 = vrot.lane.b32.xlu0 %v3068, 32
    %v3770 = vpop.permute.xlu0 %3769
    %3771 = vrot.lane.b32.xlu0 %v3080, 32
    %v3772 = vpop.permute.xlu0 %3771
    %3773 = vrot.lane.b32.xlu0 %v3092, 32
    %v3774 = vpop.permute.xlu0 %3773
    %3775 = vrot.lane.b32.xlu0 %v3104, 32
    %v3776 = vpop.permute.xlu0 %3775
    %3777 = vrot.lane.b32.xlu0 %v3116, 32
    %v3778 = vpop.permute.xlu0 %3777
    %3779 = vrot.lane.b32.xlu0 %v3128, 32
    %v3780 = vpop.permute.xlu0 %3779
    %3781 = vrot.lane.b32.xlu0 %v3140, 32
    %v3782 = vpop.permute.xlu0 %3781
    %3783 = vrot.lane.b32.xlu0 %v3152, 32
    %v3784 = vpop.permute.xlu0 %3783
    %3785 = vrot.lane.b32.xlu0 %v3164, 32
    %v3786 = vpop.permute.xlu0 %3785
    %3787 = vrot.lane.b32.xlu0 %v3176, 32
    %v3788 = vpop.permute.xlu0 %3787
    %3789 = vrot.lane.b32.xlu0 %v3188, 32
    %v3790 = vpop.permute.xlu0 %3789
    %3791 = vrot.lane.b32.xlu0 %v3200, 32
    %v3792 = vpop.permute.xlu0 %3791
    %3793 = vrot.lane.b32.xlu0 %v3212, 32
    %v3794 = vpop.permute.xlu0 %3793
    %3795 = vrot.lane.b32.xlu0 %v3554, 32
    %v3796 = vpop.permute.xlu0 %3795
    %3797 = vrot.lane.b32.xlu0 %v3224, 32
    %v3798 = vpop.permute.xlu0 %3797
    %3799 = vrot.lane.b32.xlu0 %v3236, 32
    %v3800 = vpop.permute.xlu0 %3799
    %3801 = vrot.lane.b32.xlu0 %v3248, 32
    %v3802 = vpop.permute.xlu0 %3801
    %3803 = vrot.lane.b32.xlu0 %v3260, 32
    %v3804 = vpop.permute.xlu0 %3803
    %3805 = vrot.lane.b32.xlu0 %v3272, 32
    %v3806 = vpop.permute.xlu0 %3805
    %3807 = vrot.lane.b32.xlu0 %v3284, 32
    %v3808 = vpop.permute.xlu0 %3807
    %3809 = vrot.lane.b32.xlu0 %v3296, 32
    %v3810 = vpop.permute.xlu0 %3809
    %3811 = vrot.lane.b32.xlu0 %v3308, 32
    %v3812 = vpop.permute.xlu0 %3811
    %3813 = vrot.lane.b32.xlu0 %v3320, 32
    %v3814 = vpop.permute.xlu0 %3813
    %3815 = vrot.lane.b32.xlu0 %v3332, 32
    %v3816 = vpop.permute.xlu0 %3815
    %3817 = vrot.lane.b32.xlu0 %v3344, 32
    %v3818 = vpop.permute.xlu0 %3817
    %3819 = vrot.lane.b32.xlu0 %v3356, 32
    %v3820 = vpop.permute.xlu0 %3819
    %3821 = vrot.lane.b32.xlu0 %v3368, 32
    %v3822 = vpop.permute.xlu0 %3821
    %3823 = vrot.lane.b32.xlu0 %v3380, 32
    %v3824 = vpop.permute.xlu0 %3823
    %3825 = vrot.lane.b32.xlu0 %v3392, 32
    %v3826 = vpop.permute.xlu0 %3825
    %3827 = vrot.lane.b32.xlu0 %v3566, 32
    %v3828 = vpop.permute.xlu0 %3827
    %3829 = vrot.lane.b32.xlu0 %v3455, 40
    %v3830 = vpop.permute.xlu0 %3829
    %3831 = vrot.lane.b32.xlu0 %v3458, 40
    %v3832 = vpop.permute.xlu0 %3831
    %3833 = vrot.lane.b32.xlu0 %v3461, 40
    %v3834 = vpop.permute.xlu0 %3833
    %3835 = vrot.lane.b32.xlu0 %v3464, 40
    %v3836 = vpop.permute.xlu0 %3835
    %3837 = vrot.lane.b32.xlu0 %v3467, 40
    %v3838 = vpop.permute.xlu0 %3837
    %3839 = vrot.lane.b32.xlu0 %v3470, 40
    %v3840 = vpop.permute.xlu0 %3839
    %3841 = vrot.lane.b32.xlu0 %v3473, 40
    %v3842 = vpop.permute.xlu0 %3841
    %3843 = vrot.lane.b32.xlu0 %v3476, 40
    %v3844 = vpop.permute.xlu0 %3843
    %3845 = vrot.lane.b32.xlu0 %v3479, 40
    %v3846 = vpop.permute.xlu0 %3845
    %3847 = vrot.lane.b32.xlu0 %v3482, 40
    %v3848 = vpop.permute.xlu0 %3847
    %3849 = vrot.lane.b32.xlu0 %v3485, 40
    %v3850 = vpop.permute.xlu0 %3849
    %3851 = vrot.lane.b32.xlu0 %v3488, 40
    %v3852 = vpop.permute.xlu0 %3851
    %3853 = vrot.lane.b32.xlu0 %v3491, 40
    %v3854 = vpop.permute.xlu0 %3853
    %3855 = vrot.lane.b32.xlu0 %v3494, 40
    %v3856 = vpop.permute.xlu0 %3855
    %3857 = vrot.lane.b32.xlu0 %v3497, 40
    %v3858 = vpop.permute.xlu0 %3857
    %3859 = vrot.lane.b32.xlu0 %v3573, 40
    %v3860 = vpop.permute.xlu0 %3859
    %3861 = vrot.lane.b32.xlu0 %v3500, 40
    %v3862 = vpop.permute.xlu0 %3861
    %3863 = vrot.lane.b32.xlu0 %v3503, 40
    %v3864 = vpop.permute.xlu0 %3863
    %3865 = vrot.lane.b32.xlu0 %v3506, 40
    %v3866 = vpop.permute.xlu0 %3865
    %3867 = vrot.lane.b32.xlu0 %v3509, 40
    %v3868 = vpop.permute.xlu0 %3867
    %3869 = vrot.lane.b32.xlu0 %v3512, 40
    %v3870 = vpop.permute.xlu0 %3869
    %3871 = vrot.lane.b32.xlu0 %v3515, 40
    %v3872 = vpop.permute.xlu0 %3871
    %3873 = vrot.lane.b32.xlu0 %v3518, 40
    %v3874 = vpop.permute.xlu0 %3873
    %3875 = vrot.lane.b32.xlu0 %v3521, 40
    %v3876 = vpop.permute.xlu0 %3875
    %3877 = vrot.lane.b32.xlu0 %v3524, 40
    %v3878 = vpop.permute.xlu0 %3877
    %3879 = vrot.lane.b32.xlu0 %v3527, 40
    %v3880 = vpop.permute.xlu0 %3879
    %3881 = vrot.lane.b32.xlu0 %v3530, 40
    %v3882 = vpop.permute.xlu0 %3881
    %3883 = vrot.lane.b32.xlu0 %v3533, 40
    %v3884 = vpop.permute.xlu0 %3883
    %3885 = vrot.lane.b32.xlu0 %v3536, 40
    %v3886 = vpop.permute.xlu0 %3885
    %3887 = vrot.lane.b32.xlu0 %v3539, 40
    %v3888 = vpop.permute.xlu0 %3887
    %3889 = vrot.lane.b32.xlu0 %v3542, 40
    %v3890 = vpop.permute.xlu0 %3889
    %3891 = vrot.lane.b32.xlu0 %v3576, 40
    %v3892 = vpop.permute.xlu0 %3891
    %3893 = vrot.lane.b32.xlu0 %v2970, 48
    %v3894 = vpop.permute.xlu0 %3893
    %3895 = vrot.lane.b32.xlu0 %v2971, 48
    %v3896 = vpop.permute.xlu0 %3895
    %3897 = vrot.lane.b32.xlu0 %v2972, 48
    %v3898 = vpop.permute.xlu0 %3897
    %3899 = vrot.lane.b32.xlu0 %v2973, 48
    %v3900 = vpop.permute.xlu0 %3899
    %3901 = vrot.lane.b32.xlu0 %v2974, 48
    %v3902 = vpop.permute.xlu0 %3901
    %3903 = vrot.lane.b32.xlu0 %v2975, 48
    %v3904 = vpop.permute.xlu0 %3903
    %3905 = vrot.lane.b32.xlu0 %v2976, 48
    %v3906 = vpop.permute.xlu0 %3905
    %3907 = vrot.lane.b32.xlu0 %v2977, 48
    %v3908 = vpop.permute.xlu0 %3907
    %3909 = vrot.lane.b32.xlu0 %v2978, 48
    %v3910 = vpop.permute.xlu0 %3909
    %3911 = vrot.lane.b32.xlu0 %v2979, 48
    %v3912 = vpop.permute.xlu0 %3911
    %3913 = vrot.lane.b32.xlu0 %v2980, 48
    %v3914 = vpop.permute.xlu0 %3913
    %3915 = vrot.lane.b32.xlu0 %v2981, 48
    %v3916 = vpop.permute.xlu0 %3915
    %3917 = vrot.lane.b32.xlu0 %v2982, 48
    %v3918 = vpop.permute.xlu0 %3917
    %3919 = vrot.lane.b32.xlu0 %v2983, 48
    %v3920 = vpop.permute.xlu0 %3919
    %3921 = vrot.lane.b32.xlu0 %v2984, 48
    %v3922 = vpop.permute.xlu0 %3921
    %3923 = vrot.lane.b32.xlu0 %v552, 48
    %v3924 = vpop.permute.xlu0 %3923
    %3925 = vrot.lane.b32.xlu0 %v2986, 48
    %v3926 = vpop.permute.xlu0 %3925
    %3927 = vrot.lane.b32.xlu0 %v2987, 48
    %v3928 = vpop.permute.xlu0 %3927
    %3929 = vrot.lane.b32.xlu0 %v2988, 48
    %v3930 = vpop.permute.xlu0 %3929
    %3931 = vrot.lane.b32.xlu0 %v2989, 48
    %v3932 = vpop.permute.xlu0 %3931
    %3933 = vrot.lane.b32.xlu0 %v2990, 48
    %v3934 = vpop.permute.xlu0 %3933
    %3935 = vrot.lane.b32.xlu0 %v2991, 48
    %v3936 = vpop.permute.xlu0 %3935
    %3937 = vrot.lane.b32.xlu0 %v2992, 48
    %v3938 = vpop.permute.xlu0 %3937
    %3939 = vrot.lane.b32.xlu0 %v2993, 48
    %v3940 = vpop.permute.xlu0 %3939
    %3941 = vrot.lane.b32.xlu0 %v2994, 48
    %v3942 = vpop.permute.xlu0 %3941
    %3943 = vrot.lane.b32.xlu0 %v2995, 48
    %v3944 = vpop.permute.xlu0 %3943
    %3945 = vrot.lane.b32.xlu0 %v2996, 48
    %v3946 = vpop.permute.xlu0 %3945
    %3947 = vrot.lane.b32.xlu0 %v2997, 48
    %v3948 = vpop.permute.xlu0 %3947
    %3949 = vrot.lane.b32.xlu0 %v2998, 48
    %v3950 = vpop.permute.xlu0 %3949
    %3951 = vrot.lane.b32.xlu0 %v2999, 48
    %v3952 = vpop.permute.xlu0 %3951
    %3953 = vrot.lane.b32.xlu0 %v3000, 48
    %v3954 = vpop.permute.xlu0 %3953
    %3955 = vrot.lane.b32.xlu0 %v3056, 56
    %v3956 = vpop.permute.xlu0 %3955
    %3957 = vrot.lane.b32.xlu0 %v3068, 56
    %v3958 = vpop.permute.xlu0 %3957
    %3959 = vrot.lane.b32.xlu0 %v3080, 56
    %v3960 = vpop.permute.xlu0 %3959
    %3961 = vrot.lane.b32.xlu0 %v3092, 56
    %v3962 = vpop.permute.xlu0 %3961
    %3963 = vrot.lane.b32.xlu0 %v3104, 56
    %v3964 = vpop.permute.xlu0 %3963
    %3965 = vrot.lane.b32.xlu0 %v3116, 56
    %v3966 = vpop.permute.xlu0 %3965
    %3967 = vrot.lane.b32.xlu0 %v3128, 56
    %v3968 = vpop.permute.xlu0 %3967
    %3969 = vrot.lane.b32.xlu0 %v3140, 56
    %v3970 = vpop.permute.xlu0 %3969
    %3971 = vrot.lane.b32.xlu0 %v3152, 56
    %v3972 = vpop.permute.xlu0 %3971
    %3973 = vrot.lane.b32.xlu0 %v3164, 56
    %v3974 = vpop.permute.xlu0 %3973
    %3975 = vrot.lane.b32.xlu0 %v3176, 56
    %v3976 = vpop.permute.xlu0 %3975
    %3977 = vrot.lane.b32.xlu0 %v3188, 56
    %v3978 = vpop.permute.xlu0 %3977
    %3979 = vrot.lane.b32.xlu0 %v3200, 56
    %v3980 = vpop.permute.xlu0 %3979
    %3981 = vrot.lane.b32.xlu0 %v3212, 56
    %v3982 = vpop.permute.xlu0 %3981
    %3983 = vrot.lane.b32.xlu0 %v3554, 56
    %v3984 = vpop.permute.xlu0 %3983
    %3985 = vrot.lane.b32.xlu0 %v630, 56
    %v3986 = vpop.permute.xlu0 %3985
    %3987 = vrot.lane.b32.xlu0 %v3236, 56
    %v3988 = vpop.permute.xlu0 %3987
    %3989 = vrot.lane.b32.xlu0 %v3248, 56
    %v3990 = vpop.permute.xlu0 %3989
    %3991 = vrot.lane.b32.xlu0 %v3260, 56
    %v3992 = vpop.permute.xlu0 %3991
    %3993 = vrot.lane.b32.xlu0 %v3272, 56
    %v3994 = vpop.permute.xlu0 %3993
    %3995 = vrot.lane.b32.xlu0 %v3284, 56
    %v3996 = vpop.permute.xlu0 %3995
    %3997 = vrot.lane.b32.xlu0 %v3296, 56
    %v3998 = vpop.permute.xlu0 %3997
    %3999 = vrot.lane.b32.xlu0 %v3308, 56
    %v4000 = vpop.permute.xlu0 %3999
    %4001 = vrot.lane.b32.xlu0 %v3320, 56
    %v4002 = vpop.permute.xlu0 %4001
    %4003 = vrot.lane.b32.xlu0 %v3332, 56
    %v4004 = vpop.permute.xlu0 %4003
    %4005 = vrot.lane.b32.xlu0 %v3344, 56
    %v4006 = vpop.permute.xlu0 %4005
    %4007 = vrot.lane.b32.xlu0 %v3356, 56
    %v4008 = vpop.permute.xlu0 %4007
    %4009 = vrot.lane.b32.xlu0 %v3368, 56
    %v4010 = vpop.permute.xlu0 %4009
    %4011 = vrot.lane.b32.xlu0 %v3380, 56
    %v4012 = vpop.permute.xlu0 %4011
    %4013 = vrot.lane.b32.xlu0 %v3392, 56
    %v4014 = vpop.permute.xlu0 %4013
    %4015 = vrot.lane.b32.xlu0 %v3566, 56
    %v4016 = vpop.permute.xlu0 %4015
    %4017 = vrot.lane.b32.xlu0 %v3458, 64
    %v4018 = vpop.permute.xlu0 %4017
    %4019 = vrot.lane.b32.xlu0 %v3461, 64
    %v4020 = vpop.permute.xlu0 %4019
    %4021 = vrot.lane.b32.xlu0 %v3464, 64
    %v4022 = vpop.permute.xlu0 %4021
    %4023 = vrot.lane.b32.xlu0 %v3467, 64
    %v4024 = vpop.permute.xlu0 %4023
    %4025 = vrot.lane.b32.xlu0 %v3470, 64
    %v4026 = vpop.permute.xlu0 %4025
    %4027 = vrot.lane.b32.xlu0 %v3473, 64
    %v4028 = vpop.permute.xlu0 %4027
    %4029 = vrot.lane.b32.xlu0 %v3476, 64
    %v4030 = vpop.permute.xlu0 %4029
    %4031 = vrot.lane.b32.xlu0 %v3479, 64
    %v4032 = vpop.permute.xlu0 %4031
    %4033 = vrot.lane.b32.xlu0 %v3482, 64
    %v4034 = vpop.permute.xlu0 %4033
    %4035 = vrot.lane.b32.xlu0 %v3485, 64
    %v4036 = vpop.permute.xlu0 %4035
    %4037 = vrot.lane.b32.xlu0 %v3488, 64
    %v4038 = vpop.permute.xlu0 %4037
    %4039 = vrot.lane.b32.xlu0 %v3491, 64
    %v4040 = vpop.permute.xlu0 %4039
    %4041 = vrot.lane.b32.xlu0 %v3494, 64
    %v4042 = vpop.permute.xlu0 %4041
    %4043 = vrot.lane.b32.xlu0 %v3497, 64
    %v4044 = vpop.permute.xlu0 %4043
    %4045 = vrot.lane.b32.xlu0 %v3573, 64
    %v4046 = vpop.permute.xlu0 %4045
    %4047 = vrot.lane.b32.xlu0 %v1056, 64
    %v4048 = vpop.permute.xlu0 %4047
    %4049 = vrot.lane.b32.xlu0 %v3503, 64
    %v4050 = vpop.permute.xlu0 %4049
    %4051 = vrot.lane.b32.xlu0 %v3506, 64
    %v4052 = vpop.permute.xlu0 %4051
    %4053 = vrot.lane.b32.xlu0 %v3509, 64
    %v4054 = vpop.permute.xlu0 %4053
    %4055 = vrot.lane.b32.xlu0 %v3512, 64
    %v4056 = vpop.permute.xlu0 %4055
    %4057 = vrot.lane.b32.xlu0 %v3515, 64
    %v4058 = vpop.permute.xlu0 %4057
    %4059 = vrot.lane.b32.xlu0 %v3518, 64
    %v4060 = vpop.permute.xlu0 %4059
    %4061 = vrot.lane.b32.xlu0 %v3521, 64
    %v4062 = vpop.permute.xlu0 %4061
    %4063 = vrot.lane.b32.xlu0 %v3524, 64
    %v4064 = vpop.permute.xlu0 %4063
    %4065 = vrot.lane.b32.xlu0 %v3527, 64
    %v4066 = vpop.permute.xlu0 %4065
    %4067 = vrot.lane.b32.xlu0 %v3530, 64
    %v4068 = vpop.permute.xlu0 %4067
    %4069 = vrot.lane.b32.xlu0 %v3533, 64
    %v4070 = vpop.permute.xlu0 %4069
    %4071 = vrot.lane.b32.xlu0 %v3536, 64
    %v4072 = vpop.permute.xlu0 %4071
    %4073 = vrot.lane.b32.xlu0 %v3539, 64
    %v4074 = vpop.permute.xlu0 %4073
    %4075 = vrot.lane.b32.xlu0 %v3542, 64
    %v4076 = vpop.permute.xlu0 %4075
    %4077 = vrot.lane.b32.xlu0 %v3576, 64
    %v4078 = vpop.permute.xlu0 %4077
    %v4080 = vsel %vm1746, %v552, %v3578
    %v4082 = vsel %vm1746, %v2969, %v3580
    %v4084 = vsel %vm1746, %v2970, %v3582
    %v4086 = vsel %vm1746, %v2971, %v3584
    %v4088 = vsel %vm1746, %v2972, %v3586
    %v4090 = vsel %vm1746, %v2973, %v3588
    %v4092 = vsel %vm1746, %v2974, %v3590
    %v4094 = vsel %vm1746, %v2975, %v3592
    %v4096 = vsel %vm1746, %v2976, %v3594
    %v4098 = vsel %vm1746, %v2977, %v3596
    %v4100 = vsel %vm1746, %v2978, %v3598
    %v4102 = vsel %vm1746, %v2979, %v3600
    %v4104 = vsel %vm1746, %v2980, %v3602
    %v4106 = vsel %vm1746, %v2981, %v3604
    %v4108 = vsel %vm1746, %v2982, %v3606
    %v4110 = vsel %vm1746, %v2983, %v3608
    %v4112 = vsel %vm1746, %v2985, %v3610
    %v4114 = vsel %vm1746, %v2986, %v3612
    %v4116 = vsel %vm1746, %v2987, %v3614
    %v4118 = vsel %vm1746, %v2988, %v3616
    %v4120 = vsel %vm1746, %v2989, %v3618
    %v4122 = vsel %vm1746, %v2990, %v3620
    %v4124 = vsel %vm1746, %v2991, %v3622
    %v4126 = vsel %vm1746, %v2992, %v3624
    %v4128 = vsel %vm1746, %v2993, %v3626
    %v4130 = vsel %vm1746, %v2994, %v3628
    %v4132 = vsel %vm1746, %v2995, %v3630
    %v4134 = vsel %vm1746, %v2996, %v3632
    %v4136 = vsel %vm1746, %v2997, %v3634
    %v4138 = vsel %vm1746, %v2998, %v3636
    %v4140 = vsel %vm1746, %v2999, %v3638
    %v4142 = vsel %vm1874, %v4080, %v3640
    %v4144 = vsel %vm1874, %v4082, %v3642
    %v4146 = vsel %vm1874, %v4084, %v3644
    %v4148 = vsel %vm1874, %v4086, %v3646
    %v4150 = vsel %vm1874, %v4088, %v3648
    %v4152 = vsel %vm1874, %v4090, %v3650
    %v4154 = vsel %vm1874, %v4092, %v3652
    %v4156 = vsel %vm1874, %v4094, %v3654
    %v4158 = vsel %vm1874, %v4096, %v3656
    %v4160 = vsel %vm1874, %v4098, %v3658
    %v4162 = vsel %vm1874, %v4100, %v3660
    %v4164 = vsel %vm1874, %v4102, %v3662
    %v4166 = vsel %vm1874, %v4104, %v3664
    %v4168 = vsel %vm1874, %v4106, %v3666
    %v4170 = vsel %vm1874, %v4108, %v3668
    %v4172 = vsel %vm1874, %v4110, %v3670
    %v4174 = vsel %vm1874, %v4112, %v3672
    %v4176 = vsel %vm1874, %v4114, %v3674
    %v4178 = vsel %vm1874, %v4116, %v3676
    %v4180 = vsel %vm1874, %v4118, %v3678
    %v4182 = vsel %vm1874, %v4120, %v3680
    %v4184 = vsel %vm1874, %v4122, %v3682
    %v4186 = vsel %vm1874, %v4124, %v3684
    %v4188 = vsel %vm1874, %v4126, %v3686
    %v4190 = vsel %vm1874, %v4128, %v3688
    %v4192 = vsel %vm1874, %v4130, %v3690
    %v4194 = vsel %vm1874, %v4132, %v3692
    %v4196 = vsel %vm1874, %v4134, %v3694
    %v4198 = vsel %vm1874, %v4136, %v3696
    %v4200 = vsel %vm1874, %v4138, %v3698
    %v4202 = vsel %vm1874, %v4140, %v3700
    %v4204 = vsel %vm2004, %v4142, %v3702
    %v4206 = vsel %vm2004, %v4144, %v3704
    %v4208 = vsel %vm2004, %v4146, %v3706
    %v4210 = vsel %vm2004, %v4148, %v3708
    %v4212 = vsel %vm2004, %v4150, %v3710
    %v4214 = vsel %vm2004, %v4152, %v3712
    %v4216 = vsel %vm2004, %v4154, %v3714
    %v4218 = vsel %vm2004, %v4156, %v3716
    %v4220 = vsel %vm2004, %v4158, %v3718
    %v4222 = vsel %vm2004, %v4160, %v3720
    %v4224 = vsel %vm2004, %v4162, %v3722
    %v4226 = vsel %vm2004, %v4164, %v3724
    %v4228 = vsel %vm2004, %v4166, %v3726
    %v4230 = vsel %vm2004, %v4168, %v3728
    %v4232 = vsel %vm2004, %v4170, %v3730
    %v4234 = vsel %vm2004, %v4172, %v3732
    %v4236 = vsel %vm2004, %v4142, %v3734
    %v4238 = vsel %vm2004, %v4174, %v3736
    %v4240 = vsel %vm2004, %v4176, %v3738
    %v4242 = vsel %vm2004, %v4178, %v3740
    %v4244 = vsel %vm2004, %v4180, %v3742
    %v4246 = vsel %vm2004, %v4182, %v3744
    %v4248 = vsel %vm2004, %v4184, %v3746
    %v4250 = vsel %vm2004, %v4186, %v3748
    %v4252 = vsel %vm2004, %v4188, %v3750
    %v4254 = vsel %vm2004, %v4190, %v3752
    %v4256 = vsel %vm2004, %v4192, %v3754
    %v4258 = vsel %vm2004, %v4194, %v3756
    %v4260 = vsel %vm2004, %v4196, %v3758
    %v4262 = vsel %vm2004, %v4198, %v3760
    %v4264 = vsel %vm2004, %v4200, %v3762
    %v4266 = vsel %vm2004, %v4202, %v3764
    %v4268 = vsel %vm2132, %v4204, %v3766
    %v4270 = vsel %vm2132, %v4206, %v3768
    %v4272 = vsel %vm2132, %v4208, %v3770
    %v4274 = vsel %vm2132, %v4210, %v3772
    %v4276 = vsel %vm2132, %v4212, %v3774
    %v4278 = vsel %vm2132, %v4214, %v3776
    %v4280 = vsel %vm2132, %v4216, %v3778
    %v4282 = vsel %vm2132, %v4218, %v3780
    %v4284 = vsel %vm2132, %v4220, %v3782
    %v4286 = vsel %vm2132, %v4222, %v3784
    %v4288 = vsel %vm2132, %v4224, %v3786
    %v4290 = vsel %vm2132, %v4226, %v3788
    %v4292 = vsel %vm2132, %v4228, %v3790
    %v4294 = vsel %vm2132, %v4230, %v3792
    %v4296 = vsel %vm2132, %v4232, %v3794
    %v4298 = vsel %vm2132, %v4234, %v3796
    %v4300 = vsel %vm2132, %v4236, %v3798
    %v4302 = vsel %vm2132, %v4238, %v3800
    %v4304 = vsel %vm2132, %v4240, %v3802
    %v4306 = vsel %vm2132, %v4242, %v3804
    %v4308 = vsel %vm2132, %v4244, %v3806
    %v4310 = vsel %vm2132, %v4246, %v3808
    %v4312 = vsel %vm2132, %v4248, %v3810
    %v4314 = vsel %vm2132, %v4250, %v3812
    %v4316 = vsel %vm2132, %v4252, %v3814
    %v4318 = vsel %vm2132, %v4254, %v3816
    %v4320 = vsel %vm2132, %v4256, %v3818
    %v4322 = vsel %vm2132, %v4258, %v3820
    %v4324 = vsel %vm2132, %v4260, %v3822
    %v4326 = vsel %vm2132, %v4262, %v3824
    %v4328 = vsel %vm2132, %v4264, %v3826
    %v4330 = vsel %vm2132, %v4266, %v3828
    %vm4331 = vcmask 326656
    %v4333 = vsel %vm4331, %v4268, %v3830
    %v4335 = vsel %vm4331, %v4270, %v3832
    %v4337 = vsel %vm4331, %v4272, %v3834
    %v4339 = vsel %vm4331, %v4274, %v3836
    %v4341 = vsel %vm4331, %v4276, %v3838
    %v4343 = vsel %vm4331, %v4278, %v3840
    %v4345 = vsel %vm4331, %v4280, %v3842
    %v4347 = vsel %vm4331, %v4282, %v3844
    %v4349 = vsel %vm4331, %v4284, %v3846
    %v4351 = vsel %vm4331, %v4286, %v3848
    %v4353 = vsel %vm4331, %v4288, %v3850
    %v4355 = vsel %vm4331, %v4290, %v3852
    %v4357 = vsel %vm4331, %v4292, %v3854
    %v4359 = vsel %vm4331, %v4294, %v3856
    %v4361 = vsel %vm4331, %v4296, %v3858
    %v4363 = vsel %vm4331, %v4298, %v3860
    %v4365 = vsel %vm4331, %v4300, %v3862
    %v4367 = vsel %vm4331, %v4302, %v3864
    %v4369 = vsel %vm4331, %v4304, %v3866
    %v4371 = vsel %vm4331, %v4306, %v3868
    %v4373 = vsel %vm4331, %v4308, %v3870
    %v4375 = vsel %vm4331, %v4310, %v3872
    %v4377 = vsel %vm4331, %v4312, %v3874
    %v4379 = vsel %vm4331, %v4314, %v3876
    %v4381 = vsel %vm4331, %v4316, %v3878
    %v4383 = vsel %vm4331, %v4318, %v3880
    %v4385 = vsel %vm4331, %v4320, %v3882
    %v4387 = vsel %vm4331, %v4322, %v3884
    %v4389 = vsel %vm4331, %v4324, %v3886
    %v4391 = vsel %vm4331, %v4326, %v3888
    %v4393 = vsel %vm4331, %v4328, %v3890
    %v4395 = vsel %vm4331, %v4330, %v3892
    %vm4396 = vcmask 392192
    %v4398 = vsel %vm4396, %v4333, %v3894
    %v4400 = vsel %vm4396, %v4335, %v3896
    %v4402 = vsel %vm4396, %v4337, %v3898
    %v4404 = vsel %vm4396, %v4339, %v3900
    %v4406 = vsel %vm4396, %v4341, %v3902
    %v4408 = vsel %vm4396, %v4343, %v3904
    %v4410 = vsel %vm4396, %v4345, %v3906
    %v4412 = vsel %vm4396, %v4347, %v3908
    %v4414 = vsel %vm4396, %v4349, %v3910
    %v4416 = vsel %vm4396, %v4351, %v3912
    %v4418 = vsel %vm4396, %v4353, %v3914
    %v4420 = vsel %vm4396, %v4355, %v3916
    %v4422 = vsel %vm4396, %v4357, %v3918
    %v4424 = vsel %vm4396, %v4359, %v3920
    %v4426 = vsel %vm4396, %v4361, %v3922
    %v4428 = vsel %vm4396, %v4363, %v3924
    %v4430 = vsel %vm4396, %v4365, %v3926
    %v4432 = vsel %vm4396, %v4367, %v3928
    %v4434 = vsel %vm4396, %v4369, %v3930
    %v4436 = vsel %vm4396, %v4371, %v3932
    %v4438 = vsel %vm4396, %v4373, %v3934
    %v4440 = vsel %vm4396, %v4375, %v3936
    %v4442 = vsel %vm4396, %v4377, %v3938
    %v4444 = vsel %vm4396, %v4379, %v3940
    %v4446 = vsel %vm4396, %v4381, %v3942
    %v4448 = vsel %vm4396, %v4383, %v3944
    %v4450 = vsel %vm4396, %v4385, %v3946
    %v4452 = vsel %vm4396, %v4387, %v3948
    %v4454 = vsel %vm4396, %v4389, %v3950
    %v4456 = vsel %vm4396, %v4391, %v3952
    %v4458 = vsel %vm4396, %v4393, %v3954
    %v4459 = vsel %vm4396, %v4395, %v3924
    %vm4460 = vcmask 457728
    %v4462 = vsel %vm4460, %v4398, %v3956
    %v4464 = vsel %vm4460, %v4400, %v3958
    %v4466 = vsel %vm4460, %v4402, %v3960
    %v4468 = vsel %vm4460, %v4404, %v3962
    %v4470 = vsel %vm4460, %v4406, %v3964
    %v4472 = vsel %vm4460, %v4408, %v3966
    %v4474 = vsel %vm4460, %v4410, %v3968
    %v4476 = vsel %vm4460, %v4412, %v3970
    %v4478 = vsel %vm4460, %v4414, %v3972
    %v4480 = vsel %vm4460, %v4416, %v3974
    %v4482 = vsel %vm4460, %v4418, %v3976
    %v4484 = vsel %vm4460, %v4420, %v3978
    %v4486 = vsel %vm4460, %v4422, %v3980
    %v4488 = vsel %vm4460, %v4424, %v3982
    %v4490 = vsel %vm4460, %v4426, %v3984
    %v4492 = vsel %vm4460, %v4428, %v3986
    %v4494 = vsel %vm4460, %v4430, %v3988
    %v4496 = vsel %vm4460, %v4432, %v3990
    %v4498 = vsel %vm4460, %v4434, %v3992
    %v4500 = vsel %vm4460, %v4436, %v3994
    %v4502 = vsel %vm4460, %v4438, %v3996
    %v4504 = vsel %vm4460, %v4440, %v3998
    %v4506 = vsel %vm4460, %v4442, %v4000
    %v4508 = vsel %vm4460, %v4444, %v4002
    %v4510 = vsel %vm4460, %v4446, %v4004
    %v4512 = vsel %vm4460, %v4448, %v4006
    %v4514 = vsel %vm4460, %v4450, %v4008
    %v4516 = vsel %vm4460, %v4452, %v4010
    %v4518 = vsel %vm4460, %v4454, %v4012
    %v4520 = vsel %vm4460, %v4456, %v4014
    %v4522 = vsel %vm4460, %v4458, %v4016
    %v4523 = vsel %vm4460, %v4459, %v3986
    %vm4524 = vcmask 523264
    %v4526 = vsel %vm4524, %v4462, %v4018
    %v4528 = vsel %vm4524, %v4464, %v4020
    %v4530 = vsel %vm4524, %v4466, %v4022
    %v4532 = vsel %vm4524, %v4468, %v4024
    %v4534 = vsel %vm4524, %v4470, %v4026
    %v4536 = vsel %vm4524, %v4472, %v4028
    %v4538 = vsel %vm4524, %v4474, %v4030
    %v4540 = vsel %vm4524, %v4476, %v4032
    %v4542 = vsel %vm4524, %v4478, %v4034
    %v4544 = vsel %vm4524, %v4480, %v4036
    %v4546 = vsel %vm4524, %v4482, %v4038
    %v4548 = vsel %vm4524, %v4484, %v4040
    %v4550 = vsel %vm4524, %v4486, %v4042
    %v4552 = vsel %vm4524, %v4488, %v4044
    %v4554 = vsel %vm4524, %v4490, %v4046
    %v4556 = vsel %vm4524, %v4492, %v4048
    %v4558 = vsel %vm4524, %v4494, %v4050
    %v4560 = vsel %vm4524, %v4496, %v4052
    %v4562 = vsel %vm4524, %v4498, %v4054
    %v4564 = vsel %vm4524, %v4500, %v4056
    %v4566 = vsel %vm4524, %v4502, %v4058
    %v4568 = vsel %vm4524, %v4504, %v4060
    %v4570 = vsel %vm4524, %v4506, %v4062
    %v4572 = vsel %vm4524, %v4508, %v4064
    %v4574 = vsel %vm4524, %v4510, %v4066
    %v4576 = vsel %vm4524, %v4512, %v4068
    %v4578 = vsel %vm4524, %v4514, %v4070
    %v4580 = vsel %vm4524, %v4516, %v4072
    %v4582 = vsel %vm4524, %v4518, %v4074
    %v4584 = vsel %vm4524, %v4520, %v4076
    %v4586 = vsel %vm4524, %v4522, %v4078
    %v4587 = vsel %vm4524, %v4523, %v4048
    %v4589 = vlaneseq
    %v4590 = vshrl.u32 %v4589, 7
    %v4591 = vsub.s32 0, %v4590
    %v4592 = vrot.slane %v2680, %v4591
    %v4603 = vunpack.c.l.b16 %v2671
    %v4604 = vunpack.c.l.b16 %v2672
    %v4605 = vunpack.c.l.b16 %v2673
    %v4606 = vunpack.c.l.b16 %v2674
    %v4607 = vunpack.c.l.b16 %v2675
    %v4608 = vunpack.c.l.b16 %v2676
    %v4609 = vunpack.c.l.b16 %v2677
    %v4610 = vunpack.c.l.b16 %v2678
    %v4611 = vunpack.c.l.b16 %v2679
    %v4612 = vpack.c.b16 %v4604, %v4603
    %v4613 = vpack.c.b16 %v4606, %v4605
    %v4614 = vpack.c.b16 %v4608, %v4607
    %v4615 = vpack.c.b16 %v4610, %v4609
    %v4616 = vpack.c.b16 %v4611, %v4611
    %vm4621 = vcmask 588800
    %v4622 = vsel %vm4621, %v4526, 0
    %v4624 = vsel %vm4621, %v4528, 0
    %v4626 = vsel %vm4621, %v4530, 0
    %v4628 = vsel %vm4621, %v4532, 0
    %v4630 = vsel %vm4621, %v4534, 0
    %v4632 = vsel %vm4621, %v4536, 0
    %v4634 = vsel %vm4621, %v4538, 0
    %v4636 = vsel %vm4621, %v4540, 0
    %v4638 = vsel %vm4621, %v4542, 0
    %v4640 = vsel %vm4621, %v4544, 0
    %v4642 = vsel %vm4621, %v4546, 0
    %v4644 = vsel %vm4621, %v4548, 0
    %v4646 = vsel %vm4621, %v4550, 0
    %v4648 = vsel %vm4621, %v4552, 0
    %v4650 = vsel %vm4621, %v4554, 0
    %v4652 = vsel %vm4621, %v4556, 0
    %v4654 = vsel %vm4621, %v4558, 0
    %v4656 = vsel %vm4621, %v4560, 0
    %v4658 = vsel %vm4621, %v4562, 0
    %v4660 = vsel %vm4621, %v4564, 0
    %v4662 = vsel %vm4621, %v4566, 0
    %v4664 = vsel %vm4621, %v4568, 0
    %v4666 = vsel %vm4621, %v4570, 0
    %v4668 = vsel %vm4621, %v4572, 0
    %v4670 = vsel %vm4621, %v4574, 0
    %v4672 = vsel %vm4621, %v4576, 0
    %v4674 = vsel %vm4621, %v4578, 0
    %v4676 = vsel %vm4621, %v4580, 0
    %v4678 = vsel %vm4621, %v4582, 0
    %v4680 = vsel %vm4621, %v4584, 0
    %v4682 = vsel %vm4621, %v4586, 0
    %v4684 = vsel %vm4621, %v4587, 0
    %vm4686 = vcmask 1043456
    %v4688 = vsel %vm4686, %v4616, 0
    %4690 = vmatprep.subr.bf16.mxu0 0
    %4691 = vmatpush1.bf16.msra.mxu0 %v4612
    %4692 = vmatprep.subr.bf16.mxu0 0
    %4693 = vmatpush1.bf16.msra.mxu0 %v4613
    %4694 = vmatprep.subr.bf16.mxu0 0
    %4695 = vmatpush1.bf16.msra.mxu0 %v4614
    %4696 = vmatprep.subr.bf16.mxu0 0
    %4697 = vmatpush1.bf16.msra.mxu0 %v4615
    %4698 = vmatprep.subr.bf16.mxu0 0
    %4699 = vmatpush1.bf16.msra.mxu0 %v4688
    %4700 = vmatprep.subr.bf16.mxu0 0
    %4701 = vmatpush1.bf16.msra.mxu0 0
    %4702 = vmatprep.subr.bf16.mxu0 0
    %4703 = vmatpush1.bf16.msra.mxu0 0
    %4704 = vmatprep.subr.bf16.mxu0 0
    %4705 = vmatpush1.bf16.msra.mxu0 0
    %4706 = vmatprep.subr.bf16.mxu0 0
    %4707 = vmatpush1.bf16.msra.mxu0 0
    %4708 = vmatprep.subr.bf16.mxu0 0
    %4709 = vmatpush1.bf16.msra.mxu0 0
    %4710 = vmatprep.subr.bf16.mxu0 0
    %4711 = vmatpush1.bf16.msra.mxu0 0
    %4712 = vmatprep.subr.bf16.mxu0 0
    %4713 = vmatpush1.bf16.msra.mxu0 0
    %4714 = vmatprep.subr.bf16.mxu0 0
    %4715 = vmatpush1.bf16.msra.mxu0 0
    %4716 = vmatprep.subr.bf16.mxu0 0
    %4717 = vmatpush1.bf16.msra.mxu0 0
    %4718 = vmatprep.subr.bf16.mxu0 0
    %4719 = vmatpush1.bf16.msra.mxu0 0
    %4720 = vmatprep.subr.bf16.mxu0 0
    %4721 = vmatpush1.bf16.msra.mxu0 0
    %4722 = vmatprep.mubr.bf16.mxu0 0
    %4723 = vmatmul.mubr.bf16.gmra.mrb[0].mxu0 %v4622
    %v4724 = vpop.f32.mrb[0].mxu0
    %v4725 = vadd.f32 %v4592, %v4724
    %v4726 = vpop.f32.mrb[0].mxu0
    %v4727 = vpop.f32.mrb[0].mxu0
    %v4728 = vadd.f32 %v4592, %v4727
    %v4729 = vpop.f32.mrb[0].mxu0
    %4730 = vmatprep.mubr.bf16.mxu0 0
    %4731 = vmatmul.mubr.bf16.gmra.mrb[0].mxu0 %v4624
    %v4732 = vpop.f32.mrb[0].mxu0
    %v4733 = vadd.f32 %v4592, %v4732
    %v4734 = vpop.f32.mrb[0].mxu0
    %v4735 = vpop.f32.mrb[0].mxu0
    %v4736 = vadd.f32 %v4592, %v4735
    %v4737 = vpop.f32.mrb[0].mxu0
    %4738 = vmatprep.mubr.bf16.mxu0 0
    %4739 = vmatmul.mubr.bf16.gmra.mrb[0].mxu0 %v4626
    %v4740 = vpop.f32.mrb[0].mxu0
    %v4741 = vadd.f32 %v4592, %v4740
    %v4742 = vpop.f32.mrb[0].mxu0
    %v4743 = vpop.f32.mrb[0].mxu0
    %v4744 = vadd.f32 %v4592, %v4743
    %v4745 = vpop.f32.mrb[0].mxu0
    %4746 = vmatprep.mubr.bf16.mxu0 0
    %4747 = vmatmul.mubr.bf16.gmra.mrb[0].mxu0 %v4628
    %v4748 = vpop.f32.mrb[0].mxu0
    %v4749 = vadd.f32 %v4592, %v4748
    %v4750 = vpop.f32.mrb[0].mxu0
    %v4751 = vpop.f32.mrb[0].mxu0
    %v4752 = vadd.f32 %v4592, %v4751
    %v4753 = vpop.f32.mrb[0].mxu0
    %4754 = vmatprep.mubr.bf16.mxu0 0
    %4755 = vmatmul.mubr.bf16.gmra.mrb[0].mxu0 %v4630
    %v4756 = vpop.f32.mrb[0].mxu0
    %v4757 = vadd.f32 %v4592, %v4756
    %v4758 = vpop.f32.mrb[0].mxu0
    %v4759 = vpop.f32.mrb[0].mxu0
    %v4760 = vadd.f32 %v4592, %v4759
    %v4761 = vpop.f32.mrb[0].mxu0
    %4762 = vmatprep.mubr.bf16.mxu0 0
    %4763 = vmatmul.mubr.bf16.gmra.mrb[0].mxu0 %v4632
    %v4764 = vpop.f32.mrb[0].mxu0
    %v4765 = vadd.f32 %v4592, %v4764
    %v4766 = vpop.f32.mrb[0].mxu0
    %v4767 = vpop.f32.mrb[0].mxu0
    %v4768 = vadd.f32 %v4592, %v4767
    %v4769 = vpop.f32.mrb[0].mxu0
    %4770 = vmatprep.mubr.bf16.mxu0 0
    %4771 = vmatmul.mubr.bf16.gmra.mrb[0].mxu0 %v4634
    %v4772 = vpop.f32.mrb[0].mxu0
    %v4773 = vadd.f32 %v4592, %v4772
    %v4774 = vpop.f32.mrb[0].mxu0
    %v4775 = vpop.f32.mrb[0].mxu0
    %v4776 = vadd.f32 %v4592, %v4775
    %v4777 = vpop.f32.mrb[0].mxu0
    %4778 = vmatprep.mubr.bf16.mxu0 0
    %4779 = vmatmul.mubr.bf16.gmra.mrb[0].mxu0 %v4636
    %v4780 = vpop.f32.mrb[0].mxu0
    %v4781 = vadd.f32 %v4592, %v4780
    %v4782 = vpop.f32.mrb[0].mxu0
    %v4783 = vpop.f32.mrb[0].mxu0
    %v4784 = vadd.f32 %v4592, %v4783
    %v4785 = vpop.f32.mrb[0].mxu0
    %4786 = vmatprep.mubr.bf16.mxu0 0
    %4787 = vmatmul.mubr.bf16.gmra.mrb[0].mxu0 %v4638
    %v4788 = vpop.f32.mrb[0].mxu0
    %v4789 = vadd.f32 %v4592, %v4788
    %v4790 = vpop.f32.mrb[0].mxu0
    %v4791 = vpop.f32.mrb[0].mxu0
    %v4792 = vadd.f32 %v4592, %v4791
    %v4793 = vpop.f32.mrb[0].mxu0
    %4794 = vmatprep.mubr.bf16.mxu0 0
    %4795 = vmatmul.mubr.bf16.gmra.mrb[0].mxu0 %v4640
    %v4796 = vpop.f32.mrb[0].mxu0
    %v4797 = vadd.f32 %v4592, %v4796
    %v4798 = vpop.f32.mrb[0].mxu0
    %v4799 = vpop.f32.mrb[0].mxu0
    %v4800 = vadd.f32 %v4592, %v4799
    %v4801 = vpop.f32.mrb[0].mxu0
    %4802 = vmatprep.mubr.bf16.mxu0 0
    %4803 = vmatmul.mubr.bf16.gmra.mrb[0].mxu0 %v4642
    %v4804 = vpop.f32.mrb[0].mxu0
    %v4805 = vadd.f32 %v4592, %v4804
    %v4806 = vpop.f32.mrb[0].mxu0
    %v4807 = vpop.f32.mrb[0].mxu0
    %v4808 = vadd.f32 %v4592, %v4807
    %v4809 = vpop.f32.mrb[0].mxu0
    %4810 = vmatprep.mubr.bf16.mxu0 0
    %4811 = vmatmul.mubr.bf16.gmra.mrb[0].mxu0 %v4644
    %v4812 = vpop.f32.mrb[0].mxu0
    %v4813 = vadd.f32 %v4592, %v4812
    %v4814 = vpop.f32.mrb[0].mxu0
    %v4815 = vpop.f32.mrb[0].mxu0
    %v4816 = vadd.f32 %v4592, %v4815
    %v4817 = vpop.f32.mrb[0].mxu0
    %4818 = vmatprep.mubr.bf16.mxu0 0
    %4819 = vmatmul.mubr.bf16.gmra.mrb[0].mxu0 %v4646
    %v4820 = vpop.f32.mrb[0].mxu0
    %v4821 = vadd.f32 %v4592, %v4820
    %v4822 = vpop.f32.mrb[0].mxu0
    %v4823 = vpop.f32.mrb[0].mxu0
    %v4824 = vadd.f32 %v4592, %v4823
    %v4825 = vpop.f32.mrb[0].mxu0
    %4826 = vmatprep.mubr.bf16.mxu0 0
    %4827 = vmatmul.mubr.bf16.gmra.mrb[0].mxu0 %v4648
    %v4828 = vpop.f32.mrb[0].mxu0
    %v4829 = vadd.f32 %v4592, %v4828
    %v4830 = vpop.f32.mrb[0].mxu0
    %v4831 = vpop.f32.mrb[0].mxu0
    %v4832 = vadd.f32 %v4592, %v4831
    %v4833 = vpop.f32.mrb[0].mxu0
    %4834 = vmatprep.mubr.bf16.mxu0 0
    %4835 = vmatmul.mubr.bf16.gmra.mrb[0].mxu0 %v4650
    %v4836 = vpop.f32.mrb[0].mxu0
    %v4837 = vadd.f32 %v4592, %v4836
    %v4838 = vpop.f32.mrb[0].mxu0
    %v4839 = vpop.f32.mrb[0].mxu0
    %v4840 = vadd.f32 %v4592, %v4839
    %v4841 = vpop.f32.mrb[0].mxu0
    %4842 = vmatprep.mubr.bf16.mxu0 0
    %4843 = vmatmul.mubr.bf16.gmra.mrb[0].mxu0 %v4652
    %v4844 = vpop.f32.mrb[0].mxu0
    %v4845 = vadd.f32 %v4592, %v4844
    %v4846 = vpop.f32.mrb[0].mxu0
    %v4847 = vpop.f32.mrb[0].mxu0
    %v4848 = vadd.f32 %v4592, %v4847
    %v4849 = vpop.f32.mrb[0].mxu0
    %4850 = vmatprep.mubr.bf16.mxu0 0
    %4851 = vmatmul.mubr.bf16.gmra.mrb[0].mxu0 %v4654
    %v4852 = vpop.f32.mrb[0].mxu0
    %v4853 = vadd.f32 %v4592, %v4852
    %v4854 = vpop.f32.mrb[0].mxu0
    %v4855 = vpop.f32.mrb[0].mxu0
    %v4856 = vadd.f32 %v4592, %v4855
    %v4857 = vpop.f32.mrb[0].mxu0
    %4858 = vmatprep.mubr.bf16.mxu0 0
    %4859 = vmatmul.mubr.bf16.gmra.mrb[0].mxu0 %v4656
    %v4860 = vpop.f32.mrb[0].mxu0
    %v4861 = vadd.f32 %v4592, %v4860
    %v4862 = vpop.f32.mrb[0].mxu0
    %v4863 = vpop.f32.mrb[0].mxu0
    %v4864 = vadd.f32 %v4592, %v4863
    %v4865 = vpop.f32.mrb[0].mxu0
    %4866 = vmatprep.mubr.bf16.mxu0 0
    %4867 = vmatmul.mubr.bf16.gmra.mrb[0].mxu0 %v4658
    %v4868 = vpop.f32.mrb[0].mxu0
    %v4869 = vadd.f32 %v4592, %v4868
    %v4870 = vpop.f32.mrb[0].mxu0
    %v4871 = vpop.f32.mrb[0].mxu0
    %v4872 = vadd.f32 %v4592, %v4871
    %v4873 = vpop.f32.mrb[0].mxu0
    %4874 = vmatprep.mubr.bf16.mxu0 0
    %4875 = vmatmul.mubr.bf16.gmra.mrb[0].mxu0 %v4660
    %v4876 = vpop.f32.mrb[0].mxu0
    %v4877 = vadd.f32 %v4592, %v4876
    %v4878 = vpop.f32.mrb[0].mxu0
    %v4879 = vpop.f32.mrb[0].mxu0
    %v4880 = vadd.f32 %v4592, %v4879
    %v4881 = vpop.f32.mrb[0].mxu0
    %4882 = vmatprep.mubr.bf16.mxu0 0
    %4883 = vmatmul.mubr.bf16.gmra.mrb[0].mxu0 %v4662
    %v4884 = vpop.f32.mrb[0].mxu0
    %v4885 = vadd.f32 %v4592, %v4884
    %v4886 = vpop.f32.mrb[0].mxu0
    %v4887 = vpop.f32.mrb[0].mxu0
    %v4888 = vadd.f32 %v4592, %v4887
    %v4889 = vpop.f32.mrb[0].mxu0
    %4890 = vmatprep.mubr.bf16.mxu0 0
    %4891 = vmatmul.mubr.bf16.gmra.mrb[0].mxu0 %v4664
    %v4892 = vpop.f32.mrb[0].mxu0
    %v4893 = vadd.f32 %v4592, %v4892
    %v4894 = vpop.f32.mrb[0].mxu0
    %v4895 = vpop.f32.mrb[0].mxu0
    %v4896 = vadd.f32 %v4592, %v4895
    %v4897 = vpop.f32.mrb[0].mxu0
    %4898 = vmatprep.mubr.bf16.mxu0 0
    %4899 = vmatmul.mubr.bf16.gmra.mrb[0].mxu0 %v4666
    %v4900 = vpop.f32.mrb[0].mxu0
    %v4901 = vadd.f32 %v4592, %v4900
    %v4902 = vpop.f32.mrb[0].mxu0
    %v4903 = vpop.f32.mrb[0].mxu0
    %v4904 = vadd.f32 %v4592, %v4903
    %v4905 = vpop.f32.mrb[0].mxu0
    %4906 = vmatprep.mubr.bf16.mxu0 0
    %4907 = vmatmul.mubr.bf16.gmra.mrb[0].mxu0 %v4668
    %v4908 = vpop.f32.mrb[0].mxu0
    %v4909 = vadd.f32 %v4592, %v4908
    %v4910 = vpop.f32.mrb[0].mxu0
    %v4911 = vpop.f32.mrb[0].mxu0
    %v4912 = vadd.f32 %v4592, %v4911
    %v4913 = vpop.f32.mrb[0].mxu0
    %4914 = vmatprep.mubr.bf16.mxu0 0
    %4915 = vmatmul.mubr.bf16.gmra.mrb[0].mxu0 %v4670
    %v4916 = vpop.f32.mrb[0].mxu0
    %v4917 = vadd.f32 %v4592, %v4916
    %v4918 = vpop.f32.mrb[0].mxu0
    %v4919 = vpop.f32.mrb[0].mxu0
    %v4920 = vadd.f32 %v4592, %v4919
    %v4921 = vpop.f32.mrb[0].mxu0
    %4922 = vmatprep.mubr.bf16.mxu0 0
    %4923 = vmatmul.mubr.bf16.gmra.mrb[0].mxu0 %v4672
    %v4924 = vpop.f32.mrb[0].mxu0
    %v4925 = vadd.f32 %v4592, %v4924
    %v4926 = vpop.f32.mrb[0].mxu0
    %v4927 = vpop.f32.mrb[0].mxu0
    %v4928 = vadd.f32 %v4592, %v4927
    %v4929 = vpop.f32.mrb[0].mxu0
    %4930 = vmatprep.mubr.bf16.mxu0 0
    %4931 = vmatmul.mubr.bf16.gmra.mrb[0].mxu0 %v4674
    %v4932 = vpop.f32.mrb[0].mxu0
    %v4933 = vadd.f32 %v4592, %v4932
    %v4934 = vpop.f32.mrb[0].mxu0
    %v4935 = vpop.f32.mrb[0].mxu0
    %v4936 = vadd.f32 %v4592, %v4935
    %v4937 = vpop.f32.mrb[0].mxu0
    %4938 = vmatprep.mubr.bf16.mxu0 0
    %4939 = vmatmul.mubr.bf16.gmra.mrb[0].mxu0 %v4676
    %v4940 = vpop.f32.mrb[0].mxu0
    %v4941 = vadd.f32 %v4592, %v4940
    %v4942 = vpop.f32.mrb[0].mxu0
    %v4943 = vpop.f32.mrb[0].mxu0
    %v4944 = vadd.f32 %v4592, %v4943
    %v4945 = vpop.f32.mrb[0].mxu0
    %4946 = vmatprep.mubr.bf16.mxu0 0
    %4947 = vmatmul.mubr.bf16.gmra.mrb[0].mxu0 %v4678
    %v4948 = vpop.f32.mrb[0].mxu0
    %v4949 = vadd.f32 %v4592, %v4948
    %v4950 = vpop.f32.mrb[0].mxu0
    %v4951 = vpop.f32.mrb[0].mxu0
    %v4952 = vadd.f32 %v4592, %v4951
    %v4953 = vpop.f32.mrb[0].mxu0
    %4954 = vmatprep.mubr.bf16.mxu0 0
    %4955 = vmatmul.mubr.bf16.gmra.mrb[0].mxu0 %v4680
    %v4956 = vpop.f32.mrb[0].mxu0
    %v4957 = vadd.f32 %v4592, %v4956
    %v4958 = vpop.f32.mrb[0].mxu0
    %v4959 = vpop.f32.mrb[0].mxu0
    %v4960 = vadd.f32 %v4592, %v4959
    %v4961 = vpop.f32.mrb[0].mxu0
    %4962 = vmatprep.mubr.bf16.mxu0 0
    %4963 = vmatmul.mubr.bf16.gmra.mrb[0].mxu0 %v4682
    %v4964 = vpop.f32.mrb[0].mxu0
    %v4965 = vadd.f32 %v4592, %v4964
    %v4966 = vpop.f32.mrb[0].mxu0
    %v4967 = vpop.f32.mrb[0].mxu0
    %v4968 = vadd.f32 %v4592, %v4967
    %v4969 = vpop.f32.mrb[0].mxu0
    %4970 = vmatprep.mubr.bf16.mxu0 0
    %4971 = vmatmul.mubr.bf16.gmra.mrb[0].mxu0 %v4684
    %v4972 = vpop.f32.mrb[0].mxu0
    %v4973 = vadd.f32 %v4592, %v4972
    %v4974 = vpop.f32.mrb[0].mxu0
    %v4975 = vpop.f32.mrb[0].mxu0
    %v4976 = vadd.f32 %v4592, %v4975
    %v4977 = vpop.f32.mrb[0].mxu0
    %4978 = vdwg.mxu0
    %v4979 = vmax.f32 %v4725, 0.0
    %v4980 = vmax.f32 %v4728, 0.0
    %v4981 = vmax.f32 %v4733, 0.0
    %v4982 = vmax.f32 %v4736, 0.0
    %v4983 = vmax.f32 %v4741, 0.0
    %v4984 = vmax.f32 %v4744, 0.0
    %v4985 = vmax.f32 %v4749, 0.0
    %v4986 = vmax.f32 %v4752, 0.0
    %v4987 = vmax.f32 %v4757, 0.0
    %v4988 = vmax.f32 %v4760, 0.0
    %v4989 = vmax.f32 %v4765, 0.0
    %v4990 = vmax.f32 %v4768, 0.0
    %v4991 = vmax.f32 %v4773, 0.0
    %v4992 = vmax.f32 %v4776, 0.0
    %v4993 = vmax.f32 %v4781, 0.0
    %v4994 = vmax.f32 %v4784, 0.0
    %v4995 = vmax.f32 %v4789, 0.0
    %v4996 = vmax.f32 %v4792, 0.0
    %v4997 = vmax.f32 %v4797, 0.0
    %v4998 = vmax.f32 %v4800, 0.0
    %v4999 = vmax.f32 %v4805, 0.0
    %v5000 = vmax.f32 %v4808, 0.0
    %v5001 = vmax.f32 %v4813, 0.0
    %v5002 = vmax.f32 %v4816, 0.0
    %v5003 = vmax.f32 %v4821, 0.0
    %v5004 = vmax.f32 %v4824, 0.0
    %v5005 = vmax.f32 %v4829, 0.0
    %v5006 = vmax.f32 %v4832, 0.0
    %v5007 = vmax.f32 %v4837, 0.0
    %v5008 = vmax.f32 %v4840, 0.0
    %v5009 = vmax.f32 %v4845, 0.0
    %v5010 = vmax.f32 %v4848, 0.0
    %v5011 = vmax.f32 %v4853, 0.0
    %v5012 = vmax.f32 %v4856, 0.0
    %v5013 = vmax.f32 %v4861, 0.0
    %v5014 = vmax.f32 %v4864, 0.0
    %v5015 = vmax.f32 %v4869, 0.0
    %v5016 = vmax.f32 %v4872, 0.0
    %v5017 = vmax.f32 %v4877, 0.0
    %v5018 = vmax.f32 %v4880, 0.0
    %v5019 = vmax.f32 %v4885, 0.0
    %v5020 = vmax.f32 %v4888, 0.0
    %v5021 = vmax.f32 %v4893, 0.0
    %v5022 = vmax.f32 %v4896, 0.0
    %v5023 = vmax.f32 %v4901, 0.0
    %v5024 = vmax.f32 %v4904, 0.0
    %v5025 = vmax.f32 %v4909, 0.0
    %v5026 = vmax.f32 %v4912, 0.0
    %v5027 = vmax.f32 %v4917, 0.0
    %v5028 = vmax.f32 %v4920, 0.0
    %v5029 = vmax.f32 %v4925, 0.0
    %v5030 = vmax.f32 %v4928, 0.0
    %v5031 = vmax.f32 %v4933, 0.0
    %v5032 = vmax.f32 %v4936, 0.0
    %v5033 = vmax.f32 %v4941, 0.0
    %v5034 = vmax.f32 %v4944, 0.0
    %v5035 = vmax.f32 %v4949, 0.0
    %v5036 = vmax.f32 %v4952, 0.0
    %v5037 = vmax.f32 %v4957, 0.0
    %v5038 = vmax.f32 %v4960, 0.0
    %v5039 = vmax.f32 %v4965, 0.0
    %v5040 = vmax.f32 %v4968, 0.0
    %v5041 = vmax.f32 %v4973, 0.0
    %v5042 = vmax.f32 %v4976, 0.0
    %v5043 = vsel %vm1874, %v4979, 0.0
    %v5044 = vsel %vm1874, %v4980, 0.0
    %v5045 = vadd.f32 %v5043, %v5044
    %v5046 = vsel %vm1874, %v4981, 0.0
    %v5047 = vadd.f32 %v5045, %v5046
    %v5048 = vsel %vm1874, %v4982, 0.0
    %v5049 = vadd.f32 %v5047, %v5048
    %v5050 = vsel %vm1874, %v4983, 0.0
    %v5051 = vadd.f32 %v5049, %v5050
    %v5052 = vsel %vm1874, %v4984, 0.0
    %v5053 = vadd.f32 %v5051, %v5052
    %v5054 = vsel %vm1874, %v4985, 0.0
    %v5055 = vadd.f32 %v5053, %v5054
    %v5056 = vsel %vm1874, %v4986, 0.0
    %v5057 = vadd.f32 %v5055, %v5056
    %v5058 = vsel %vm1874, %v4987, 0.0
    %v5059 = vadd.f32 %v5057, %v5058
    %v5060 = vsel %vm1874, %v4988, 0.0
    %v5061 = vadd.f32 %v5059, %v5060
    %v5062 = vsel %vm1874, %v4989, 0.0
    %v5063 = vadd.f32 %v5061, %v5062
    %v5064 = vsel %vm1874, %v4990, 0.0
    %v5065 = vadd.f32 %v5063, %v5064
    %v5066 = vsel %vm1874, %v4991, 0.0
    %v5067 = vadd.f32 %v5065, %v5066
    %v5068 = vsel %vm1874, %v4992, 0.0
    %v5069 = vadd.f32 %v5067, %v5068
    %v5070 = vsel %vm1874, %v4993, 0.0
    %v5071 = vadd.f32 %v5069, %v5070
    %v5072 = vsel %vm1874, %v4994, 0.0
    %v5073 = vadd.f32 %v5071, %v5072
    %v5074 = vsel %vm1874, %v4995, 0.0
    %v5075 = vadd.f32 %v5073, %v5074
    %v5076 = vsel %vm1874, %v4996, 0.0
    %v5077 = vadd.f32 %v5075, %v5076
    %v5078 = vsel %vm1874, %v4997, 0.0
    %v5079 = vadd.f32 %v5077, %v5078
    %v5080 = vsel %vm1874, %v4998, 0.0
    %v5081 = vadd.f32 %v5079, %v5080
    %v5082 = vsel %vm1874, %v4999, 0.0
    %v5083 = vadd.f32 %v5081, %v5082
    %v5084 = vsel %vm1874, %v5000, 0.0
    %v5085 = vadd.f32 %v5083, %v5084
    %v5086 = vsel %vm1874, %v5001, 0.0
    %v5087 = vadd.f32 %v5085, %v5086
    %v5088 = vsel %vm1874, %v5002, 0.0
    %v5089 = vadd.f32 %v5087, %v5088
    %v5090 = vsel %vm1874, %v5003, 0.0
    %v5091 = vadd.f32 %v5089, %v5090
    %v5092 = vsel %vm1874, %v5004, 0.0
    %v5093 = vadd.f32 %v5091, %v5092
    %v5094 = vsel %vm1874, %v5005, 0.0
    %v5095 = vadd.f32 %v5093, %v5094
    %v5096 = vsel %vm1874, %v5006, 0.0
    %v5097 = vadd.f32 %v5095, %v5096
    %v5098 = vsel %vm1874, %v5007, 0.0
    %v5099 = vadd.f32 %v5097, %v5098
    %v5100 = vsel %vm1874, %v5008, 0.0
    %v5101 = vadd.f32 %v5099, %v5100
    %v5102 = vsel %vm1874, %v5009, 0.0
    %v5103 = vadd.f32 %v5101, %v5102
    %v5104 = vsel %vm1874, %v5010, 0.0
    %v5105 = vadd.f32 %v5103, %v5104
    %v5106 = vrot.slane %v5105, 4
    %v5107 = vadd.f32 %v5105, %v5106
    %v5108 = vrot.slane %v5107, 2
    %v5109 = vadd.f32 %v5107, %v5108
    %v5110 = vrot.slane %v5109, 1
    %v5111 = vadd.f32 %v5109, %v5110
    %v5112 = vsel %vm1874, %v5011, 0.0
    %v5113 = vsel %vm1874, %v5012, 0.0
    %v5114 = vadd.f32 %v5112, %v5113
    %v5115 = vsel %vm1874, %v5013, 0.0
    %v5116 = vadd.f32 %v5114, %v5115
    %v5117 = vsel %vm1874, %v5014, 0.0
    %v5118 = vadd.f32 %v5116, %v5117
    %v5119 = vsel %vm1874, %v5015, 0.0
    %v5120 = vadd.f32 %v5118, %v5119
    %v5121 = vsel %vm1874, %v5016, 0.0
    %v5122 = vadd.f32 %v5120, %v5121
    %v5123 = vsel %vm1874, %v5017, 0.0
    %v5124 = vadd.f32 %v5122, %v5123
    %v5125 = vsel %vm1874, %v5018, 0.0
    %v5126 = vadd.f32 %v5124, %v5125
    %v5127 = vsel %vm1874, %v5019, 0.0
    %v5128 = vadd.f32 %v5126, %v5127
    %v5129 = vsel %vm1874, %v5020, 0.0
    %v5130 = vadd.f32 %v5128, %v5129
    %v5131 = vsel %vm1874, %v5021, 0.0
    %v5132 = vadd.f32 %v5130, %v5131
    %v5133 = vsel %vm1874, %v5022, 0.0
    %v5134 = vadd.f32 %v5132, %v5133
    %v5135 = vsel %vm1874, %v5023, 0.0
    %v5136 = vadd.f32 %v5134, %v5135
    %v5137 = vsel %vm1874, %v5024, 0.0
    %v5138 = vadd.f32 %v5136, %v5137
    %v5139 = vsel %vm1874, %v5025, 0.0
    %v5140 = vadd.f32 %v5138, %v5139
    %v5141 = vsel %vm1874, %v5026, 0.0
    %v5142 = vadd.f32 %v5140, %v5141
    %v5143 = vsel %vm1874, %v5027, 0.0
    %v5144 = vadd.f32 %v5142, %v5143
    %v5145 = vsel %vm1874, %v5028, 0.0
    %v5146 = vadd.f32 %v5144, %v5145
    %v5147 = vsel %vm1874, %v5029, 0.0
    %v5148 = vadd.f32 %v5146, %v5147
    %v5149 = vsel %vm1874, %v5030, 0.0
    %v5150 = vadd.f32 %v5148, %v5149
    %v5151 = vsel %vm1874, %v5031, 0.0
    %v5152 = vadd.f32 %v5150, %v5151
    %v5153 = vsel %vm1874, %v5032, 0.0
    %v5154 = vadd.f32 %v5152, %v5153
    %v5155 = vsel %vm1874, %v5033, 0.0
    %v5156 = vadd.f32 %v5154, %v5155
    %v5157 = vsel %vm1874, %v5034, 0.0
    %v5158 = vadd.f32 %v5156, %v5157
    %v5159 = vsel %vm1874, %v5035, 0.0
    %v5160 = vadd.f32 %v5158, %v5159
    %v5161 = vsel %vm1874, %v5036, 0.0
    %v5162 = vadd.f32 %v5160, %v5161
    %v5163 = vsel %vm1874, %v5037, 0.0
    %v5164 = vadd.f32 %v5162, %v5163
    %v5165 = vsel %vm1874, %v5038, 0.0
    %v5166 = vadd.f32 %v5164, %v5165
    %v5167 = vsel %vm1874, %v5039, 0.0
    %v5168 = vadd.f32 %v5166, %v5167
    %v5169 = vsel %vm1874, %v5040, 0.0
    %v5170 = vadd.f32 %v5168, %v5169
    %v5171 = vsel %vm1874, %v5041, 0.0
    %v5172 = vadd.f32 %v5170, %v5171
    %v5173 = vsel %vm1874, %v5042, 0.0
    %v5174 = vadd.f32 %v5172, %v5173
    %v5175 = vrot.slane %v5174, 4
    %v5176 = vadd.f32 %v5174, %v5175
    %v5177 = vrot.slane %v5176, 2
    %v5178 = vadd.f32 %v5176, %v5177
    %v5179 = vrot.slane %v5178, 1
    %v5180 = vadd.f32 %v5178, %v5179
    %v5181 = vmul.f32 %v5111, 0.00390625
    %v5182 = vmul.f32 %v5180, 0.00390625
    %vm5185 = vcmask 1041409
    %v5186 = vsel %vm5185, %v5182, %v5181
    %vm5188 = vcmask 123904
    %5189 = vst.msk [vmem:[#allocation2] sm:$0x3] %vm5188, %v5186
    // Predicated region
    $region22: #{feature_extractor_forward.1} parent=1 // pred_check
      _
    $region23: #{feature_extractor_forward.1} parent=1 // pred_check_branch
      %5191 = sbr.rel (0) target = $region25
    $region24: #{feature_extractor_forward.1} parent=1 // pred_region
      %s5193 = ssub.s32 32, 32
      %5194 = vsyncadd [#allocation3], %s5193
      %s5196 = sshll.u32 [#allocation2], 4
      %s5197 = int_to_ptr.vmem [resolvable:$true] %s5196
      %5199 = dma.vmem_to_hbm [thread:$0]  %s5197, 32, %s5, [#allocation3]
    $region25: #{feature_extractor_forward.1} parent=1 // pred_fallthru
      _
    // Predicated region
    $region26: #{feature_extractor_forward.1} parent=1 // pred_check
      _
    $region27: #{feature_extractor_forward.1} parent=1 // pred_check_branch
      %5201 = sbr.rel (0) target = $region29
    $region28: #{feature_extractor_forward.1} parent=1 // pred_region
      %5202 = dma.done [#allocation3], 32
    $region29: #{feature_extractor_forward.1} parent=1 // pred_fallthru
      _
    %5203 = vsyncpa [#allocation3], 1

</llo_original>
